<compile_context>
chip_gen: v7x
topology: tpu7x:2x2x1
jax: 0.10.0
libtpu: 0.0.40
codegen_flags: <defaults>
</compile_context>

<pallas_src>
import functools

import jax
import jax.numpy as jnp
from jax.experimental import pallas as pl
from jax.experimental.pallas import tpu as pltpu


# ----------------------------------------------------------------------------
# small helpers
# ----------------------------------------------------------------------------
def _round_up(x, m):
    return (x + m - 1) // m * m


def _layernorm(x, g, b, eps=1e-5):
    # Fused statistics: E[x] and E[x^2] are two independent cross-lane reductions
    # (they pipeline in the XLU), var = E[x^2] - E[x]^2.
    mu = jnp.mean(x, axis=-1, keepdims=True)
    ex2 = jnp.mean(x * x, axis=-1, keepdims=True)
    var = jnp.maximum(ex2 - mu * mu, 0.0)
    return (x - mu) * jax.lax.rsqrt(var + eps) * g + b


def _softmax_over_keys(s, n_valid, exact):
    """Softmax over the last axis with key positions >= n_valid masked out."""
    mask_shape = (1,) * (s.ndim - 1) + (s.shape[-1],)
    valid = jax.lax.broadcasted_iota(jnp.int32, mask_shape, s.ndim - 1) < n_valid
    s = jnp.where(valid, s, -1e30)
    s = s - jnp.max(s, axis=-1, keepdims=True)
    p = jnp.exp(s)
    den = jnp.sum(p, axis=-1, keepdims=True)
    if exact:
        return p / den
    return p * pl.reciprocal(den, approx=True)


def _vmem_limit_bytes():
    # Re-derive the VMEM budget per chip: <= ~56 MiB on v7x (64 MiB physical),
    # up to ~100 MiB on v5e/v6e (128 MiB physical).  Review item.
    try:
        cap = int(pltpu.get_tpu_info().vmem_capacity_bytes)
    except Exception:
        cap = 64 * 1024 * 1024
    return int(min(max(cap - 8 * 1024 * 1024, 32 * 1024 * 1024), 100 * 1024 * 1024))


# ----------------------------------------------------------------------------
# kernels
# ----------------------------------------------------------------------------
def _embed_kernel(patch_ref, convw_ref, pos_ref, g_ref, b_ref, x0_ref):
    # patch rows are pre-placed host-side (row 0 / pad rows are zero) so the
    # matmul output lands exactly where [CLS]/padding go; pos row 0 already
    # contains pos_emb[0] + class_embedding.
    xp = jnp.dot(patch_ref[...], convw_ref[...], preferred_element_type=jnp.float32)
    x0_ref[...] = _layernorm(xp + pos_ref[...], g_ref[...], b_ref[...])


def _head_kernel(cls_ref, g_ref, b_ref, proj_ref, textt_ref, logits_ref, feats_ref):
    c = _layernorm(cls_ref[...], g_ref[...], b_ref[...])
    feats = jnp.dot(c, proj_ref[...], preferred_element_type=jnp.float32)
    ssq = jnp.sum(feats * feats, axis=-1, keepdims=True)
    # 1 / max(||f||, 1e-12) == rsqrt(max(||f||^2, 1e-24))  (F.normalize semantics)
    feats_n = feats * jax.lax.rsqrt(jnp.maximum(ssq, 1e-24))
    feats_ref[...] = feats_n
    # logit_scale is folded into textt host-side (removes a VMEM/SMEM operand).
    logits_ref[...] = jnp.dot(feats_n, textt_ref[...], preferred_element_type=jnp.float32)


def _layers_kernel(
    x0_ref,
    ln1_g_ref, ln1_b_ref, qw_ref, qb_ref, kw_ref, kb_ref, vw_ref, vb_ref,
    outw_ref, outb_ref, ln2_g_ref, ln2_b_ref,
    fc1w_ref, fc1b_ref, fc2w_ref, fc2b_ref,
    x_ref,
    *, BT, S_pad, S_valid, D, H, batched_heads, exact_softmax,
):
    f32 = jnp.float32
    bf16 = jnp.bfloat16
    layer = pl.program_id(1)
    dh = D // H
    Mt = BT * S_pad
    scale = 1.0 / float(dh) ** 0.5

    # The residual stream lives in the (revisited) output block: flat (Mt, D) f32.
    @pl.when(layer == 0)
    def _init():
        x_ref[...] = x0_ref[...]

    x2 = x_ref[...]

    # --- multi-head self-attention -------------------------------------------
    h = _layernorm(x2, ln1_g_ref[0], ln1_b_ref[0]).astype(bf16)
    q = jnp.dot(h, qw_ref[0], preferred_element_type=f32) + qb_ref[0]
    k = jnp.dot(h, kw_ref[0], preferred_element_type=f32) + kb_ref[0]
    v = jnp.dot(h, vw_ref[0], preferred_element_type=f32) + vb_ref[0]

    if batched_heads:
        # Review item: all heads in two batched einsums, no per-head lane slices
        # or concat (the compiler owns the head relayout).
        q4 = q.astype(bf16).reshape(BT, S_pad, H, dh)
        k4 = k.astype(bf16).reshape(BT, S_pad, H, dh)
        v4 = v.astype(bf16).reshape(BT, S_pad, H, dh)
        s = jnp.einsum("bqhd,bkhd->bhqk", q4, k4, preferred_element_type=f32) * scale
        p = _softmax_over_keys(s, S_valid, exact_softmax)
        o = jnp.einsum("bhqk,bkhd->bqhd", p.astype(bf16), v4, preferred_element_type=f32)
        attn = o.reshape(Mt, D)
    else:
        # Fallback: per-head 3-D einsums (previously validated lowering path).
        outs = []
        for hd in range(H):
            lo, hi = hd * dh, (hd + 1) * dh
            qh = q[:, lo:hi].astype(bf16).reshape(BT, S_pad, dh)
            kh = k[:, lo:hi].astype(bf16).reshape(BT, S_pad, dh)
            vh = v[:, lo:hi].astype(bf16).reshape(BT, S_pad, dh)
            s = jnp.einsum("bqd,bkd->bqk", qh, kh, preferred_element_type=f32) * scale
            p = _softmax_over_keys(s, S_valid, exact_softmax)
            outs.append(jnp.einsum("bqk,bkd->bqd", p.astype(bf16), vh,
                                   preferred_element_type=f32))
        attn = jnp.concatenate(outs, axis=-1).reshape(Mt, D)

    attn = jnp.dot(attn.astype(bf16), outw_ref[0], preferred_element_type=f32) + outb_ref[0]
    x2 = x2 + attn

    # --- MLP with QuickGELU (elementwise epilogue kept in f32) ----------------
    hm = _layernorm(x2, ln2_g_ref[0], ln2_b_ref[0]).astype(bf16)
    h1 = jnp.dot(hm, fc1w_ref[0], preferred_element_type=f32) + fc1b_ref[0]
    h1 = h1 * jax.nn.sigmoid(1.702 * h1)
    h2 = jnp.dot(h1.astype(bf16), fc2w_ref[0], preferred_element_type=f32) + fc2b_ref[0]

    x_ref[...] = x2 + h2          # one dense residual store per layer


# ----------------------------------------------------------------------------
# parameter construction (PyTorch-like layout) and packing for the kernels
# ----------------------------------------------------------------------------
def init_params(key, *, img=32, patch=8, width=64, layers=2, heads=4,
                embed_dim=32, num_classes=8, in_ch=3):
    ks = jax.random.split(key, 8 + 16 * layers)
    it = iter(ks)

    def n(shape, s=0.02):
        return s * jax.random.normal(next(it), shape, jnp.float32)

    grid = img // patch
    S = grid * grid + 1
    p = {
        "conv_w": n((width, in_ch, patch, patch)),      # CLIP conv1 (bias=False)
        "class_emb": n((width,)),
        "pos_emb": n((S, width)),
        "ln_pre_g": jnp.ones((width,)), "ln_pre_b": jnp.zeros((width,)),
        "ln_post_g": jnp.ones((width,)), "ln_post_b": jnp.zeros((width,)),
        "proj": n((width, embed_dim)),
        "text_features": n((num_classes, embed_dim), 1.0),
        "logit_scale": jnp.exp(jnp.float32(jnp.log(1.0 / 0.07))),
        "blocks": [],
    }
    for _ in range(layers):
        p["blocks"].append({
            "ln1_g": jnp.ones((width,)), "ln1_b": jnp.zeros((width,)),
            "in_w": n((3 * width, width)), "in_b": jnp.zeros((3 * width,)),
            "out_w": n((width, width)), "out_b": jnp.zeros((width,)),
            "ln2_g": jnp.ones((width,)), "ln2_b": jnp.zeros((width,)),
            "fc1_w": n((4 * width, width)), "fc1_b": jnp.zeros((4 * width,)),
            "fc2_w": n((width, 4 * width)), "fc2_b": jnp.zeros((width,)),
        })
    cfg = dict(img=img, patch=patch, width=width, layers=layers, heads=heads,
               embed_dim=embed_dim, num_classes=num_classes, in_ch=in_ch,
               seq=S, seq_pad=_round_up(S, 8),
               embed_pad=_round_up(embed_dim, 128),
               classes_pad=_round_up(num_classes, 128),
               batch_tile=1)
    return p, cfg


def pack_params(p, cfg):
    D, L = cfg["width"], cfg["layers"]
    S, S_pad = cfg["seq"], cfg["seq_pad"]
    E, Epad = cfg["embed_dim"], cfg["embed_pad"]
    C, Cpad = cfg["num_classes"], cfg["classes_pad"]
    bf16 = jnp.bfloat16

    def stack(name):
        return jnp.stack([blk[name] for blk in p["blocks"]])

    def stack_t(name):
        return jnp.stack([blk[name].T for blk in p["blocks"]])

    # fold the class embedding into pos_emb row 0 (the [CLS] patch row is zero)
    pos_cls = p["pos_emb"].at[0].add(p["class_emb"])
    pos_cls = jnp.pad(pos_cls, ((0, S_pad - S), (0, 0)))

    in_w_t = stack_t("in_w")                      # (L, D, 3D), (K, N) layout
    in_b = stack("in_b")                          # (L, 3D)

    return {
        "conv_w": p["conv_w"].reshape(D, -1).T.astype(bf16),                 # (Cpp, D)
        "pos_cls": pos_cls,                                                  # (S_pad, D)
        "ln_pre_g": p["ln_pre_g"].reshape(1, D),
        "ln_pre_b": p["ln_pre_b"].reshape(1, D),
        "ln1_g": stack("ln1_g").reshape(L, 1, D),
        "ln1_b": stack("ln1_b").reshape(L, 1, D),
        # q/k/v split host-side so the q/k/v boundary is an operand boundary.
        "q_w": in_w_t[:, :, :D].astype(bf16),
        "k_w": in_w_t[:, :, D:2 * D].astype(bf16),
        "v_w": in_w_t[:, :, 2 * D:].astype(bf16),
        "q_b": in_b[:, :D].reshape(L, 1, D),
        "k_b": in_b[:, D:2 * D].reshape(L, 1, D),
        "v_b": in_b[:, 2 * D:].reshape(L, 1, D),
        "out_w": stack_t("out_w").astype(bf16),                              # (L, D, D)
        "out_b": stack("out_b").reshape(L, 1, D),
        "ln2_g": stack("ln2_g").reshape(L, 1, D),
        "ln2_b": stack("ln2_b").reshape(L, 1, D),
        "fc1_w": stack_t("fc1_w").astype(bf16),                              # (L, D, 4D)
        "fc1_b": stack("fc1_b").reshape(L, 1, 4 * D),
        "fc2_w": stack_t("fc2_w").astype(bf16),                              # (L, 4D, D)
        "fc2_b": stack("fc2_b").reshape(L, 1, D),
        "ln_post_g": p["ln_post_g"].reshape(1, D),
        "ln_post_b": p["ln_post_b"].reshape(1, D),
        "proj": jnp.pad(p["proj"], ((0, 0), (0, Epad - E))),                 # (D, Epad)
        # logit_scale folded into the zero-padded text matrix (review item).
        "text_t_scaled": jnp.pad(p["logit_scale"] * p["text_features"].T,
                                 ((0, Epad - E), (0, Cpad - C))),            # (Epad, Cpad)
    }


# ----------------------------------------------------------------------------
# forward pass wrapper (host glue: patch unfold + three pallas_calls + slicing)
# ----------------------------------------------------------------------------
def vit_forward(packed, cfg, image, *, batched_heads=True, exact_softmax=False):
    B = image.shape[0]
    pch, D, Cin = cfg["patch"], cfg["width"], cfg["in_ch"]
    g = cfg["img"] // pch
    P = g * g
    Cpp = Cin * pch * pch
    L, H = cfg["layers"], cfg["heads"]
    S, S_pad = cfg["seq"], cfg["seq_pad"]
    Epad, Cpad = cfg["embed_pad"], cfg["classes_pad"]
    BT = cfg.get("batch_tile", 1)
    assert B % BT == 0
    Mt = BT * S_pad
    M = B * S_pad
    dh = D // H

    # conv1 (stride = kernel = patch) as patch-unfold; row 0 of each image ([CLS])
    # and the padded rows are zero.
    patches = image.reshape(B, Cin, g, pch, g, pch).transpose(0, 2, 4, 1, 3, 5)
    patches = patches.reshape(B, P, Cpp)
    patches = jnp.pad(patches, ((0, 0), (1, S_pad - 1 - P), (0, 0)))
    patches = patches.reshape(M, Cpp).astype(jnp.bfloat16)
    pos = jnp.tile(packed["pos_cls"], (B, 1))                                # (M, D)

    vmem_limit = _vmem_limit_bytes()

    # --- 1) patch embed + [CLS]/pos-emb + ln_pre (one shot) -------------------
    x0 = pl.pallas_call(
        _embed_kernel,
        out_shape=jax.ShapeDtypeStruct((M, D), jnp.float32),
    )(patches, packed["conv_w"], pos, packed["ln_pre_g"], packed["ln_pre_b"])

    # --- 2) transformer layers: grid = (batch tiles, layers) ------------------
    perl = lambda bt, l: (l, 0, 0)
    x_spec = pl.BlockSpec((Mt, D), lambda bt, l: (bt, 0))
    in_specs = [
        x_spec,                                   # x0 (per batch tile)
        pl.BlockSpec((1, 1, D), perl),            # ln1 gamma
        pl.BlockSpec((1, 1, D), perl),            # ln1 beta
        pl.BlockSpec((1, D, D), perl),            # q weight
        pl.BlockSpec((1, 1, D), perl),            # q bias
        pl.BlockSpec((1, D, D), perl),            # k weight
        pl.BlockSpec((1, 1, D), perl),            # k bias
        pl.BlockSpec((1, D, D), perl),            # v weight
        pl.BlockSpec((1, 1, D), perl),            # v bias
        pl.BlockSpec((1, D, D), perl),            # out-proj weight
        pl.BlockSpec((1, 1, D), perl),            # out-proj bias
        pl.BlockSpec((1, 1, D), perl),            # ln2 gamma
        pl.BlockSpec((1, 1, D), perl),            # ln2 beta
        pl.BlockSpec((1, D, 4 * D), perl),        # fc1 weight
        pl.BlockSpec((1, 1, 4 * D), perl),        # fc1 bias
        pl.BlockSpec((1, 4 * D, D), perl),        # fc2 weight
        pl.BlockSpec((1, 1, D), perl),            # fc2 bias
    ]
    kern = functools.partial(
        _layers_kernel, BT=BT, S_pad=S_pad, S_valid=S, D=D, H=H,
        batched_heads=batched_heads, exact_softmax=exact_softmax)

    flops = L * B * (3 * 2 * S_pad * D * D + 4 * H * S_pad * S_pad * dh
                     + 2 * S_pad * D * D + 4 * S_pad * D * 4 * D)
    weight_bytes = sum(int(packed[k].size) * packed[k].dtype.itemsize
                       for k in ("q_w", "k_w", "v_w", "out_w", "fc1_w", "fc2_w"))
    x_final = pl.pallas_call(
        kern,
        out_shape=jax.ShapeDtypeStruct((M, D), jnp.float32),
        grid=(B // BT, L),
        in_specs=in_specs,
        out_specs=x_spec,
        compiler_params=pltpu.CompilerParams(
            dimension_semantics=("parallel", "arbitrary"),
            vmem_limit_bytes=vmem_limit),
        cost_estimate=pl.CostEstimate(
            flops=int(flops),
            transcendentals=int(L * B * (H * S_pad * S_pad + S_pad * 4 * D)),
            bytes_accessed=int(weight_bytes * (B // BT) + 2 * M * D * 4)),
    )(x0,
      packed["ln1_g"], packed["ln1_b"],
      packed["q_w"], packed["q_b"], packed["k_w"], packed["k_b"],
      packed["v_w"], packed["v_b"], packed["out_w"], packed["out_b"],
      packed["ln2_g"], packed["ln2_b"], packed["fc1_w"], packed["fc1_b"],
      packed["fc2_w"], packed["fc2_b"])

    # --- 3) ln_post([CLS]) @ proj -> normalize -> logits (one shot) -----------
    cls_tok = x_final.reshape(B, S_pad, D)[:, 0, :]
    logits_pad, feats_pad = pl.pallas_call(
        _head_kernel,
        out_shape=(jax.ShapeDtypeStruct((B, Cpad), jnp.float32),
                   jax.ShapeDtypeStruct((B, Epad), jnp.float32)),
    )(cls_tok, packed["ln_post_g"], packed["ln_post_b"],
      packed["proj"], packed["text_t_scaled"])

    return logits_pad[:, :cfg["num_classes"]], feats_pad[:, :cfg["embed_dim"]]


# ----------------------------------------------------------------------------
# pure-JAX reference (used to validate the kernel and to gate the batched path)
# ----------------------------------------------------------------------------
def reference_forward(p, cfg, image):
    D, H = cfg["width"], cfg["heads"]
    dh = D // H
    pch, Cin = cfg["patch"], cfg["in_ch"]
    g = cfg["img"] // pch
    B = image.shape[0]
    S = cfg["seq"]

    def bf(w):  # mimic the bf16 weight rounding used by the kernel
        return w.astype(jnp.bfloat16).astype(jnp.float32)

    def ln(x, gma, bta):
        mu = x.mean(-1, keepdims=True)
        var = ((x - mu) ** 2).mean(-1, keepdims=True)
        return (x - mu) / jnp.sqrt(var + 1e-5) * gma + bta

    patches = image.reshape(B, Cin, g, pch, g, pch).transpose(0, 2, 4, 1, 3, 5)
    patches = patches.reshape(B, g * g, -1)
    x = patches @ bf(p["conv_w"].reshape(D, -1)).T
    x = jnp.concatenate([jnp.broadcast_to(p["class_emb"], (B, 1, D)), x], axis=1)
    x = ln(x + p["pos_emb"][None], p["ln_pre_g"], p["ln_pre_b"])
    for blk in p["blocks"]:
        h = ln(x, blk["ln1_g"], blk["ln1_b"])
        qkv = h @ bf(blk["in_w"]).T + blk["in_b"]
        q, k, v = jnp.split(qkv, 3, axis=-1)
        q = q.reshape(B, S, H, dh).transpose(0, 2, 1, 3)
        k = k.reshape(B, S, H, dh).transpose(0, 2, 1, 3)
        v = v.reshape(B, S, H, dh).transpose(0, 2, 1, 3)
        a = jax.nn.softmax(q @ k.transpose(0, 1, 3, 2) / float(dh) ** 0.5, axis=-1)
        o = (a @ v).transpose(0, 2, 1, 3).reshape(B, S, D)
        x = x + o @ bf(blk["out_w"]).T + blk["out_b"]
        hm = ln(x, blk["ln2_g"], blk["ln2_b"])
        h1 = hm @ bf(blk["fc1_w"]).T + blk["fc1_b"]
        h1 = h1 * jax.nn.sigmoid(1.702 * h1)
        x = x + h1 @ bf(blk["fc2_w"]).T + blk["fc2_b"]
    c = ln(x[:, 0], p["ln_post_g"], p["ln_post_b"]) @ p["proj"]
    f = c / jnp.maximum(jnp.linalg.norm(c, axis=-1, keepdims=True), 1e-12)
    return p["logit_scale"] * (f @ p["text_features"].T), f


# ----------------------------------------------------------------------------
if __name__ == "__main__":
    key = jax.random.PRNGKey(0)
    pkey, xkey = jax.random.split(key)
    params, cfg = init_params(pkey)                      # img 32, patch 8, width 64, 2 layers
    packed = pack_params(params, cfg)
    image = jax.random.normal(
        xkey, (2, cfg["in_ch"], cfg["img"], cfg["img"]), jnp.float32)  # NCHW like PyTorch

    fwd_batched = jax.jit(lambda img: vit_forward(packed, cfg, img, batched_heads=True))
    fwd_looped = jax.jit(lambda img: vit_forward(packed, cfg, img, batched_heads=False))

    ref_logits, ref_feats = reference_forward(params, cfg, image)

    # Prefer the batched-heads formulation (review item); fall back to the
    # previously validated per-head einsum path if it fails to lower or mismatches
    # the pure-JAX reference on this backend.
    out = None
    try:
        cand = fwd_batched(image)
        jax.block_until_ready(cand)
        feats_ok = float(jnp.max(jnp.abs(cand[1] - ref_feats))) < 0.05
        logits_ok = float(jnp.max(jnp.abs(cand[0] - ref_logits))) < 1.5
        if feats_ok and logits_ok:
            out = cand
    except Exception:
        out = None
    if out is None:
        # TODO(synk): multi-batch-dim dot_general did not lower/validate here; using
        # the per-head einsum fallback.
        out = fwd_looped(image)
        jax.block_until_ready(out)

    logits, feats = out
    assert logits.shape == (2, cfg["num_classes"])
    assert feats.shape == (2, cfg["embed_dim"])
    assert bool(jnp.all(jnp.isfinite(logits))) and bool(jnp.all(jnp.isfinite(feats)))
    # normalized features must have unit L2 norm
    norms = jnp.linalg.norm(feats, axis=-1)
    assert bool(jnp.allclose(norms, 1.0, atol=1e-5))
    # agreement with the pure-JAX reference (bf16-rounded weights)
    assert float(jnp.max(jnp.abs(feats - ref_feats))) < 0.1
    print("KERNEL_OK")
</pallas_src>

<mosaic_0001>
module attributes {stable_mosaic.version = 11 : i64} {
  func.func @_embed_kernel(%arg0: memref<48x192xbf16, #tpu.memory_space<vmem>>, %arg1: memref<192x64xbf16, #tpu.memory_space<vmem>>, %arg2: memref<48x64xf32, #tpu.memory_space<vmem>>, %arg3: memref<1x64xf32, #tpu.memory_space<vmem>>, %arg4: memref<1x64xf32, #tpu.memory_space<vmem>>, %arg5: memref<48x64xf32, #tpu.memory_space<vmem>>) attributes {dimension_semantics = [], scalar_prefetch = 0 : i64, scratch_operands = 0 : i64, tpu.core_type = #tpu.core_type<tc>} {
    %c0 = arith.constant 0 : index
    %c0_0 = arith.constant 0 : index
    %0 = vector.load %arg0[%c0, %c0_0] : memref<48x192xbf16, #tpu.memory_space<vmem>>, vector<48x192xbf16>
    %c0_1 = arith.constant 0 : index
    %c0_2 = arith.constant 0 : index
    %1 = vector.load %arg1[%c0_1, %c0_2] : memref<192x64xbf16, #tpu.memory_space<vmem>>, vector<192x64xbf16>
    %cst = arith.constant dense<0.000000e+00> : vector<48x64xf32>
    %2 = tpu.matmul %0, %1, %cst {dimension_numbers = #tpu.dot_dimension_numbers<[1], [0], [0], [1], [0, 0, 1, 1], [], []>} : vector<48x192xbf16>, vector<192x64xbf16>, vector<48x64xf32> -> vector<48x64xf32>
    %c0_3 = arith.constant 0 : index
    %c0_4 = arith.constant 0 : index
    %3 = vector.load %arg2[%c0_3, %c0_4] : memref<48x64xf32, #tpu.memory_space<vmem>>, vector<48x64xf32>
    %4 = arith.addf %2, %3 : vector<48x64xf32>
    %c0_5 = arith.constant 0 : index
    %c0_6 = arith.constant 0 : index
    %5 = vector.load %arg3[%c0_5, %c0_6] : memref<1x64xf32, #tpu.memory_space<vmem>>, vector<1x64xf32>
    %c0_7 = arith.constant 0 : index
    %c0_8 = arith.constant 0 : index
    %6 = vector.load %arg4[%c0_7, %c0_8] : memref<1x64xf32, #tpu.memory_space<vmem>>, vector<1x64xf32>
    %cst_9 = arith.constant dense<0.000000e+00> : vector<48xf32>
    %7 = vector.multi_reduction <add>, %4, %cst_9 [1] : vector<48x64xf32> to vector<48xf32>
    %8 = vector.shape_cast %7 : vector<48xf32> to vector<48x1xf32>
    %cst_10 = arith.constant 6.400000e+01 : f32
    %9 = vector.broadcast %cst_10 : f32 to vector<48x1xf32>
    %10 = arith.divf %8, %9 : vector<48x1xf32>
    %11 = arith.mulf %4, %4 : vector<48x64xf32>
    %cst_11 = arith.constant dense<0.000000e+00> : vector<48xf32>
    %12 = vector.multi_reduction <add>, %11, %cst_11 [1] : vector<48x64xf32> to vector<48xf32>
    %13 = vector.shape_cast %12 : vector<48xf32> to vector<48x1xf32>
    %cst_12 = arith.constant 6.400000e+01 : f32
    %14 = vector.broadcast %cst_12 : f32 to vector<48x1xf32>
    %15 = arith.divf %13, %14 : vector<48x1xf32>
    %16 = arith.mulf %10, %10 : vector<48x1xf32>
    %17 = arith.subf %15, %16 : vector<48x1xf32>
    %cst_13 = arith.constant 0.000000e+00 : f32
    %18 = vector.broadcast %cst_13 : f32 to vector<48x1xf32>
    %19 = arith.maximumf %17, %18 : vector<48x1xf32>
    %20 = vector.broadcast %10 : vector<48x1xf32> to vector<48x64xf32>
    %21 = arith.subf %4, %20 : vector<48x64xf32>
    %cst_14 = arith.constant 9.99999974E-6 : f32
    %22 = vector.broadcast %cst_14 : f32 to vector<48x1xf32>
    %23 = arith.addf %19, %22 : vector<48x1xf32>
    %24 = math.rsqrt %23 : vector<48x1xf32>
    %25 = vector.broadcast %24 : vector<48x1xf32> to vector<48x64xf32>
    %26 = arith.mulf %21, %25 : vector<48x64xf32>
    %27 = vector.broadcast %5 : vector<1x64xf32> to vector<48x64xf32>
    %28 = arith.mulf %26, %27 : vector<48x64xf32>
    %29 = vector.broadcast %6 : vector<1x64xf32> to vector<48x64xf32>
    %30 = arith.addf %28, %29 : vector<48x64xf32>
    %c0_15 = arith.constant 0 : index
    %c0_16 = arith.constant 0 : index
    %31 = vector.load %arg5[%c0_15, %c0_16] : memref<48x64xf32, #tpu.memory_space<vmem>>, vector<48x64xf32>
    tpu.vector_store %arg5[%c0_15, %c0_16], %30 {strides = array<i32>} : memref<48x64xf32, #tpu.memory_space<vmem>>, vector<48x64xf32>,
    return
  }
}

module attributes {stable_mosaic.version = 11 : i64} {
  func.func @_head_kernel(%arg0: memref<2x64xf32, #tpu.memory_space<vmem>>, %arg1: memref<1x64xf32, #tpu.memory_space<vmem>>, %arg2: memref<1x64xf32, #tpu.memory_space<vmem>>, %arg3: memref<64x128xf32, #tpu.memory_space<vmem>>, %arg4: memref<128x128xf32, #tpu.memory_space<vmem>>, %arg5: memref<2x128xf32, #tpu.memory_space<vmem>>, %arg6: memref<2x128xf32, #tpu.memory_space<vmem>>) attributes {dimension_semantics = [], scalar_prefetch = 0 : i64, scratch_operands = 0 : i64, tpu.core_type = #tpu.core_type<tc>} {
    %c0 = arith.constant 0 : index
    %c0_0 = arith.constant 0 : index
    %0 = vector.load %arg0[%c0, %c0_0] : memref<2x64xf32, #tpu.memory_space<vmem>>, vector<2x64xf32>
    %c0_1 = arith.constant 0 : index
    %c0_2 = arith.constant 0 : index
    %1 = vector.load %arg1[%c0_1, %c0_2] : memref<1x64xf32, #tpu.memory_space<vmem>>, vector<1x64xf32>
    %c0_3 = arith.constant 0 : index
    %c0_4 = arith.constant 0 : index
    %2 = vector.load %arg2[%c0_3, %c0_4] : memref<1x64xf32, #tpu.memory_space<vmem>>, vector<1x64xf32>
    %cst = arith.constant dense<0.000000e+00> : vector<2xf32>
    %3 = vector.multi_reduction <add>, %0, %cst [1] : vector<2x64xf32> to vector<2xf32>
    %4 = vector.shape_cast %3 : vector<2xf32> to vector<2x1xf32>
    %cst_5 = arith.constant 6.400000e+01 : f32
    %5 = vector.broadcast %cst_5 : f32 to vector<2x1xf32>
    %6 = arith.divf %4, %5 : vector<2x1xf32>
    %7 = arith.mulf %0, %0 : vector<2x64xf32>
    %cst_6 = arith.constant dense<0.000000e+00> : vector<2xf32>
    %8 = vector.multi_reduction <add>, %7, %cst_6 [1] : vector<2x64xf32> to vector<2xf32>
    %9 = vector.shape_cast %8 : vector<2xf32> to vector<2x1xf32>
    %cst_7 = arith.constant 6.400000e+01 : f32
    %10 = vector.broadcast %cst_7 : f32 to vector<2x1xf32>
    %11 = arith.divf %9, %10 : vector<2x1xf32>
    %12 = arith.mulf %6, %6 : vector<2x1xf32>
    %13 = arith.subf %11, %12 : vector<2x1xf32>
    %cst_8 = arith.constant 0.000000e+00 : f32
    %14 = vector.broadcast %cst_8 : f32 to vector<2x1xf32>
    %15 = arith.maximumf %13, %14 : vector<2x1xf32>
    %16 = vector.broadcast %6 : vector<2x1xf32> to vector<2x64xf32>
    %17 = arith.subf %0, %16 : vector<2x64xf32>
    %cst_9 = arith.constant 9.99999974E-6 : f32
    %18 = vector.broadcast %cst_9 : f32 to vector<2x1xf32>
    %19 = arith.addf %15, %18 : vector<2x1xf32>
    %20 = math.rsqrt %19 : vector<2x1xf32>
    %21 = vector.broadcast %20 : vector<2x1xf32> to vector<2x64xf32>
    %22 = arith.mulf %17, %21 : vector<2x64xf32>
    %23 = vector.broadcast %1 : vector<1x64xf32> to vector<2x64xf32>
    %24 = arith.mulf %22, %23 : vector<2x64xf32>
    %25 = vector.broadcast %2 : vector<1x64xf32> to vector<2x64xf32>
    %26 = arith.addf %24, %25 : vector<2x64xf32>
    %c0_10 = arith.constant 0 : index
    %c0_11 = arith.constant 0 : index
    %27 = vector.load %arg3[%c0_10, %c0_11] : memref<64x128xf32, #tpu.memory_space<vmem>>, vector<64x128xf32>
    %cst_12 = arith.constant dense<0.000000e+00> : vector<2x128xf32>
    %28 = tpu.matmul %26, %27, %cst_12 {dimension_numbers = #tpu.dot_dimension_numbers<[1], [0], [0], [1], [0, 0, 1, 1], [], []>} : vector<2x64xf32>, vector<64x128xf32>, vector<2x128xf32> -> vector<2x128xf32>
    %29 = arith.mulf %28, %28 : vector<2x128xf32>
    %cst_13 = arith.constant dense<0.000000e+00> : vector<2xf32>
    %30 = vector.multi_reduction <add>, %29, %cst_13 [1] : vector<2x128xf32> to vector<2xf32>
    %31 = vector.shape_cast %30 : vector<2xf32> to vector<2x1xf32>
    %cst_14 = arith.constant 1.000000e-24 : f32
    %32 = vector.broadcast %cst_14 : f32 to vector<2x1xf32>
    %33 = arith.maximumf %31, %32 : vector<2x1xf32>
    %34 = math.rsqrt %33 : vector<2x1xf32>
    %35 = vector.broadcast %34 : vector<2x1xf32> to vector<2x128xf32>
    %36 = arith.mulf %28, %35 : vector<2x128xf32>
    %c0_15 = arith.constant 0 : index
    %c0_16 = arith.constant 0 : index
    %37 = vector.load %arg6[%c0_15, %c0_16] : memref<2x128xf32, #tpu.memory_space<vmem>>, vector<2x128xf32>
    tpu.vector_store %arg6[%c0_15, %c0_16], %36 {strides = array<i32>} : memref<2x128xf32, #tpu.memory_space<vmem>>, vector<2x128xf32>,
    %c0_17 = arith.constant 0 : index
    %c0_18 = arith.constant 0 : index
    %38 = vector.load %arg4[%c0_17, %c0_18] : memref<128x128xf32, #tpu.memory_space<vmem>>, vector<128x128xf32>
    %cst_19 = arith.constant dense<0.000000e+00> : vector<2x128xf32>
    %39 = tpu.matmul %36, %38, %cst_19 {dimension_numbers = #tpu.dot_dimension_numbers<[1], [0], [0], [1], [0, 0, 1, 1], [], []>} : vector<2x128xf32>, vector<128x128xf32>, vector<2x128xf32> -> vector<2x128xf32>
    %c0_20 = arith.constant 0 : index
    %c0_21 = arith.constant 0 : index
    %40 = vector.load %arg5[%c0_20, %c0_21] : memref<2x128xf32, #tpu.memory_space<vmem>>, vector<2x128xf32>
    tpu.vector_store %arg5[%c0_20, %c0_21], %39 {strides = array<i32>} : memref<2x128xf32, #tpu.memory_space<vmem>>, vector<2x128xf32>,
    return
  }
}

module attributes {stable_mosaic.version = 11 : i64} {
  func.func @_layers_kernel(%arg0: i32, %arg1: i32, %arg2: memref<24x64xf32, #tpu.memory_space<vmem>>, %arg3: memref<1x1x64xf32, #tpu.memory_space<vmem>>, %arg4: memref<1x1x64xf32, #tpu.memory_space<vmem>>, %arg5: memref<1x64x64xbf16, #tpu.memory_space<vmem>>, %arg6: memref<1x1x64xf32, #tpu.memory_space<vmem>>, %arg7: memref<1x64x64xbf16, #tpu.memory_space<vmem>>, %arg8: memref<1x1x64xf32, #tpu.memory_space<vmem>>, %arg9: memref<1x64x64xbf16, #tpu.memory_space<vmem>>, %arg10: memref<1x1x64xf32, #tpu.memory_space<vmem>>, %arg11: memref<1x64x64xbf16, #tpu.memory_space<vmem>>, %arg12: memref<1x1x64xf32, #tpu.memory_space<vmem>>, %arg13: memref<1x1x64xf32, #tpu.memory_space<vmem>>, %arg14: memref<1x1x64xf32, #tpu.memory_space<vmem>>, %arg15: memref<1x64x256xbf16, #tpu.memory_space<vmem>>, %arg16: memref<1x1x256xf32, #tpu.memory_space<vmem>>, %arg17: memref<1x256x64xbf16, #tpu.memory_space<vmem>>, %arg18: memref<1x1x64xf32, #tpu.memory_space<vmem>>, %arg19: memref<24x64xf32, #tpu.memory_space<vmem>>) attributes {dimension_semantics = [#tpu.dimension_semantics<parallel>, #tpu.dimension_semantics<arbitrary>], iteration_bounds = array<i64: 2, 2>, scalar_prefetch = 0 : i64, scratch_operands = 0 : i64, tpu.core_type = #tpu.core_type<tc>, window_params = [{transform_indices = @transform_0, window_bounds = array<i64: 24, 64>}, {transform_indices = @transform_1, window_bounds = array<i64: 1, 1, 64>}, {transform_indices = @transform_2, window_bounds = array<i64: 1, 1, 64>}, {transform_indices = @transform_3, window_bounds = array<i64: 1, 64, 64>}, {transform_indices = @transform_4, window_bounds = array<i64: 1, 1, 64>}, {transform_indices = @transform_5, window_bounds = array<i64: 1, 64, 64>}, {transform_indices = @transform_6, window_bounds = array<i64: 1, 1, 64>}, {transform_indices = @transform_7, window_bounds = array<i64: 1, 64, 64>}, {transform_indices = @transform_8, window_bounds = array<i64: 1, 1, 64>}, {transform_indices = @transform_9, window_bounds = array<i64: 1, 64, 64>}, {transform_indices = @transform_10, window_bounds = array<i64: 1, 1, 64>}, {transform_indices = @transform_11, window_bounds = array<i64: 1, 1, 64>}, {transform_indices = @transform_12, window_bounds = array<i64: 1, 1, 64>}, {transform_indices = @transform_13, window_bounds = array<i64: 1, 64, 256>}, {transform_indices = @transform_14, window_bounds = array<i64: 1, 1, 256>}, {transform_indices = @transform_15, window_bounds = array<i64: 1, 256, 64>}, {transform_indices = @transform_16, window_bounds = array<i64: 1, 1, 64>}, {transform_indices = @transform_17, window_bounds = array<i64: 24, 64>}]} {
    %c0_i32 = arith.constant 0 : i32
    %0 = arith.cmpi eq, %arg1, %c0_i32 : i32
    %1 = arith.extui %0 : i1 to i32
    %c0_i32_0 = arith.constant 0 : i32
    %2 = arith.cmpi ne, %1, %c0_i32_0 : i32
    scf.if %2 {
      %c0_98 = arith.constant 0 : index
      %c0_99 = arith.constant 0 : index
      %243 = vector.load %arg2[%c0_98, %c0_99] : memref<24x64xf32, #tpu.memory_space<vmem>>, vector<24x64xf32>
      %c0_100 = arith.constant 0 : index
      %c0_101 = arith.constant 0 : index
      %244 = vector.load %arg19[%c0_100, %c0_101] : memref<24x64xf32, #tpu.memory_space<vmem>>, vector<24x64xf32>
      tpu.vector_store %arg19[%c0_100, %c0_101], %243 {strides = array<i32>} : memref<24x64xf32, #tpu.memory_space<vmem>>, vector<24x64xf32>,
    } else {
    }
    %c0 = arith.constant 0 : index
    %c0_1 = arith.constant 0 : index
    %3 = vector.load %arg19[%c0, %c0_1] : memref<24x64xf32, #tpu.memory_space<vmem>>, vector<24x64xf32>
    %c0_2 = arith.constant 0 : index
    %c0_3 = arith.constant 0 : index
    %c0_4 = arith.constant 0 : index
    %4 = vector.load %arg3[%c0_2, %c0_3, %c0_4] : memref<1x1x64xf32, #tpu.memory_space<vmem>>, vector<1x1x64xf32>
    %5 = vector.shape_cast %4 : vector<1x1x64xf32> to vector<1x64xf32>
    %c0_5 = arith.constant 0 : index
    %c0_6 = arith.constant 0 : index
    %c0_7 = arith.constant 0 : index
    %6 = vector.load %arg4[%c0_5, %c0_6, %c0_7] : memref<1x1x64xf32, #tpu.memory_space<vmem>>, vector<1x1x64xf32>
    %7 = vector.shape_cast %6 : vector<1x1x64xf32> to vector<1x64xf32>
    %cst = arith.constant dense<0.000000e+00> : vector<24xf32>
    %8 = vector.multi_reduction <add>, %3, %cst [1] : vector<24x64xf32> to vector<24xf32>
    %9 = vector.shape_cast %8 : vector<24xf32> to vector<24x1xf32>
    %cst_8 = arith.constant 6.400000e+01 : f32
    %10 = vector.broadcast %cst_8 : f32 to vector<24x1xf32>
    %11 = arith.divf %9, %10 : vector<24x1xf32>
    %12 = arith.mulf %3, %3 : vector<24x64xf32>
    %cst_9 = arith.constant dense<0.000000e+00> : vector<24xf32>
    %13 = vector.multi_reduction <add>, %12, %cst_9 [1] : vector<24x64xf32> to vector<24xf32>
    %14 = vector.shape_cast %13 : vector<24xf32> to vector<24x1xf32>
    %cst_10 = arith.constant 6.400000e+01 : f32
    %15 = vector.broadcast %cst_10 : f32 to vector<24x1xf32>
    %16 = arith.divf %14, %15 : vector<24x1xf32>
    %17 = arith.mulf %11, %11 : vector<24x1xf32>
    %18 = arith.subf %16, %17 : vector<24x1xf32>
    %cst_11 = arith.constant 0.000000e+00 : f32
    %19 = vector.broadcast %cst_11 : f32 to vector<24x1xf32>
    %20 = arith.maximumf %18, %19 : vector<24x1xf32>
    %21 = vector.broadcast %11 : vector<24x1xf32> to vector<24x64xf32>
    %22 = arith.subf %3, %21 : vector<24x64xf32>
    %cst_12 = arith.constant 9.99999974E-6 : f32
    %23 = vector.broadcast %cst_12 : f32 to vector<24x1xf32>
    %24 = arith.addf %20, %23 : vector<24x1xf32>
    %25 = math.rsqrt %24 : vector<24x1xf32>
    %26 = vector.broadcast %25 : vector<24x1xf32> to vector<24x64xf32>
    %27 = arith.mulf %22, %26 : vector<24x64xf32>
    %28 = vector.broadcast %5 : vector<1x64xf32> to vector<24x64xf32>
    %29 = arith.mulf %27, %28 : vector<24x64xf32>
    %30 = vector.broadcast %7 : vector<1x64xf32> to vector<24x64xf32>
    %31 = arith.addf %29, %30 : vector<24x64xf32>
    %32 = arith.truncf %31 : vector<24x64xf32> to vector<24x64xbf16>
    %c0_13 = arith.constant 0 : index
    %c0_14 = arith.constant 0 : index
    %c0_15 = arith.constant 0 : index
    %33 = vector.load %arg5[%c0_13, %c0_14, %c0_15] : memref<1x64x64xbf16, #tpu.memory_space<vmem>>, vector<1x64x64xbf16>
    %34 = vector.shape_cast %33 : vector<1x64x64xbf16> to vector<64x64xbf16>
    %cst_16 = arith.constant dense<0.000000e+00> : vector<24x64xf32>
    %35 = tpu.matmul %32, %34, %cst_16 {dimension_numbers = #tpu.dot_dimension_numbers<[1], [0], [0], [1], [0, 0, 1, 1], [], []>} : vector<24x64xbf16>, vector<64x64xbf16>, vector<24x64xf32> -> vector<24x64xf32>
    %c0_17 = arith.constant 0 : index
    %c0_18 = arith.constant 0 : index
    %c0_19 = arith.constant 0 : index
    %36 = vector.load %arg6[%c0_17, %c0_18, %c0_19] : memref<1x1x64xf32, #tpu.memory_space<vmem>>, vector<1x1x64xf32>
    %37 = vector.shape_cast %36 : vector<1x1x64xf32> to vector<1x64xf32>
    %38 = vector.broadcast %37 : vector<1x64xf32> to vector<24x64xf32>
    %39 = arith.addf %35, %38 : vector<24x64xf32>
    %c0_20 = arith.constant 0 : index
    %c0_21 = arith.constant 0 : index
    %c0_22 = arith.constant 0 : index
    %40 = vector.load %arg7[%c0_20, %c0_21, %c0_22] : memref<1x64x64xbf16, #tpu.memory_space<vmem>>, vector<1x64x64xbf16>
    %41 = vector.shape_cast %40 : vector<1x64x64xbf16> to vector<64x64xbf16>
    %cst_23 = arith.constant dense<0.000000e+00> : vector<24x64xf32>
    %42 = tpu.matmul %32, %41, %cst_23 {dimension_numbers = #tpu.dot_dimension_numbers<[1], [0], [0], [1], [0, 0, 1, 1], [], []>} : vector<24x64xbf16>, vector<64x64xbf16>, vector<24x64xf32> -> vector<24x64xf32>
    %c0_24 = arith.constant 0 : index
    %c0_25 = arith.constant 0 : index
    %c0_26 = arith.constant 0 : index
    %43 = vector.load %arg8[%c0_24, %c0_25, %c0_26] : memref<1x1x64xf32, #tpu.memory_space<vmem>>, vector<1x1x64xf32>
    %44 = vector.shape_cast %43 : vector<1x1x64xf32> to vector<1x64xf32>
    %45 = vector.broadcast %44 : vector<1x64xf32> to vector<24x64xf32>
    %46 = arith.addf %42, %45 : vector<24x64xf32>
    %c0_27 = arith.constant 0 : index
    %c0_28 = arith.constant 0 : index
    %c0_29 = arith.constant 0 : index
    %47 = vector.load %arg9[%c0_27, %c0_28, %c0_29] : memref<1x64x64xbf16, #tpu.memory_space<vmem>>, vector<1x64x64xbf16>
    %48 = vector.shape_cast %47 : vector<1x64x64xbf16> to vector<64x64xbf16>
    %cst_30 = arith.constant dense<0.000000e+00> : vector<24x64xf32>
    %49 = tpu.matmul %32, %48, %cst_30 {dimension_numbers = #tpu.dot_dimension_numbers<[1], [0], [0], [1], [0, 0, 1, 1], [], []>} : vector<24x64xbf16>, vector<64x64xbf16>, vector<24x64xf32> -> vector<24x64xf32>
    %c0_31 = arith.constant 0 : index
    %c0_32 = arith.constant 0 : index
    %c0_33 = arith.constant 0 : index
    %50 = vector.load %arg10[%c0_31, %c0_32, %c0_33] : memref<1x1x64xf32, #tpu.memory_space<vmem>>, vector<1x1x64xf32>
    %51 = vector.shape_cast %50 : vector<1x1x64xf32> to vector<1x64xf32>
    %52 = vector.broadcast %51 : vector<1x64xf32> to vector<24x64xf32>
    %53 = arith.addf %49, %52 : vector<24x64xf32>
    %54 = vector.extract_strided_slice %39 {offsets = [0, 0], sizes = [24, 16], strides = [1, 1]} : vector<24x64xf32> to vector<24x16xf32>
    %55 = arith.truncf %54 : vector<24x16xf32> to vector<24x16xbf16>
    %56 = vector.shape_cast %55 : vector<24x16xbf16> to vector<1x24x16xbf16>
    %57 = vector.extract_strided_slice %46 {offsets = [0, 0], sizes = [24, 16], strides = [1, 1]} : vector<24x64xf32> to vector<24x16xf32>
    %58 = arith.truncf %57 : vector<24x16xf32> to vector<24x16xbf16>
    %59 = vector.shape_cast %58 : vector<24x16xbf16> to vector<1x24x16xbf16>
    %60 = vector.extract_strided_slice %53 {offsets = [0, 0], sizes = [24, 16], strides = [1, 1]} : vector<24x64xf32> to vector<24x16xf32>
    %61 = arith.truncf %60 : vector<24x16xf32> to vector<24x16xbf16>
    %62 = vector.shape_cast %61 : vector<24x16xbf16> to vector<1x24x16xbf16>
    "tpu.trace_start"() <{level = 10 : i32, message = "bqd,bkd->bqk"}> : () -> ()
    %cst_34 = arith.constant dense<0.000000e+00> : vector<1x24x24xf32>
    %63 = tpu.matmul %56, %59, %cst_34 {dimension_numbers = #tpu.dot_dimension_numbers<[2], [2], [1], [1], [0, 0, 0, 1, 1, 1], [0], [0]>} : vector<1x24x16xbf16>, vector<1x24x16xbf16>, vector<1x24x24xf32> -> vector<1x24x24xf32>
    "tpu.trace_stop"() : () -> ()
    %cst_35 = arith.constant 2.500000e-01 : f32
    %64 = vector.broadcast %cst_35 : f32 to vector<1x24x24xf32>
    %65 = arith.mulf %63, %64 : vector<1x24x24xf32>
    %66 = tpu.iota {dimensions = array<i32: 2>} : vector<1x1x24xi32>
    %c17_i32 = arith.constant 17 : i32
    %67 = vector.broadcast %c17_i32 : i32 to vector<1x1x24xi32>
    %68 = arith.cmpi slt, %66, %67 : vector<1x1x24xi32>
    %cst_36 = arith.constant -1.000000e+30 : f32
    %69 = vector.shape_cast %68 : vector<1x1x24xi1> to vector<1x1x24xi1>
    %70 = vector.broadcast %69 : vector<1x1x24xi1> to vector<1x24x24xi1>
    %71 = vector.broadcast %cst_36 : f32 to vector<1x24x24xf32>
    %72 = arith.select %70, %65, %71 : vector<1x24x24xi1>, vector<1x24x24xf32>
    %cst_37 = arith.constant dense<0xFF800000> : vector<1x24xf32>
    %73 = vector.multi_reduction <maximumf>, %72, %cst_37 [2] : vector<1x24x24xf32> to vector<1x24xf32>
    %74 = vector.shape_cast %73 : vector<1x24xf32> to vector<1x24x1xf32>
    %75 = vector.broadcast %74 : vector<1x24x1xf32> to vector<1x24x24xf32>
    %76 = arith.subf %72, %75 : vector<1x24x24xf32>
    %77 = math.exp %76 : vector<1x24x24xf32>
    %cst_38 = arith.constant dense<0.000000e+00> : vector<1x24xf32>
    %78 = vector.multi_reduction <add>, %77, %cst_38 [2] : vector<1x24x24xf32> to vector<1x24xf32>
    %79 = vector.shape_cast %78 : vector<1x24xf32> to vector<1x24x1xf32>
    %80 = tpu.reciprocal %79 {approx = true} : vector<1x24x1xf32> -> vector<1x24x1xf32>
    %81 = vector.broadcast %80 : vector<1x24x1xf32> to vector<1x24x24xf32>
    %82 = arith.mulf %77, %81 : vector<1x24x24xf32>
    %83 = arith.truncf %82 : vector<1x24x24xf32> to vector<1x24x24xbf16>
    "tpu.trace_start"() <{level = 10 : i32, message = "bqk,bkd->bqd"}> : () -> ()
    %cst_39 = arith.constant dense<0.000000e+00> : vector<1x24x16xf32>
    %84 = tpu.matmul %83, %62, %cst_39 {dimension_numbers = #tpu.dot_dimension_numbers<[2], [1], [1], [2], [0, 0, 0, 1, 1, 2], [0], [0]>} : vector<1x24x24xbf16>, vector<1x24x16xbf16>, vector<1x24x16xf32> -> vector<1x24x16xf32>
    "tpu.trace_stop"() : () -> ()
    %85 = vector.extract_strided_slice %39 {offsets = [0, 16], sizes = [24, 16], strides = [1, 1]} : vector<24x64xf32> to vector<24x16xf32>
    %86 = arith.truncf %85 : vector<24x16xf32> to vector<24x16xbf16>
    %87 = vector.shape_cast %86 : vector<24x16xbf16> to vector<1x24x16xbf16>
    %88 = vector.extract_strided_slice %46 {offsets = [0, 16], sizes = [24, 16], strides = [1, 1]} : vector<24x64xf32> to vector<24x16xf32>
    %89 = arith.truncf %88 : vector<24x16xf32> to vector<24x16xbf16>
    %90 = vector.shape_cast %89 : vector<24x16xbf16> to vector<1x24x16xbf16>
    %91 = vector.extract_strided_slice %53 {offsets = [0, 16], sizes = [24, 16], strides = [1, 1]} : vector<24x64xf32> to vector<24x16xf32>
    %92 = arith.truncf %91 : vector<24x16xf32> to vector<24x16xbf16>
    %93 = vector.shape_cast %92 : vector<24x16xbf16> to vector<1x24x16xbf16>
    "tpu.trace_start"() <{level = 10 : i32, message = "bqd,bkd->bqk"}> : () -> ()
    %cst_40 = arith.constant dense<0.000000e+00> : vector<1x24x24xf32>
    %94 = tpu.matmul %87, %90, %cst_40 {dimension_numbers = #tpu.dot_dimension_numbers<[2], [2], [1], [1], [0, 0, 0, 1, 1, 1], [0], [0]>} : vector<1x24x16xbf16>, vector<1x24x16xbf16>, vector<1x24x24xf32> -> vector<1x24x24xf32>
    "tpu.trace_stop"() : () -> ()
    %cst_41 = arith.constant 2.500000e-01 : f32
    %95 = vector.broadcast %cst_41 : f32 to vector<1x24x24xf32>
    %96 = arith.mulf %94, %95 : vector<1x24x24xf32>
    %97 = tpu.iota {dimensions = array<i32: 2>} : vector<1x1x24xi32>
    %c17_i32_42 = arith.constant 17 : i32
    %98 = vector.broadcast %c17_i32_42 : i32 to vector<1x1x24xi32>
    %99 = arith.cmpi slt, %97, %98 : vector<1x1x24xi32>
    %cst_43 = arith.constant -1.000000e+30 : f32
    %100 = vector.shape_cast %99 : vector<1x1x24xi1> to vector<1x1x24xi1>
    %101 = vector.broadcast %100 : vector<1x1x24xi1> to vector<1x24x24xi1>
    %102 = vector.broadcast %cst_43 : f32 to vector<1x24x24xf32>
    %103 = arith.select %101, %96, %102 : vector<1x24x24xi1>, vector<1x24x24xf32>
    %cst_44 = arith.constant dense<0xFF800000> : vector<1x24xf32>
    %104 = vector.multi_reduction <maximumf>, %103, %cst_44 [2] : vector<1x24x24xf32> to vector<1x24xf32>
    %105 = vector.shape_cast %104 : vector<1x24xf32> to vector<1x24x1xf32>
    %106 = vector.broadcast %105 : vector<1x24x1xf32> to vector<1x24x24xf32>
    %107 = arith.subf %103, %106 : vector<1x24x24xf32>
    %108 = math.exp %107 : vector<1x24x24xf32>
    %cst_45 = arith.constant dense<0.000000e+00> : vector<1x24xf32>
    %109 = vector.multi_reduction <add>, %108, %cst_45 [2] : vector<1x24x24xf32> to vector<1x24xf32>
    %110 = vector.shape_cast %109 : vector<1x24xf32> to vector<1x24x1xf32>
    %111 = tpu.reciprocal %110 {approx = true} : vector<1x24x1xf32> -> vector<1x24x1xf32>
    %112 = vector.broadcast %111 : vector<1x24x1xf32> to vector<1x24x24xf32>
    %113 = arith.mulf %108, %112 : vector<1x24x24xf32>
    %114 = arith.truncf %113 : vector<1x24x24xf32> to vector<1x24x24xbf16>
    "tpu.trace_start"() <{level = 10 : i32, message = "bqk,bkd->bqd"}> : () -> ()
    %cst_46 = arith.constant dense<0.000000e+00> : vector<1x24x16xf32>
    %115 = tpu.matmul %114, %93, %cst_46 {dimension_numbers = #tpu.dot_dimension_numbers<[2], [1], [1], [2], [0, 0, 0, 1, 1, 2], [0], [0]>} : vector<1x24x24xbf16>, vector<1x24x16xbf16>, vector<1x24x16xf32> -> vector<1x24x16xf32>
    "tpu.trace_stop"() : () -> ()
    %116 = vector.extract_strided_slice %39 {offsets = [0, 32], sizes = [24, 16], strides = [1, 1]} : vector<24x64xf32> to vector<24x16xf32>
    %117 = arith.truncf %116 : vector<24x16xf32> to vector<24x16xbf16>
    %118 = vector.shape_cast %117 : vector<24x16xbf16> to vector<1x24x16xbf16>
    %119 = vector.extract_strided_slice %46 {offsets = [0, 32], sizes = [24, 16], strides = [1, 1]} : vector<24x64xf32> to vector<24x16xf32>
    %120 = arith.truncf %119 : vector<24x16xf32> to vector<24x16xbf16>
    %121 = vector.shape_cast %120 : vector<24x16xbf16> to vector<1x24x16xbf16>
    %122 = vector.extract_strided_slice %53 {offsets = [0, 32], sizes = [24, 16], strides = [1, 1]} : vector<24x64xf32> to vector<24x16xf32>
    %123 = arith.truncf %122 : vector<24x16xf32> to vector<24x16xbf16>
    %124 = vector.shape_cast %123 : vector<24x16xbf16> to vector<1x24x16xbf16>
    "tpu.trace_start"() <{level = 10 : i32, message = "bqd,bkd->bqk"}> : () -> ()
    %cst_47 = arith.constant dense<0.000000e+00> : vector<1x24x24xf32>
    %125 = tpu.matmul %118, %121, %cst_47 {dimension_numbers = #tpu.dot_dimension_numbers<[2], [2], [1], [1], [0, 0, 0, 1, 1, 1], [0], [0]>} : vector<1x24x16xbf16>, vector<1x24x16xbf16>, vector<1x24x24xf32> -> vector<1x24x24xf32>
    "tpu.trace_stop"() : () -> ()
    %cst_48 = arith.constant 2.500000e-01 : f32
    %126 = vector.broadcast %cst_48 : f32 to vector<1x24x24xf32>
    %127 = arith.mulf %125, %126 : vector<1x24x24xf32>
    %128 = tpu.iota {dimensions = array<i32: 2>} : vector<1x1x24xi32>
    %c17_i32_49 = arith.constant 17 : i32
    %129 = vector.broadcast %c17_i32_49 : i32 to vector<1x1x24xi32>
    %130 = arith.cmpi slt, %128, %129 : vector<1x1x24xi32>
    %cst_50 = arith.constant -1.000000e+30 : f32
    %131 = vector.shape_cast %130 : vector<1x1x24xi1> to vector<1x1x24xi1>
    %132 = vector.broadcast %131 : vector<1x1x24xi1> to vector<1x24x24xi1>
    %133 = vector.broadcast %cst_50 : f32 to vector<1x24x24xf32>
    %134 = arith.select %132, %127, %133 : vector<1x24x24xi1>, vector<1x24x24xf32>
    %cst_51 = arith.constant dense<0xFF800000> : vector<1x24xf32>
    %135 = vector.multi_reduction <maximumf>, %134, %cst_51 [2] : vector<1x24x24xf32> to vector<1x24xf32>
    %136 = vector.shape_cast %135 : vector<1x24xf32> to vector<1x24x1xf32>
    %137 = vector.broadcast %136 : vector<1x24x1xf32> to vector<1x24x24xf32>
    %138 = arith.subf %134, %137 : vector<1x24x24xf32>
    %139 = math.exp %138 : vector<1x24x24xf32>
    %cst_52 = arith.constant dense<0.000000e+00> : vector<1x24xf32>
    %140 = vector.multi_reduction <add>, %139, %cst_52 [2] : vector<1x24x24xf32> to vector<1x24xf32>
    %141 = vector.shape_cast %140 : vector<1x24xf32> to vector<1x24x1xf32>
    %142 = tpu.reciprocal %141 {approx = true} : vector<1x24x1xf32> -> vector<1x24x1xf32>
    %143 = vector.broadcast %142 : vector<1x24x1xf32> to vector<1x24x24xf32>
    %144 = arith.mulf %139, %143 : vector<1x24x24xf32>
    %145 = arith.truncf %144 : vector<1x24x24xf32> to vector<1x24x24xbf16>
    "tpu.trace_start"() <{level = 10 : i32, message = "bqk,bkd->bqd"}> : () -> ()
    %cst_53 = arith.constant dense<0.000000e+00> : vector<1x24x16xf32>
    %146 = tpu.matmul %145, %124, %cst_53 {dimension_numbers = #tpu.dot_dimension_numbers<[2], [1], [1], [2], [0, 0, 0, 1, 1, 2], [0], [0]>} : vector<1x24x24xbf16>, vector<1x24x16xbf16>, vector<1x24x16xf32> -> vector<1x24x16xf32>
    "tpu.trace_stop"() : () -> ()
    %147 = vector.extract_strided_slice %39 {offsets = [0, 48], sizes = [24, 16], strides = [1, 1]} : vector<24x64xf32> to vector<24x16xf32>
    %148 = arith.truncf %147 : vector<24x16xf32> to vector<24x16xbf16>
    %149 = vector.shape_cast %148 : vector<24x16xbf16> to vector<1x24x16xbf16>
    %150 = vector.extract_strided_slice %46 {offsets = [0, 48], sizes = [24, 16], strides = [1, 1]} : vector<24x64xf32> to vector<24x16xf32>
    %151 = arith.truncf %150 : vector<24x16xf32> to vector<24x16xbf16>
    %152 = vector.shape_cast %151 : vector<24x16xbf16> to vector<1x24x16xbf16>
    %153 = vector.extract_strided_slice %53 {offsets = [0, 48], sizes = [24, 16], strides = [1, 1]} : vector<24x64xf32> to vector<24x16xf32>
    %154 = arith.truncf %153 : vector<24x16xf32> to vector<24x16xbf16>
    %155 = vector.shape_cast %154 : vector<24x16xbf16> to vector<1x24x16xbf16>
    "tpu.trace_start"() <{level = 10 : i32, message = "bqd,bkd->bqk"}> : () -> ()
    %cst_54 = arith.constant dense<0.000000e+00> : vector<1x24x24xf32>
    %156 = tpu.matmul %149, %152, %cst_54 {dimension_numbers = #tpu.dot_dimension_numbers<[2], [2], [1], [1], [0, 0, 0, 1, 1, 1], [0], [0]>} : vector<1x24x16xbf16>, vector<1x24x16xbf16>, vector<1x24x24xf32> -> vector<1x24x24xf32>
    "tpu.trace_stop"() : () -> ()
    %cst_55 = arith.constant 2.500000e-01 : f32
    %157 = vector.broadcast %cst_55 : f32 to vector<1x24x24xf32>
    %158 = arith.mulf %156, %157 : vector<1x24x24xf32>
    %159 = tpu.iota {dimensions = array<i32: 2>} : vector<1x1x24xi32>
    %c17_i32_56 = arith.constant 17 : i32
    %160 = vector.broadcast %c17_i32_56 : i32 to vector<1x1x24xi32>
    %161 = arith.cmpi slt, %159, %160 : vector<1x1x24xi32>
    %cst_57 = arith.constant -1.000000e+30 : f32
    %162 = vector.shape_cast %161 : vector<1x1x24xi1> to vector<1x1x24xi1>
    %163 = vector.broadcast %162 : vector<1x1x24xi1> to vector<1x24x24xi1>
    %164 = vector.broadcast %cst_57 : f32 to vector<1x24x24xf32>
    %165 = arith.select %163, %158, %164 : vector<1x24x24xi1>, vector<1x24x24xf32>
    %cst_58 = arith.constant dense<0xFF800000> : vector<1x24xf32>
    %166 = vector.multi_reduction <maximumf>, %165, %cst_58 [2] : vector<1x24x24xf32> to vector<1x24xf32>
    %167 = vector.shape_cast %166 : vector<1x24xf32> to vector<1x24x1xf32>
    %168 = vector.broadcast %167 : vector<1x24x1xf32> to vector<1x24x24xf32>
    %169 = arith.subf %165, %168 : vector<1x24x24xf32>
    %170 = math.exp %169 : vector<1x24x24xf32>
    %cst_59 = arith.constant dense<0.000000e+00> : vector<1x24xf32>
    %171 = vector.multi_reduction <add>, %170, %cst_59 [2] : vector<1x24x24xf32> to vector<1x24xf32>
    %172 = vector.shape_cast %171 : vector<1x24xf32> to vector<1x24x1xf32>
    %173 = tpu.reciprocal %172 {approx = true} : vector<1x24x1xf32> -> vector<1x24x1xf32>
    %174 = vector.broadcast %173 : vector<1x24x1xf32> to vector<1x24x24xf32>
    %175 = arith.mulf %170, %174 : vector<1x24x24xf32>
    %176 = arith.truncf %175 : vector<1x24x24xf32> to vector<1x24x24xbf16>
    "tpu.trace_start"() <{level = 10 : i32, message = "bqk,bkd->bqd"}> : () -> ()
    %cst_60 = arith.constant dense<0.000000e+00> : vector<1x24x16xf32>
    %177 = tpu.matmul %176, %155, %cst_60 {dimension_numbers = #tpu.dot_dimension_numbers<[2], [1], [1], [2], [0, 0, 0, 1, 1, 2], [0], [0]>} : vector<1x24x24xbf16>, vector<1x24x16xbf16>, vector<1x24x16xf32> -> vector<1x24x16xf32>
    "tpu.trace_stop"() : () -> ()
    %178 = tpu.concatenate %84, %115, %146, %177 in 2 : vector<1x24x16xf32>, vector<1x24x16xf32>, vector<1x24x16xf32>, vector<1x24x16xf32> -> vector<1x24x64xf32>
    %179 = vector.shape_cast %178 : vector<1x24x64xf32> to vector<24x64xf32>
    %180 = arith.truncf %179 : vector<24x64xf32> to vector<24x64xbf16>
    %c0_61 = arith.constant 0 : index
    %c0_62 = arith.constant 0 : index
    %c0_63 = arith.constant 0 : index
    %181 = vector.load %arg11[%c0_61, %c0_62, %c0_63] : memref<1x64x64xbf16, #tpu.memory_space<vmem>>, vector<1x64x64xbf16>
    %182 = vector.shape_cast %181 : vector<1x64x64xbf16> to vector<64x64xbf16>
    %cst_64 = arith.constant dense<0.000000e+00> : vector<24x64xf32>
    %183 = tpu.matmul %180, %182, %cst_64 {dimension_numbers = #tpu.dot_dimension_numbers<[1], [0], [0], [1], [0, 0, 1, 1], [], []>} : vector<24x64xbf16>, vector<64x64xbf16>, vector<24x64xf32> -> vector<24x64xf32>
    %c0_65 = arith.constant 0 : index
    %c0_66 = arith.constant 0 : index
    %c0_67 = arith.constant 0 : index
    %184 = vector.load %arg12[%c0_65, %c0_66, %c0_67] : memref<1x1x64xf32, #tpu.memory_space<vmem>>, vector<1x1x64xf32>
    %185 = vector.shape_cast %184 : vector<1x1x64xf32> to vector<1x64xf32>
    %186 = vector.broadcast %185 : vector<1x64xf32> to vector<24x64xf32>
    %187 = arith.addf %183, %186 : vector<24x64xf32>
    %188 = arith.addf %3, %187 : vector<24x64xf32>
    %c0_68 = arith.constant 0 : index
    %c0_69 = arith.constant 0 : index
    %c0_70 = arith.constant 0 : index
    %189 = vector.load %arg13[%c0_68, %c0_69, %c0_70] : memref<1x1x64xf32, #tpu.memory_space<vmem>>, vector<1x1x64xf32>
    %190 = vector.shape_cast %189 : vector<1x1x64xf32> to vector<1x64xf32>
    %c0_71 = arith.constant 0 : index
    %c0_72 = arith.constant 0 : index
    %c0_73 = arith.constant 0 : index
    %191 = vector.load %arg14[%c0_71, %c0_72, %c0_73] : memref<1x1x64xf32, #tpu.memory_space<vmem>>, vector<1x1x64xf32>
    %192 = vector.shape_cast %191 : vector<1x1x64xf32> to vector<1x64xf32>
    %cst_74 = arith.constant dense<0.000000e+00> : vector<24xf32>
    %193 = vector.multi_reduction <add>, %188, %cst_74 [1] : vector<24x64xf32> to vector<24xf32>
    %194 = vector.shape_cast %193 : vector<24xf32> to vector<24x1xf32>
    %cst_75 = arith.constant 6.400000e+01 : f32
    %195 = vector.broadcast %cst_75 : f32 to vector<24x1xf32>
    %196 = arith.divf %194, %195 : vector<24x1xf32>
    %197 = arith.mulf %188, %188 : vector<24x64xf32>
    %cst_76 = arith.constant dense<0.000000e+00> : vector<24xf32>
    %198 = vector.multi_reduction <add>, %197, %cst_76 [1] : vector<24x64xf32> to vector<24xf32>
    %199 = vector.shape_cast %198 : vector<24xf32> to vector<24x1xf32>
    %cst_77 = arith.constant 6.400000e+01 : f32
    %200 = vector.broadcast %cst_77 : f32 to vector<24x1xf32>
    %201 = arith.divf %199, %200 : vector<24x1xf32>
    %202 = arith.mulf %196, %196 : vector<24x1xf32>
    %203 = arith.subf %201, %202 : vector<24x1xf32>
    %cst_78 = arith.constant 0.000000e+00 : f32
    %204 = vector.broadcast %cst_78 : f32 to vector<24x1xf32>
    %205 = arith.maximumf %203, %204 : vector<24x1xf32>
    %206 = vector.broadcast %196 : vector<24x1xf32> to vector<24x64xf32>
    %207 = arith.subf %188, %206 : vector<24x64xf32>
    %cst_79 = arith.constant 9.99999974E-6 : f32
    %208 = vector.broadcast %cst_79 : f32 to vector<24x1xf32>
    %209 = arith.addf %205, %208 : vector<24x1xf32>
    %210 = math.rsqrt %209 : vector<24x1xf32>
    %211 = vector.broadcast %210 : vector<24x1xf32> to vector<24x64xf32>
    %212 = arith.mulf %207, %211 : vector<24x64xf32>
    %213 = vector.broadcast %190 : vector<1x64xf32> to vector<24x64xf32>
    %214 = arith.mulf %212, %213 : vector<24x64xf32>
    %215 = vector.broadcast %192 : vector<1x64xf32> to vector<24x64xf32>
    %216 = arith.addf %214, %215 : vector<24x64xf32>
    %217 = arith.truncf %216 : vector<24x64xf32> to vector<24x64xbf16>
    %c0_80 = arith.constant 0 : index
    %c0_81 = arith.constant 0 : index
    %c0_82 = arith.constant 0 : index
    %218 = vector.load %arg15[%c0_80, %c0_81, %c0_82] : memref<1x64x256xbf16, #tpu.memory_space<vmem>>, vector<1x64x256xbf16>
    %219 = vector.shape_cast %218 : vector<1x64x256xbf16> to vector<64x256xbf16>
    %cst_83 = arith.constant dense<0.000000e+00> : vector<24x256xf32>
    %220 = tpu.matmul %217, %219, %cst_83 {dimension_numbers = #tpu.dot_dimension_numbers<[1], [0], [0], [1], [0, 0, 1, 1], [], []>} : vector<24x64xbf16>, vector<64x256xbf16>, vector<24x256xf32> -> vector<24x256xf32>
    %c0_84 = arith.constant 0 : index
    %c0_85 = arith.constant 0 : index
    %c0_86 = arith.constant 0 : index
    %221 = vector.load %arg16[%c0_84, %c0_85, %c0_86] : memref<1x1x256xf32, #tpu.memory_space<vmem>>, vector<1x1x256xf32>
    %222 = vector.shape_cast %221 : vector<1x1x256xf32> to vector<1x256xf32>
    %223 = vector.broadcast %222 : vector<1x256xf32> to vector<24x256xf32>
    %224 = arith.addf %220, %223 : vector<24x256xf32>
    %cst_87 = arith.constant 1.702000e+00 : f32
    %225 = vector.broadcast %cst_87 : f32 to vector<24x256xf32>
    %226 = arith.mulf %225, %224 : vector<24x256xf32>
    %227 = arith.negf %226 : vector<24x256xf32>
    %228 = math.exp %227 : vector<24x256xf32>
    %cst_88 = arith.constant 1.000000e+00 : f32
    %229 = vector.broadcast %cst_88 : f32 to vector<24x256xf32>
    %230 = arith.addf %229, %228 : vector<24x256xf32>
    %231 = arith.divf %229, %230 : vector<24x256xf32>
    %232 = arith.mulf %224, %231 : vector<24x256xf32>
    %233 = arith.truncf %232 : vector<24x256xf32> to vector<24x256xbf16>
    %c0_89 = arith.constant 0 : index
    %c0_90 = arith.constant 0 : index
    %c0_91 = arith.constant 0 : index
    %234 = vector.load %arg17[%c0_89, %c0_90, %c0_91] : memref<1x256x64xbf16, #tpu.memory_space<vmem>>, vector<1x256x64xbf16>
    %235 = vector.shape_cast %234 : vector<1x256x64xbf16> to vector<256x64xbf16>
    %cst_92 = arith.constant dense<0.000000e+00> : vector<24x64xf32>
    %236 = tpu.matmul %233, %235, %cst_92 {dimension_numbers = #tpu.dot_dimension_numbers<[1], [0], [0], [1], [0, 0, 1, 1], [], []>} : vector<24x256xbf16>, vector<256x64xbf16>, vector<24x64xf32> -> vector<24x64xf32>
    %c0_93 = arith.constant 0 : index
    %c0_94 = arith.constant 0 : index
    %c0_95 = arith.constant 0 : index
    %237 = vector.load %arg18[%c0_93, %c0_94, %c0_95] : memref<1x1x64xf32, #tpu.memory_space<vmem>>, vector<1x1x64xf32>
    %238 = vector.shape_cast %237 : vector<1x1x64xf32> to vector<1x64xf32>
    %239 = vector.broadcast %238 : vector<1x64xf32> to vector<24x64xf32>
    %240 = arith.addf %236, %239 : vector<24x64xf32>
    %241 = arith.addf %188, %240 : vector<24x64xf32>
    %c0_96 = arith.constant 0 : index
    %c0_97 = arith.constant 0 : index
    %242 = vector.load %arg19[%c0_96, %c0_97] : memref<24x64xf32, #tpu.memory_space<vmem>>, vector<24x64xf32>
    tpu.vector_store %arg19[%c0_96, %c0_97], %241 {strides = array<i32>} : memref<24x64xf32, #tpu.memory_space<vmem>>, vector<24x64xf32>,
    return
  }
  func.func @transform_0(%arg0: i32, %arg1: i32) -> (i32, i32) {
    %c0_i32 = arith.constant 0 : i32
    %c0_i32_0 = arith.constant 0 : i32
    return %arg0, %c0_i32 : i32, i32
  }
  func.func @transform_1(%arg0: i32, %arg1: i32) -> (i32, i32, i32) {
    %c0_i32 = arith.constant 0 : i32
    %c0_i32_0 = arith.constant 0 : i32
    %c0_i32_1 = arith.constant 0 : i32
    return %arg1, %c0_i32, %c0_i32_0 : i32, i32, i32
  }
  func.func @transform_2(%arg0: i32, %arg1: i32) -> (i32, i32, i32) {
    %c0_i32 = arith.constant 0 : i32
    %c0_i32_0 = arith.constant 0 : i32
    %c0_i32_1 = arith.constant 0 : i32
    return %arg1, %c0_i32, %c0_i32_0 : i32, i32, i32
  }
  func.func @transform_3(%arg0: i32, %arg1: i32) -> (i32, i32, i32) {
    %c0_i32 = arith.constant 0 : i32
    %c0_i32_0 = arith.constant 0 : i32
    %c0_i32_1 = arith.constant 0 : i32
    return %arg1, %c0_i32, %c0_i32_0 : i32, i32, i32
  }
  func.func @transform_4(%arg0: i32, %arg1: i32) -> (i32, i32, i32) {
    %c0_i32 = arith.constant 0 : i32
    %c0_i32_0 = arith.constant 0 : i32
    %c0_i32_1 = arith.constant 0 : i32
    return %arg1, %c0_i32, %c0_i32_0 : i32, i32, i32
  }
  func.func @transform_5(%arg0: i32, %arg1: i32) -> (i32, i32, i32) {
    %c0_i32 = arith.constant 0 : i32
    %c0_i32_0 = arith.constant 0 : i32
    %c0_i32_1 = arith.constant 0 : i32
    return %arg1, %c0_i32, %c0_i32_0 : i32, i32, i32
  }
  func.func @transform_6(%arg0: i32, %arg1: i32) -> (i32, i32, i32) {
    %c0_i32 = arith.constant 0 : i32
    %c0_i32_0 = arith.constant 0 : i32
    %c0_i32_1 = arith.constant 0 : i32
    return %arg1, %c0_i32, %c0_i32_0 : i32, i32, i32
  }
  func.func @transform_7(%arg0: i32, %arg1: i32) -> (i32, i32, i32) {
    %c0_i32 = arith.constant 0 : i32
    %c0_i32_0 = arith.constant 0 : i32
    %c0_i32_1 = arith.constant 0 : i32
    return %arg1, %c0_i32, %c0_i32_0 : i32, i32, i32
  }
  func.func @transform_8(%arg0: i32, %arg1: i32) -> (i32, i32, i32) {
    %c0_i32 = arith.constant 0 : i32
    %c0_i32_0 = arith.constant 0 : i32
    %c0_i32_1 = arith.constant 0 : i32
    return %arg1, %c0_i32, %c0_i32_0 : i32, i32, i32
  }
  func.func @transform_9(%arg0: i32, %arg1: i32) -> (i32, i32, i32) {
    %c0_i32 = arith.constant 0 : i32
    %c0_i32_0 = arith.constant 0 : i32
    %c0_i32_1 = arith.constant 0 : i32
    return %arg1, %c0_i32, %c0_i32_0 : i32, i32, i32
  }
  func.func @transform_10(%arg0: i32, %arg1: i32) -> (i32, i32, i32) {
    %c0_i32 = arith.constant 0 : i32
    %c0_i32_0 = arith.constant 0 : i32
    %c0_i32_1 = arith.constant 0 : i32
    return %arg1, %c0_i32, %c0_i32_0 : i32, i32, i32
  }
  func.func @transform_11(%arg0: i32, %arg1: i32) -> (i32, i32, i32) {
    %c0_i32 = arith.constant 0 : i32
    %c0_i32_0 = arith.constant 0 : i32
    %c0_i32_1 = arith.constant 0 : i32
    return %arg1, %c0_i32, %c0_i32_0 : i32, i32, i32
  }
  func.func @transform_12(%arg0: i32, %arg1: i32) -> (i32, i32, i32) {
    %c0_i32 = arith.constant 0 : i32
    %c0_i32_0 = arith.constant 0 : i32
    %c0_i32_1 = arith.constant 0 : i32
    return %arg1, %c0_i32, %c0_i32_0 : i32, i32, i32
  }
  func.func @transform_13(%arg0: i32, %arg1: i32) -> (i32, i32, i32) {
    %c0_i32 = arith.constant 0 : i32
    %c0_i32_0 = arith.constant 0 : i32
    %c0_i32_1 = arith.constant 0 : i32
    return %arg1, %c0_i32, %c0_i32_0 : i32, i32, i32
  }
  func.func @transform_14(%arg0: i32, %arg1: i32) -> (i32, i32, i32) {
    %c0_i32 = arith.constant 0 : i32
    %c0_i32_0 = arith.constant 0 : i32
    %c0_i32_1 = arith.constant 0 : i32
    return %arg1, %c0_i32, %c0_i32_0 : i32, i32, i32
  }
  func.func @transform_15(%arg0: i32, %arg1: i32) -> (i32, i32, i32) {
    %c0_i32 = arith.constant 0 : i32
    %c0_i32_0 = arith.constant 0 : i32
    %c0_i32_1 = arith.constant 0 : i32
    return %arg1, %c0_i32, %c0_i32_0 : i32, i32, i32
  }
  func.func @transform_16(%arg0: i32, %arg1: i32) -> (i32, i32, i32) {
    %c0_i32 = arith.constant 0 : i32
    %c0_i32_0 = arith.constant 0 : i32
    %c0_i32_1 = arith.constant 0 : i32
    return %arg1, %c0_i32, %c0_i32_0 : i32, i32, i32
  }
  func.func @transform_17(%arg0: i32, %arg1: i32) -> (i32, i32) {
    %c0_i32 = arith.constant 0 : i32
    %c0_i32_0 = arith.constant 0 : i32
    return %arg0, %c0_i32 : i32, i32
  }
}

</mosaic_0001>

<llo_original>
// kernel: _lambda_.5
$region0: #{_lambda_.5}
  #allocation0 [shape = 'u32[]', space=smem, size = 0x4, offset = 0x4, fixed_abs, tag = 'smem constant byte address 0x4 - core index']
  #allocation1 [shape = 'u32[144,128]{1,0:T(1,128)}', space=vmem, size = 0x12000, scoped, tag = 'internal scratch']
  %s0 = inlined_call_operand.vmem [shape: f32[2,64], index: 0, kind: input, shape index: {}]
  %s1 = inlined_call_operand.vmem [shape: f32[1,64], index: 1, kind: input, shape index: {}]
  %s2 = inlined_call_operand.vmem [shape: f32[1,64], index: 2, kind: input, shape index: {}]
  %s3 = inlined_call_operand.vmem [shape: f32[64,128], index: 3, kind: input, shape index: {}]
  %s4 = inlined_call_operand.vmem [shape: f32[128,128], index: 4, kind: input, shape index: {}]
  %s5 = inlined_call_operand.hbm [shape: f32[2,128], index: 5, kind: output, shape index: {0}]
  %s6 = inlined_call_operand.hbm [shape: f32[2,128], index: 6, kind: output, shape index: {1}]
  %7 = xla_tuple %s5, %s6
  %s8 = sld [smem:[#allocation0]]
  $region38: #{_lambda_.5} parent=0
    _
  %s10 = ssub.s32 1, %s8
  %s11 = scalar_select 0, %s10, %s8
  $region1: #{_lambda_.5} parent=0
    #allocation2 [shape = 'u8[1024]{0}', space=vmem, size = 0x400, scoped, tag = 'output window, operand 0, single buffered']
    #allocation3 [shape = 's32[1]{0}', space=sflag, size = 0x4, scoped, tag = 'scoped memory for _lambda_.5']
    #allocation4 [shape = 'u8[1024]{0}', space=vmem, size = 0x400, scoped, tag = 'output window, operand 1, single buffered']
    #allocation5 [shape = 's32[1]{0}', space=sflag, size = 0x4, scoped, tag = 'scoped memory for _lambda_.5']
    %12 = vsyncpa [#allocation3], 0
    %13 = vsyncpa [#allocation5], 0
    // Predicated region
    $region2: #{_lambda_.5} parent=1 // pred_check
      _
    $region3: #{_lambda_.5} parent=1 // pred_check_branch
      %15 = sbr.rel (0) target = $region5
    $region4: #{_lambda_.5} parent=1 // pred_region
      _
    $region5: #{_lambda_.5} parent=1 // pred_fallthru
      _
    // Predicated region
    $region6: #{_lambda_.5} parent=1 // pred_check
      _
    $region7: #{_lambda_.5} parent=1 // pred_check_branch
      %17 = sbr.rel (0) target = $region9
    $region8: #{_lambda_.5} parent=1 // pred_region
      _
    $region9: #{_lambda_.5} parent=1 // pred_fallthru
      _
    // Predicated region
    $region10: #{_lambda_.5} parent=1 // pred_check
      _
    $region11: #{_lambda_.5} parent=1 // pred_check_branch
      %19 = sbr.rel (0) target = $region13
    $region12: #{_lambda_.5} parent=1 // pred_region
      _
    $region13: #{_lambda_.5} parent=1 // pred_fallthru
      _
    // Predicated region
    $region14: #{_lambda_.5} parent=1 // pred_check
      _
    $region15: #{_lambda_.5} parent=1 // pred_check_branch
      %21 = sbr.rel (0) target = $region17
    $region16: #{_lambda_.5} parent=1 // pred_region
      _
    $region17: #{_lambda_.5} parent=1 // pred_fallthru
      _
    // Predicated region
    $region18: #{_lambda_.5} parent=1 // pred_check
      _
    $region19: #{_lambda_.5} parent=1 // pred_check_branch
      %23 = sbr.rel (0) target = $region21
    $region20: #{_lambda_.5} parent=1 // pred_region
      _
    $region21: #{_lambda_.5} parent=1 // pred_fallthru
      _
    %v24 = vld [vmem:[%s0] sm:$0x3]
    %v25 = vld [vmem:[%s1] sm:$0x1]
    %v26 = vld [vmem:[%s2] sm:$0x1]
    %vm27 = vcmask 517120
    %v28 = vsel %vm27, %v24, 0.0
    %29 = vadd.xlane.f32.xlu0 %v28
    %v30 = vpop.xlane.xlu0 %29
    %v31 = vrcp.pop 64.0
    %v32 = vmul.f32 %v30, %v31
    %v33 = vmul.f32 %v24, %v24
    %v34 = vsel %vm27, %v33, 0.0
    %35 = vadd.xlane.f32.xlu0 %v34
    %v36 = vpop.xlane.xlu0 %35
    %v37 = vmul.f32 %v36, %v31
    %v38 = vmul.f32 %v32, %v32
    %v39 = vsub.f32 %v37, %v38
    %v40 = vmax.f32 %v39, 0.0
    %v41 = vsub.f32 %v24, %v32
    %v42 = vadd.f32 %v40, 1e-05
    %v43 = vrsqrt.pop %v42
    %v44 = vmul.f32 %v41, %v43
    %v46 = vlaneseq
    %v47 = vshrl.u32 %v46, 7
    %v48 = vsub.s32 0, %v47
    %v49 = vrot.slane %v25, %v48
    %v51 = vmul.f32 %v44, %v49
    %v53 = vlaneseq
    %v54 = vshrl.u32 %v53, 7
    %v55 = vsub.s32 0, %v54
    %v56 = vrot.slane %v26, %v55
    %v58 = vadd.f32 %v51, %v56
    %v59 = vld [vmem:[%s3] sm:$0xff]
    %v60 = vld [vmem:[%s3 + $0x8] sm:$0xff]
    %v61 = vld [vmem:[%s3 + $0x10] sm:$0xff]
    %v62 = vld [vmem:[%s3 + $0x18] sm:$0xff]
    %v63 = vld [vmem:[%s3 + $0x20] sm:$0xff]
    %v64 = vld [vmem:[%s3 + $0x28] sm:$0xff]
    %v65 = vld [vmem:[%s3 + $0x30] sm:$0xff]
    %v66 = vld [vmem:[%s3 + $0x38] sm:$0xff]
    %vm67 = vcmask 523264
    %v69 = vsel %vm67, %v58, 0
    %71 = vmatprep.subr.mxu0 0.0
    %72 = vmatpush1.msra.mxu0 %v59
    %73 = vmatprep.subr.mxu0 0.0
    %74 = vmatpush1.msra.mxu0 %v60
    %75 = vmatprep.subr.mxu0 0.0
    %76 = vmatpush1.msra.mxu0 %v61
    %77 = vmatprep.subr.mxu0 0.0
    %78 = vmatpush1.msra.mxu0 %v62
    %79 = vmatprep.subr.mxu0 0.0
    %80 = vmatpush1.msra.mxu0 %v63
    %81 = vmatprep.subr.mxu0 0.0
    %82 = vmatpush1.msra.mxu0 %v64
    %83 = vmatprep.subr.mxu0 0.0
    %84 = vmatpush1.msra.mxu0 %v65
    %85 = vmatprep.subr.mxu0 0.0
    %86 = vmatpush1.msra.mxu0 %v66
    %87 = vmatprep.subr.mxu0 0.0
    %88 = vmatpush1.msra.mxu0 0.0
    %89 = vmatprep.subr.mxu0 0.0
    %90 = vmatpush1.msra.mxu0 0.0
    %91 = vmatprep.subr.mxu0 0.0
    %92 = vmatpush1.msra.mxu0 0.0
    %93 = vmatprep.subr.mxu0 0.0
    %94 = vmatpush1.msra.mxu0 0.0
    %95 = vmatprep.subr.mxu0 0.0
    %96 = vmatpush1.msra.mxu0 0.0
    %97 = vmatprep.subr.mxu0 0.0
    %98 = vmatpush1.msra.mxu0 0.0
    %99 = vmatprep.subr.mxu0 0.0
    %100 = vmatpush1.msra.mxu0 0.0
    %101 = vmatprep.subr.mxu0 0.0
    %102 = vmatpush1.msra.mxu0 0.0
    %103 = vmatprep.subr.mxu0 0.0
    %104 = vmatpush1.msra.mxu0 0.0
    %105 = vmatprep.subr.mxu0 0.0
    %106 = vmatpush1.msra.mxu0 0.0
    %107 = vmatprep.subr.mxu0 0.0
    %108 = vmatpush1.msra.mxu0 0.0
    %109 = vmatprep.subr.mxu0 0.0
    %110 = vmatpush1.msra.mxu0 0.0
    %111 = vmatprep.subr.mxu0 0.0
    %112 = vmatpush1.msra.mxu0 0.0
    %113 = vmatprep.subr.mxu0 0.0
    %114 = vmatpush1.msra.mxu0 0.0
    %115 = vmatprep.subr.mxu0 0.0
    %116 = vmatpush1.msra.mxu0 0.0
    %117 = vmatprep.subr.mxu0 0.0
    %118 = vmatpush1.msra.mxu0 0.0
    %119 = vmatprep.subr.mxu0 0.0
    %120 = vmatpush1.msra.mxu0 0.0
    %121 = vmatprep.subr.mxu0 0.0
    %122 = vmatpush1.msra.mxu0 0.0
    %123 = vmatprep.subr.mxu0 0.0
    %124 = vmatpush1.msra.mxu0 0.0
    %125 = vmatprep.subr.mxu0 0.0
    %126 = vmatpush1.msra.mxu0 0.0
    %127 = vmatprep.subr.mxu0 0.0
    %128 = vmatpush1.msra.mxu0 0.0
    %129 = vmatprep.subr.mxu0 0.0
    %130 = vmatpush1.msra.mxu0 0.0
    %131 = vmatprep.subr.mxu0 0.0
    %132 = vmatpush1.msra.mxu0 0.0
    %133 = vmatprep.subr.mxu0 0.0
    %134 = vmatpush1.msra.mxu0 0.0
    %135 = vmatprep.mubr.f32.mxu0 0.0
    %136 = vmatmul.mubr.f32.gmra.mrb[0].mxu0 %v69
    %v137 = vpop.f32.mrb[0].mxu0
    %v138 = vadd.f32 0.0, %v137
    %v139 = vpop.f32.mrb[0].mxu0
    %140 = vdwg.mxu0
    %v141 = vmul.f32 %v138, %v138
    %vm142 = vcmask 1041408
    %v143 = vsel %vm142, %v141, 0.0
    %144 = vadd.xlane.f32.xlu0 %v143
    %v145 = vpop.xlane.xlu0 %144
    %v146 = vmax.f32 %v145, 1e-24
    %v147 = vrsqrt.pop %v146
    %v148 = vmul.f32 %v138, %v147
    %149 = vst [vmem:[#allocation4] sm:$0x3] %v148
    %v150 = vld [vmem:[%s4] sm:$0xff]
    %v151 = vld [vmem:[%s4 + $0x8] sm:$0xff]
    %v152 = vld [vmem:[%s4 + $0x10] sm:$0xff]
    %v153 = vld [vmem:[%s4 + $0x18] sm:$0xff]
    %v154 = vld [vmem:[%s4 + $0x20] sm:$0xff]
    %v155 = vld [vmem:[%s4 + $0x28] sm:$0xff]
    %v156 = vld [vmem:[%s4 + $0x30] sm:$0xff]
    %v157 = vld [vmem:[%s4 + $0x38] sm:$0xff]
    %v158 = vld [vmem:[%s4 + $0x40] sm:$0xff]
    %v159 = vld [vmem:[%s4 + $0x48] sm:$0xff]
    %v160 = vld [vmem:[%s4 + $0x50] sm:$0xff]
    %v161 = vld [vmem:[%s4 + $0x58] sm:$0xff]
    %v162 = vld [vmem:[%s4 + $0x60] sm:$0xff]
    %v163 = vld [vmem:[%s4 + $0x68] sm:$0xff]
    %v164 = vld [vmem:[%s4 + $0x70] sm:$0xff]
    %v165 = vld [vmem:[%s4 + $0x78] sm:$0xff]
    %166 = vmatprep.subr.mxu0 0.0
    %167 = vmatpush1.msra.mxu0 %v150
    %168 = vmatprep.subr.mxu0 0.0
    %169 = vmatpush1.msra.mxu0 %v151
    %170 = vmatprep.subr.mxu0 0.0
    %171 = vmatpush1.msra.mxu0 %v152
    %172 = vmatprep.subr.mxu0 0.0
    %173 = vmatpush1.msra.mxu0 %v153
    %174 = vmatprep.subr.mxu0 0.0
    %175 = vmatpush1.msra.mxu0 %v154
    %176 = vmatprep.subr.mxu0 0.0
    %177 = vmatpush1.msra.mxu0 %v155
    %178 = vmatprep.subr.mxu0 0.0
    %179 = vmatpush1.msra.mxu0 %v156
    %180 = vmatprep.subr.mxu0 0.0
    %181 = vmatpush1.msra.mxu0 %v157
    %182 = vmatprep.subr.mxu0 0.0
    %183 = vmatpush1.msra.mxu0 %v158
    %184 = vmatprep.subr.mxu0 0.0
    %185 = vmatpush1.msra.mxu0 %v159
    %186 = vmatprep.subr.mxu0 0.0
    %187 = vmatpush1.msra.mxu0 %v160
    %188 = vmatprep.subr.mxu0 0.0
    %189 = vmatpush1.msra.mxu0 %v161
    %190 = vmatprep.subr.mxu0 0.0
    %191 = vmatpush1.msra.mxu0 %v162
    %192 = vmatprep.subr.mxu0 0.0
    %193 = vmatpush1.msra.mxu0 %v163
    %194 = vmatprep.subr.mxu0 0.0
    %195 = vmatpush1.msra.mxu0 %v164
    %196 = vmatprep.subr.mxu0 0.0
    %197 = vmatpush1.msra.mxu0 %v165
    %198 = vmatprep.subr.mxu0 0.0
    %199 = vmatpush1.msra.mxu0 0.0
    %200 = vmatprep.subr.mxu0 0.0
    %201 = vmatpush1.msra.mxu0 0.0
    %202 = vmatprep.subr.mxu0 0.0
    %203 = vmatpush1.msra.mxu0 0.0
    %204 = vmatprep.subr.mxu0 0.0
    %205 = vmatpush1.msra.mxu0 0.0
    %206 = vmatprep.subr.mxu0 0.0
    %207 = vmatpush1.msra.mxu0 0.0
    %208 = vmatprep.subr.mxu0 0.0
    %209 = vmatpush1.msra.mxu0 0.0
    %210 = vmatprep.subr.mxu0 0.0
    %211 = vmatpush1.msra.mxu0 0.0
    %212 = vmatprep.subr.mxu0 0.0
    %213 = vmatpush1.msra.mxu0 0.0
    %214 = vmatprep.subr.mxu0 0.0
    %215 = vmatpush1.msra.mxu0 0.0
    %216 = vmatprep.subr.mxu0 0.0
    %217 = vmatpush1.msra.mxu0 0.0
    %218 = vmatprep.subr.mxu0 0.0
    %219 = vmatpush1.msra.mxu0 0.0
    %220 = vmatprep.subr.mxu0 0.0
    %221 = vmatpush1.msra.mxu0 0.0
    %222 = vmatprep.subr.mxu0 0.0
    %223 = vmatpush1.msra.mxu0 0.0
    %224 = vmatprep.subr.mxu0 0.0
    %225 = vmatpush1.msra.mxu0 0.0
    %226 = vmatprep.subr.mxu0 0.0
    %227 = vmatpush1.msra.mxu0 0.0
    %228 = vmatprep.subr.mxu0 0.0
    %229 = vmatpush1.msra.mxu0 0.0
    %230 = vmatprep.mubr.f32.mxu0 0.0
    %231 = vmatmul.mubr.f32.gmra.mrb[0].mxu0 %v148
    %v232 = vpop.f32.mrb[0].mxu0
    %v233 = vadd.f32 0.0, %v232
    %v234 = vpop.f32.mrb[0].mxu0
    %235 = vdwg.mxu0
    %236 = vst [vmem:[#allocation2] sm:$0x3] %v233
    // Predicated region
    $region22: #{_lambda_.5} parent=1 // pred_check
      _
    $region23: #{_lambda_.5} parent=1 // pred_check_branch
      %238 = sbr.rel (0) target = $region25
    $region24: #{_lambda_.5} parent=1 // pred_region
      %s240 = ssub.s32 32, 32
      %241 = vsyncadd [#allocation3], %s240
      %s243 = sshll.u32 [#allocation2], 4
      %s244 = int_to_ptr.vmem [resolvable:$true] %s243
      %246 = dma.vmem_to_hbm [thread:$0]  %s244, 32, %s5, [#allocation3]
    $region25: #{_lambda_.5} parent=1 // pred_fallthru
      _
    // Predicated region
    $region26: #{_lambda_.5} parent=1 // pred_check
      _
    $region27: #{_lambda_.5} parent=1 // pred_check_branch
      %248 = sbr.rel (0) target = $region29
    $region28: #{_lambda_.5} parent=1 // pred_region
      %s250 = ssub.s32 32, 32
      %251 = vsyncadd [#allocation5], %s250
      %s253 = sshll.u32 [#allocation4], 4
      %s254 = int_to_ptr.vmem [resolvable:$true] %s253
      %256 = dma.vmem_to_hbm [thread:$0]  %s254, 32, %s6, [#allocation5]
    $region29: #{_lambda_.5} parent=1 // pred_fallthru
      _
    // Predicated region
    $region30: #{_lambda_.5} parent=1 // pred_check
      _
    $region31: #{_lambda_.5} parent=1 // pred_check_branch
      %258 = sbr.rel (0) target = $region33
    $region32: #{_lambda_.5} parent=1 // pred_region
      %259 = dma.done [#allocation3], 32
    $region33: #{_lambda_.5} parent=1 // pred_fallthru
      _
    // Predicated region
    $region34: #{_lambda_.5} parent=1 // pred_check
      _
    $region35: #{_lambda_.5} parent=1 // pred_check_branch
      %261 = sbr.rel (0) target = $region37
    $region36: #{_lambda_.5} parent=1 // pred_region
      %262 = dma.done [#allocation5], 32
    $region37: #{_lambda_.5} parent=1 // pred_fallthru
      _
    %263 = vsyncpa [#allocation3], 1
    %264 = vsyncpa [#allocation5], 1

// kernel: _lambda_.3
$region0: #{_lambda_.3}
  #allocation0 [shape = 'u32[]', space=smem, size = 0x4, offset = 0x4, fixed_abs, tag = 'smem constant byte address 0x4 - core index']
  #allocation1 [shape = 'u32[144,128]{1,0:T(1,128)}', space=vmem, size = 0x12000, scoped, tag = 'internal scratch']
  %s0 = inlined_call_operand.vmem [shape: bf16[48,192], index: 0, kind: input, shape index: {}]
  %s1 = inlined_call_operand.vmem [shape: bf16[192,64], index: 1, kind: input, shape index: {}]
  %s2 = inlined_call_operand.vmem [shape: f32[48,64], index: 2, kind: input, shape index: {}]
  %s3 = inlined_call_operand.vmem [shape: f32[1,64], index: 3, kind: input, shape index: {}]
  %s4 = inlined_call_operand.vmem [shape: f32[1,64], index: 4, kind: input, shape index: {}]
  %s5 = inlined_call_operand.vmem [shape: f32[48,64], index: 5, kind: output, shape index: {}]
  %s6 = sld [smem:[#allocation0]]
  $region30: #{_lambda_.3} parent=0
    _
  %s8 = ssub.s32 1, %s6
  %s9 = scalar_select 0, %s8, %s6
  // Predicated region
  $region2: #{_lambda_.3} parent=0 // pred_check
    _
  $region3: #{_lambda_.3} parent=0 // pred_check_branch
    %11 = sbr.rel (0) target = $region5
  $region4: #{_lambda_.3} parent=0 // pred_region
    _
  $region5: #{_lambda_.3} parent=0 // pred_fallthru
    _
  // Predicated region
  $region6: #{_lambda_.3} parent=0 // pred_check
    _
  $region7: #{_lambda_.3} parent=0 // pred_check_branch
    %13 = sbr.rel (0) target = $region9
  $region8: #{_lambda_.3} parent=0 // pred_region
    _
  $region9: #{_lambda_.3} parent=0 // pred_fallthru
    _
  // Predicated region
  $region10: #{_lambda_.3} parent=0 // pred_check
    _
  $region11: #{_lambda_.3} parent=0 // pred_check_branch
    %15 = sbr.rel (0) target = $region13
  $region12: #{_lambda_.3} parent=0 // pred_region
    _
  $region13: #{_lambda_.3} parent=0 // pred_fallthru
    _
  // Predicated region
  $region14: #{_lambda_.3} parent=0 // pred_check
    _
  $region15: #{_lambda_.3} parent=0 // pred_check_branch
    %17 = sbr.rel (0) target = $region17
  $region16: #{_lambda_.3} parent=0 // pred_region
    _
  $region17: #{_lambda_.3} parent=0 // pred_fallthru
    _
  // Predicated region
  $region18: #{_lambda_.3} parent=0 // pred_check
    _
  $region19: #{_lambda_.3} parent=0 // pred_check_branch
    %19 = sbr.rel (0) target = $region21
  $region20: #{_lambda_.3} parent=0 // pred_region
    _
  $region21: #{_lambda_.3} parent=0 // pred_fallthru
    _
  %v21 = vld [vmem:[%s0] sm:$0xff]
  %v22 = vld [vmem:[%s0 + $0x8] sm:$0xff]
  %v23 = vld [vmem:[%s0 + $0x10] sm:$0xff]
  %v24 = vld [vmem:[%s0 + $0x18] sm:$0xff]
  %v25 = vld [vmem:[%s0 + $0x20] sm:$0xff]
  %v26 = vld [vmem:[%s0 + $0x28] sm:$0xff]
  %v27 = vld [vmem:[%s1] sm:$0xf]
  %v28 = vld [vmem:[%s1 + $0x4] sm:$0xf]
  %v29 = vld [vmem:[%s1 + $0x8] sm:$0xf]
  %v30 = vld [vmem:[%s1 + $0xc] sm:$0xf]
  %v31 = vld [vmem:[%s1 + $0x10] sm:$0xf]
  %v32 = vld [vmem:[%s1 + $0x14] sm:$0xf]
  %v33 = vld [vmem:[%s1 + $0x18] sm:$0xf]
  %v34 = vld [vmem:[%s1 + $0x1c] sm:$0xf]
  %v35 = vld [vmem:[%s1 + $0x20] sm:$0xf]
  %v36 = vld [vmem:[%s1 + $0x24] sm:$0xf]
  %v37 = vld [vmem:[%s1 + $0x28] sm:$0xf]
  %v38 = vld [vmem:[%s1 + $0x2c] sm:$0xf]
  %v39 = vld [vmem:[%s1 + $0x30] sm:$0xf]
  %v40 = vld [vmem:[%s1 + $0x34] sm:$0xf]
  %v41 = vld [vmem:[%s1 + $0x38] sm:$0xf]
  %v42 = vld [vmem:[%s1 + $0x3c] sm:$0xf]
  %v43 = vld [vmem:[%s1 + $0x40] sm:$0xf]
  %v44 = vld [vmem:[%s1 + $0x44] sm:$0xf]
  %v45 = vld [vmem:[%s1 + $0x48] sm:$0xf]
  %v46 = vld [vmem:[%s1 + $0x4c] sm:$0xf]
  %v47 = vld [vmem:[%s1 + $0x50] sm:$0xf]
  %v48 = vld [vmem:[%s1 + $0x54] sm:$0xf]
  %v49 = vld [vmem:[%s1 + $0x58] sm:$0xf]
  %v50 = vld [vmem:[%s1 + $0x5c] sm:$0xf]
  %v51 = vld [vmem:[%s2] sm:$0xff]
  %v52 = vld [vmem:[%s2 + $0x8] sm:$0xff]
  %v53 = vld [vmem:[%s2 + $0x10] sm:$0xff]
  %v54 = vld [vmem:[%s2 + $0x18] sm:$0xff]
  %v55 = vld [vmem:[%s2 + $0x20] sm:$0xff]
  %v56 = vld [vmem:[%s2 + $0x28] sm:$0xff]
  %v63 = vunpack.c.l.b16 %v21
  %v64 = vunpack.c.h.b16 %v21
  %v65 = vunpack.c.l.b16 %v22
  %v66 = vunpack.c.h.b16 %v22
  %v67 = vunpack.c.l.b16 %v23
  %v68 = vunpack.c.h.b16 %v23
  %v69 = vunpack.c.l.b16 %v24
  %v70 = vunpack.c.h.b16 %v24
  %v71 = vunpack.c.l.b16 %v25
  %v72 = vunpack.c.h.b16 %v25
  %v73 = vunpack.c.l.b16 %v26
  %v74 = vunpack.c.h.b16 %v26
  %v75 = vpack.c.b16 %v65, %v63
  %v76 = vpack.c.b16 %v66, %v64
  %v77 = vpack.c.b16 %v69, %v67
  %v78 = vpack.c.b16 %v70, %v68
  %v79 = vpack.c.b16 %v73, %v71
  %v80 = vpack.c.b16 %v74, %v72
  %v108 = vunpack.c.l.b16 %v27
  %v109 = vunpack.c.l.b16 %v28
  %v110 = vunpack.c.l.b16 %v29
  %v111 = vunpack.c.l.b16 %v30
  %v112 = vunpack.c.l.b16 %v31
  %v113 = vunpack.c.l.b16 %v32
  %v114 = vunpack.c.l.b16 %v33
  %v115 = vunpack.c.l.b16 %v34
  %v116 = vunpack.c.l.b16 %v35
  %v117 = vunpack.c.l.b16 %v36
  %v118 = vunpack.c.l.b16 %v37
  %v119 = vunpack.c.l.b16 %v38
  %v120 = vunpack.c.l.b16 %v39
  %v121 = vunpack.c.l.b16 %v40
  %v122 = vunpack.c.l.b16 %v41
  %v123 = vunpack.c.l.b16 %v42
  %v124 = vunpack.c.l.b16 %v43
  %v125 = vunpack.c.l.b16 %v44
  %v126 = vunpack.c.l.b16 %v45
  %v127 = vunpack.c.l.b16 %v46
  %v128 = vunpack.c.l.b16 %v47
  %v129 = vunpack.c.l.b16 %v48
  %v130 = vunpack.c.l.b16 %v49
  %v131 = vunpack.c.l.b16 %v50
  %v132 = vpack.c.b16 %v109, %v108
  %v133 = vpack.c.b16 %v111, %v110
  %v134 = vpack.c.b16 %v113, %v112
  %v135 = vpack.c.b16 %v115, %v114
  %v136 = vpack.c.b16 %v117, %v116
  %v137 = vpack.c.b16 %v119, %v118
  %v138 = vpack.c.b16 %v121, %v120
  %v139 = vpack.c.b16 %v123, %v122
  %v140 = vpack.c.b16 %v125, %v124
  %v141 = vpack.c.b16 %v127, %v126
  %v142 = vpack.c.b16 %v129, %v128
  %v143 = vpack.c.b16 %v131, %v130
  %vm156 = vcmask 523264
  %v158 = vsel %vm156, %v76, 0
  %v161 = vsel %vm156, %v78, 0
  %v164 = vsel %vm156, %v80, 0
  %166 = vmatprep.subr.bf16.mxu0 0
  %167 = vmatpush1.bf16.msra.mxu0 %v132
  %168 = vmatprep.subr.bf16.mxu0 0
  %169 = vmatpush1.bf16.msra.mxu0 %v133
  %170 = vmatprep.subr.bf16.mxu0 0
  %171 = vmatpush1.bf16.msra.mxu0 %v134
  %172 = vmatprep.subr.bf16.mxu0 0
  %173 = vmatpush1.bf16.msra.mxu0 %v135
  %174 = vmatprep.subr.bf16.mxu0 0
  %175 = vmatpush1.bf16.msra.mxu0 %v136
  %176 = vmatprep.subr.bf16.mxu0 0
  %177 = vmatpush1.bf16.msra.mxu0 %v137
  %178 = vmatprep.subr.bf16.mxu0 0
  %179 = vmatpush1.bf16.msra.mxu0 %v138
  %180 = vmatprep.subr.bf16.mxu0 0
  %181 = vmatpush1.bf16.msra.mxu0 %v139
  %182 = vmatprep.subr.bf16.mxu0 0
  %183 = vmatpush1.bf16.msra.mxu0 %v140
  %184 = vmatprep.subr.bf16.mxu0 0
  %185 = vmatpush1.bf16.msra.mxu0 %v141
  %186 = vmatprep.subr.bf16.mxu0 0
  %187 = vmatpush1.bf16.msra.mxu0 %v142
  %188 = vmatprep.subr.bf16.mxu0 0
  %189 = vmatpush1.bf16.msra.mxu0 %v143
  %190 = vmatprep.subr.bf16.mxu0 0
  %191 = vmatpush1.bf16.msra.mxu0 0
  %192 = vmatprep.subr.bf16.mxu0 0
  %193 = vmatpush1.bf16.msra.mxu0 0
  %194 = vmatprep.subr.bf16.mxu0 0
  %195 = vmatpush1.bf16.msra.mxu0 0
  %196 = vmatprep.subr.bf16.mxu0 0
  %197 = vmatpush1.bf16.msra.mxu0 0
  %198 = vmatprep.mubr.bf16.mxu0 %v158
  %199 = vmatmul.mubr.bf16.gmra.mrb[0].mxu0 %v75
  %v200 = vpop.f32.mrb[0].mxu0
  %v201 = vadd.f32 %v51, %v200
  %v202 = vpop.f32.mrb[0].mxu0
  %v203 = vpop.f32.mrb[0].mxu0
  %v204 = vadd.f32 %v52, %v203
  %v205 = vpop.f32.mrb[0].mxu0
  %206 = vmatprep.mubr.bf16.mxu0 %v161
  %207 = vmatmul.mubr.bf16.gmra.mrb[0].mxu0 %v77
  %v208 = vpop.f32.mrb[0].mxu0
  %v209 = vadd.f32 %v53, %v208
  %v210 = vpop.f32.mrb[0].mxu0
  %v211 = vpop.f32.mrb[0].mxu0
  %v212 = vadd.f32 %v54, %v211
  %v213 = vpop.f32.mrb[0].mxu0
  %214 = vmatprep.mubr.bf16.mxu0 %v164
  %215 = vmatmul.mubr.bf16.gmra.mrb[0].mxu0 %v79
  %v216 = vpop.f32.mrb[0].mxu0
  %v217 = vadd.f32 %v55, %v216
  %v218 = vpop.f32.mrb[0].mxu0
  %v219 = vpop.f32.mrb[0].mxu0
  %v220 = vadd.f32 %v56, %v219
  %v221 = vpop.f32.mrb[0].mxu0
  %222 = vdwg.mxu0
  %v223 = vld [vmem:[%s3] sm:$0x1]
  %v224 = vld [vmem:[%s4] sm:$0x1]
  %v225 = vsel %vm156, %v201, 0.0
  %226 = vadd.xlane.f32.xlu0 %v225
  %v227 = vpop.xlane.xlu0 %226
  %v228 = vsel %vm156, %v204, 0.0
  %229 = vadd.xlane.f32.xlu0 %v228
  %v230 = vpop.xlane.xlu0 %229
  %v231 = vsel %vm156, %v209, 0.0
  %232 = vadd.xlane.f32.xlu0 %v231
  %v233 = vpop.xlane.xlu0 %232
  %v234 = vsel %vm156, %v212, 0.0
  %235 = vadd.xlane.f32.xlu0 %v234
  %v236 = vpop.xlane.xlu0 %235
  %v237 = vsel %vm156, %v217, 0.0
  %238 = vadd.xlane.f32.xlu0 %v237
  %v239 = vpop.xlane.xlu0 %238
  %v240 = vsel %vm156, %v220, 0.0
  %241 = vadd.xlane.f32.xlu0 %v240
  %v242 = vpop.xlane.xlu0 %241
  %v243 = vrcp.pop 64.0
  %v244 = vmul.f32 %v227, %v243
  %v245 = vmul.f32 %v230, %v243
  %v246 = vmul.f32 %v233, %v243
  %v247 = vmul.f32 %v236, %v243
  %v248 = vmul.f32 %v239, %v243
  %v249 = vmul.f32 %v242, %v243
  %v250 = vmul.f32 %v201, %v201
  %v251 = vmul.f32 %v204, %v204
  %v252 = vmul.f32 %v209, %v209
  %v253 = vmul.f32 %v212, %v212
  %v254 = vmul.f32 %v217, %v217
  %v255 = vmul.f32 %v220, %v220
  %v256 = vsel %vm156, %v250, 0.0
  %257 = vadd.xlane.f32.xlu0 %v256
  %v258 = vpop.xlane.xlu0 %257
  %v259 = vsel %vm156, %v251, 0.0
  %260 = vadd.xlane.f32.xlu0 %v259
  %v261 = vpop.xlane.xlu0 %260
  %v262 = vsel %vm156, %v252, 0.0
  %263 = vadd.xlane.f32.xlu0 %v262
  %v264 = vpop.xlane.xlu0 %263
  %v265 = vsel %vm156, %v253, 0.0
  %266 = vadd.xlane.f32.xlu0 %v265
  %v267 = vpop.xlane.xlu0 %266
  %v268 = vsel %vm156, %v254, 0.0
  %269 = vadd.xlane.f32.xlu0 %v268
  %v270 = vpop.xlane.xlu0 %269
  %v271 = vsel %vm156, %v255, 0.0
  %272 = vadd.xlane.f32.xlu0 %v271
  %v273 = vpop.xlane.xlu0 %272
  %v274 = vmul.f32 %v258, %v243
  %v275 = vmul.f32 %v261, %v243
  %v276 = vmul.f32 %v264, %v243
  %v277 = vmul.f32 %v267, %v243
  %v278 = vmul.f32 %v270, %v243
  %v279 = vmul.f32 %v273, %v243
  %v280 = vmul.f32 %v244, %v244
  %v281 = vmul.f32 %v245, %v245
  %v282 = vmul.f32 %v246, %v246
  %v283 = vmul.f32 %v247, %v247
  %v284 = vmul.f32 %v248, %v248
  %v285 = vmul.f32 %v249, %v249
  %v286 = vsub.f32 %v274, %v280
  %v287 = vsub.f32 %v275, %v281
  %v288 = vsub.f32 %v276, %v282
  %v289 = vsub.f32 %v277, %v283
  %v290 = vsub.f32 %v278, %v284
  %v291 = vsub.f32 %v279, %v285
  %v292 = vmax.f32 %v286, 0.0
  %v293 = vmax.f32 %v287, 0.0
  %v294 = vmax.f32 %v288, 0.0
  %v295 = vmax.f32 %v289, 0.0
  %v296 = vmax.f32 %v290, 0.0
  %v297 = vmax.f32 %v291, 0.0
  %v298 = vsub.f32 %v201, %v244
  %v299 = vsub.f32 %v204, %v245
  %v300 = vsub.f32 %v209, %v246
  %v301 = vsub.f32 %v212, %v247
  %v302 = vsub.f32 %v217, %v248
  %v303 = vsub.f32 %v220, %v249
  %v304 = vadd.f32 %v292, 1e-05
  %v305 = vadd.f32 %v293, 1e-05
  %v306 = vadd.f32 %v294, 1e-05
  %v307 = vadd.f32 %v295, 1e-05
  %v308 = vadd.f32 %v296, 1e-05
  %v309 = vadd.f32 %v297, 1e-05
  %v310 = vrsqrt.pop %v304
  %v311 = vrsqrt.pop %v305
  %v312 = vrsqrt.pop %v306
  %v313 = vrsqrt.pop %v307
  %v314 = vrsqrt.pop %v308
  %v315 = vrsqrt.pop %v309
  %v316 = vmul.f32 %v298, %v310
  %v317 = vmul.f32 %v299, %v311
  %v318 = vmul.f32 %v300, %v312
  %v319 = vmul.f32 %v301, %v313
  %v320 = vmul.f32 %v302, %v314
  %v321 = vmul.f32 %v303, %v315
  %v323 = vlaneseq
  %v324 = vshrl.u32 %v323, 7
  %v325 = vsub.s32 0, %v324
  %v326 = vrot.slane %v223, %v325
  %v328 = vmul.f32 %v316, %v326
  %v329 = vmul.f32 %v317, %v326
  %v330 = vmul.f32 %v318, %v326
  %v331 = vmul.f32 %v319, %v326
  %v332 = vmul.f32 %v320, %v326
  %v333 = vmul.f32 %v321, %v326
  %v335 = vlaneseq
  %v336 = vshrl.u32 %v335, 7
  %v337 = vsub.s32 0, %v336
  %v338 = vrot.slane %v224, %v337
  %v340 = vadd.f32 %v328, %v338
  %v341 = vadd.f32 %v329, %v338
  %v342 = vadd.f32 %v330, %v338
  %v343 = vadd.f32 %v331, %v338
  %v344 = vadd.f32 %v332, %v338
  %v345 = vadd.f32 %v333, %v338
  %346 = vst.msk [vmem:[%s5] sm:$0xff] %vm156, %v340
  %347 = vst.msk [vmem:[%s5 + $0x8] sm:$0xff] %vm156, %v341
  %348 = vst.msk [vmem:[%s5 + $0x10] sm:$0xff] %vm156, %v342
  %349 = vst.msk [vmem:[%s5 + $0x18] sm:$0xff] %vm156, %v343
  %350 = vst.msk [vmem:[%s5 + $0x20] sm:$0xff] %vm156, %v344
  %351 = vst.msk [vmem:[%s5 + $0x28] sm:$0xff] %vm156, %v345
  // Predicated region
  $region22: #{_lambda_.3} parent=0 // pred_check
    _
  $region23: #{_lambda_.3} parent=0 // pred_check_branch
    %353 = sbr.rel (0) target = $region25
  $region24: #{_lambda_.3} parent=0 // pred_region
    _
  $region25: #{_lambda_.3} parent=0 // pred_fallthru
    _
  // Predicated region
  $region26: #{_lambda_.3} parent=0 // pred_check
    _
  $region27: #{_lambda_.3} parent=0 // pred_check_branch
    %355 = sbr.rel (0) target = $region29
  $region28: #{_lambda_.3} parent=0 // pred_region
    _
  $region29: #{_lambda_.3} parent=0 // pred_fallthru
    _

// kernel: _lambda_.4
$region0: #{_lambda_.4}
  #allocation0 [shape = 'u32[]', space=smem, size = 0x4, offset = 0x4, fixed_abs, tag = 'smem constant byte address 0x4 - core index']
  #allocation1 [shape = 'u32[144,128]{1,0:T(1,128)}', space=vmem, size = 0x12000, scoped, tag = 'internal scratch']
  %s0 = inlined_call_operand.vmem [shape: f32[48,64], index: 0, kind: input, shape index: {}]
  %s1 = inlined_call_operand.vmem [shape: f32[2,1,64], index: 1, kind: input, shape index: {}, may-alias: {1,11}]
  %s2 = inlined_call_operand.vmem [shape: f32[2,1,64], index: 2, kind: input, shape index: {}, may-alias: {2,4,6,8,10,12,16}]
  %s3 = inlined_call_operand.vmem [shape: bf16[2,64,64], index: 3, kind: input, shape index: {}]
  %s4 = inlined_call_operand.vmem [shape: f32[2,1,64], index: 4, kind: input, shape index: {}, may-alias: {2,4,6,8,10,12,16}]
  %s5 = inlined_call_operand.vmem [shape: bf16[2,64,64], index: 5, kind: input, shape index: {}]
  %s6 = inlined_call_operand.vmem [shape: f32[2,1,64], index: 6, kind: input, shape index: {}, may-alias: {2,4,6,8,10,12,16}]
  %s7 = inlined_call_operand.vmem [shape: bf16[2,64,64], index: 7, kind: input, shape index: {}]
  %s8 = inlined_call_operand.vmem [shape: f32[2,1,64], index: 8, kind: input, shape index: {}, may-alias: {2,4,6,8,10,12,16}]
  %s9 = inlined_call_operand.vmem [shape: bf16[2,64,64], index: 9, kind: input, shape index: {}]
  %s10 = inlined_call_operand.vmem [shape: f32[2,1,64], index: 10, kind: input, shape index: {}, may-alias: {2,4,6,8,10,12,16}]
  %s11 = inlined_call_operand.vmem [shape: f32[2,1,64], index: 11, kind: input, shape index: {}, may-alias: {1,11}]
  %s12 = inlined_call_operand.vmem [shape: f32[2,1,64], index: 12, kind: input, shape index: {}, may-alias: {2,4,6,8,10,12,16}]
  %s13 = inlined_call_operand.vmem [shape: bf16[2,64,256], index: 13, kind: input, shape index: {}]
  %s14 = inlined_call_operand.vmem [shape: f32[2,1,256], index: 14, kind: input, shape index: {}]
  %s15 = inlined_call_operand.vmem [shape: bf16[2,256,64], index: 15, kind: input, shape index: {}]
  %s16 = inlined_call_operand.vmem [shape: f32[2,1,64], index: 16, kind: input, shape index: {}, may-alias: {2,4,6,8,10,12,16}]
  %s17 = inlined_call_operand.vmem [shape: f32[48,64], index: 17, kind: output, shape index: {}]
  %s18 = sld [smem:[#allocation0]]
  $region105: #{_lambda_.4} parent=0
    _
  %s20 = ssub.s32 1, %s18
  %s21 = scalar_select 0, %s20, %s18
  loop: start=0, step=1, limit=6
  $region2: #{_lambda_.4} parent=0 // loop_pre_header
    _
  $region3: #{_lambda_.4} parent=0 // loop_header
    %s23 = sphi 0, %s27
    %p24 = scmp.ge.s32.totalorder %s23, 6
    %s30 = sphi 0, %s42
    %s31 = sphi 0, %s38
    %s32 = sphi 0, %s30
    %s33 = sphi 0, %s31
    %s34 = sphi 0, %s32
    %s35 = sphi 0, %s33
    %s45 = sphi 0, %s47
    %s48 = sphi 0, %s45
    %s49 = sphi 0, %s48
    %s65 = sphi 0, %s49
    %s71 = sphi 0, %s73
    %s74 = sphi 0, %s71
    %s75 = sphi 0, %s74
    %s91 = sphi 0, %s75
    %s97 = sphi 0, %s99
    %s100 = sphi 0, %s97
    %s101 = sphi 0, %s100
    %s117 = sphi 0, %s101
    %s123 = sphi 0, %s125
    %s126 = sphi 0, %s123
    %s127 = sphi 0, %s126
    %s143 = sphi 0, %s127
    %s149 = sphi 0, %s151
    %s152 = sphi 0, %s149
    %s153 = sphi 0, %s152
    %s169 = sphi 0, %s153
    %s175 = sphi 0, %s177
    %s178 = sphi 0, %s175
    %s179 = sphi 0, %s178
    %s195 = sphi 0, %s179
    %s201 = sphi 0, %s203
    %s204 = sphi 0, %s201
    %s205 = sphi 0, %s204
    %s221 = sphi 0, %s205
    %s227 = sphi 0, %s229
    %s230 = sphi 0, %s227
    %s231 = sphi 0, %s230
    %s247 = sphi 0, %s231
    %s253 = sphi 0, %s255
    %s256 = sphi 0, %s253
    %s257 = sphi 0, %s256
    %s273 = sphi 0, %s257
    %s279 = sphi 0, %s281
    %s282 = sphi 0, %s279
    %s283 = sphi 0, %s282
    %s299 = sphi 0, %s283
    %s305 = sphi 0, %s307
    %s308 = sphi 0, %s305
    %s309 = sphi 0, %s308
    %s325 = sphi 0, %s309
    %s331 = sphi 0, %s333
    %s334 = sphi 0, %s331
    %s335 = sphi 0, %s334
    %s351 = sphi 0, %s335
    %s357 = sphi 0, %s359
    %s360 = sphi 0, %s357
    %s361 = sphi 0, %s360
    %s377 = sphi 0, %s361
    %s383 = sphi 0, %s385
    %s386 = sphi 0, %s383
    %s387 = sphi 0, %s386
    %s403 = sphi 0, %s387
    %s409 = sphi 0, %s411
    %s412 = sphi 0, %s409
    %s413 = sphi 0, %s412
    %s429 = sphi 0, %s413
    %s435 = sphi 0, %s437
    %s438 = sphi 0, %s435
    %s439 = sphi 0, %s438
    %s455 = sphi 0, %s439
    %s461 = sphi 0, %s463
    %s464 = sphi 0, %s461
    %s465 = sphi 0, %s464
    %s481 = sphi 0, %s465
    %s487 = sphi 0, %s489
    %s490 = sphi 0, %s487
    %s491 = sphi 0, %s490
    %s507 = sphi 0, %s491
  $region4: #{_lambda_.4} parent=0 // loop_header_branch
    %26 = sbr.rel (%p24) target = $region8
  $region5: #{_lambda_.4} parent=0 // loop_body
    %s28 = ssub.s32 %s23, 1
    %s29 = ssub.s32 %s23, 2
    %s36 = sadd.s32 1, %s31
    %p37 = scmp.ge.s32.totalorder %s36, 2
    %s38 = scalar_select %p37, 0, %s36
    %s39 = sadd.s32 1, %s30
    %s40 = scalar_select %p37, %s39, %s30
    %p41 = scmp.ge.s32.totalorder %s40, 2
    %s42 = scalar_select %p41, 0, %s40
    %s43 = ssub.s32 %s30, %s42
    %p44 = scmp.eq.s32.totalorder %s43, 0
    %s46 = sadd.s32 %s45, 1
    %s47 = scalar_select %p44, %s45, %s46
    %p50 = pneg %p44
    %p51 = scmp.eq.s32.totalorder %s23, 3
    %p52 = por %p50, %p51
    %p53 = scmp.ne.s32.totalorder %s45, %s48
    %p54 = scmp.eq.s32.totalorder %s23, 0
    %p55 = por %p53, %p54
    %p56 = scmp.ne.s32.totalorder %s45, %s48
    %p57 = scmp.eq.s32.totalorder %s28, 3
    %p58 = por %p56, %p57
    %p59 = scmp.ne.s32.totalorder %s48, %s49
    %p60 = scmp.eq.s32.totalorder %s28, 0
    %p61 = por %p59, %p60
    %p62 = scmp.ne.s32.totalorder %s48, %s49
    %p63 = scmp.eq.s32.totalorder %s29, 3
    %p64 = por %p62, %p63
    %p66 = scmp.ne.s32.totalorder %s49, %s65
    %p67 = scmp.eq.s32.totalorder %s29, 0
    %p68 = por %p66, %p67
    %s69 = ssub.s32 %s31, %s38
    %p70 = scmp.eq.s32.totalorder %s69, 0
    %s72 = sadd.s32 %s71, 1
    %s73 = scalar_select %p70, %s71, %s72
    %p76 = pneg %p70
    %p77 = scmp.eq.s32.totalorder %s23, 3
    %p78 = por %p76, %p77
    %p79 = scmp.ne.s32.totalorder %s71, %s74
    %p80 = scmp.eq.s32.totalorder %s23, 0
    %p81 = por %p79, %p80
    %p82 = scmp.ne.s32.totalorder %s71, %s74
    %p83 = scmp.eq.s32.totalorder %s28, 3
    %p84 = por %p82, %p83
    %p85 = scmp.ne.s32.totalorder %s74, %s75
    %p86 = scmp.eq.s32.totalorder %s28, 0
    %p87 = por %p85, %p86
    %p88 = scmp.ne.s32.totalorder %s74, %s75
    %p89 = scmp.eq.s32.totalorder %s29, 3
    %p90 = por %p88, %p89
    %p92 = scmp.ne.s32.totalorder %s75, %s91
    %p93 = scmp.eq.s32.totalorder %s29, 0
    %p94 = por %p92, %p93
    %s95 = ssub.s32 %s31, %s38
    %p96 = scmp.eq.s32.totalorder %s95, 0
    %s98 = sadd.s32 %s97, 1
    %s99 = scalar_select %p96, %s97, %s98
    %p102 = pneg %p96
    %p103 = scmp.eq.s32.totalorder %s23, 3
    %p104 = por %p102, %p103
    %p105 = scmp.ne.s32.totalorder %s97, %s100
    %p106 = scmp.eq.s32.totalorder %s23, 0
    %p107 = por %p105, %p106
    %p108 = scmp.ne.s32.totalorder %s97, %s100
    %p109 = scmp.eq.s32.totalorder %s28, 3
    %p110 = por %p108, %p109
    %p111 = scmp.ne.s32.totalorder %s100, %s101
    %p112 = scmp.eq.s32.totalorder %s28, 0
    %p113 = por %p111, %p112
    %p114 = scmp.ne.s32.totalorder %s100, %s101
    %p115 = scmp.eq.s32.totalorder %s29, 3
    %p116 = por %p114, %p115
    %p118 = scmp.ne.s32.totalorder %s101, %s117
    %p119 = scmp.eq.s32.totalorder %s29, 0
    %p120 = por %p118, %p119
    %s121 = ssub.s32 %s31, %s38
    %p122 = scmp.eq.s32.totalorder %s121, 0
    %s124 = sadd.s32 %s123, 1
    %s125 = scalar_select %p122, %s123, %s124
    %p128 = pneg %p122
    %p129 = scmp.eq.s32.totalorder %s23, 3
    %p130 = por %p128, %p129
    %p131 = scmp.ne.s32.totalorder %s123, %s126
    %p132 = scmp.eq.s32.totalorder %s23, 0
    %p133 = por %p131, %p132
    %p134 = scmp.ne.s32.totalorder %s123, %s126
    %p135 = scmp.eq.s32.totalorder %s28, 3
    %p136 = por %p134, %p135
    %p137 = scmp.ne.s32.totalorder %s126, %s127
    %p138 = scmp.eq.s32.totalorder %s28, 0
    %p139 = por %p137, %p138
    %p140 = scmp.ne.s32.totalorder %s126, %s127
    %p141 = scmp.eq.s32.totalorder %s29, 3
    %p142 = por %p140, %p141
    %p144 = scmp.ne.s32.totalorder %s127, %s143
    %p145 = scmp.eq.s32.totalorder %s29, 0
    %p146 = por %p144, %p145
    %s147 = ssub.s32 %s31, %s38
    %p148 = scmp.eq.s32.totalorder %s147, 0
    %s150 = sadd.s32 %s149, 1
    %s151 = scalar_select %p148, %s149, %s150
    %p154 = pneg %p148
    %p155 = scmp.eq.s32.totalorder %s23, 3
    %p156 = por %p154, %p155
    %p157 = scmp.ne.s32.totalorder %s149, %s152
    %p158 = scmp.eq.s32.totalorder %s23, 0
    %p159 = por %p157, %p158
    %p160 = scmp.ne.s32.totalorder %s149, %s152
    %p161 = scmp.eq.s32.totalorder %s28, 3
    %p162 = por %p160, %p161
    %p163 = scmp.ne.s32.totalorder %s152, %s153
    %p164 = scmp.eq.s32.totalorder %s28, 0
    %p165 = por %p163, %p164
    %p166 = scmp.ne.s32.totalorder %s152, %s153
    %p167 = scmp.eq.s32.totalorder %s29, 3
    %p168 = por %p166, %p167
    %p170 = scmp.ne.s32.totalorder %s153, %s169
    %p171 = scmp.eq.s32.totalorder %s29, 0
    %p172 = por %p170, %p171
    %s173 = ssub.s32 %s31, %s38
    %p174 = scmp.eq.s32.totalorder %s173, 0
    %s176 = sadd.s32 %s175, 1
    %s177 = scalar_select %p174, %s175, %s176
    %p180 = pneg %p174
    %p181 = scmp.eq.s32.totalorder %s23, 3
    %p182 = por %p180, %p181
    %p183 = scmp.ne.s32.totalorder %s175, %s178
    %p184 = scmp.eq.s32.totalorder %s23, 0
    %p185 = por %p183, %p184
    %p186 = scmp.ne.s32.totalorder %s175, %s178
    %p187 = scmp.eq.s32.totalorder %s28, 3
    %p188 = por %p186, %p187
    %p189 = scmp.ne.s32.totalorder %s178, %s179
    %p190 = scmp.eq.s32.totalorder %s28, 0
    %p191 = por %p189, %p190
    %p192 = scmp.ne.s32.totalorder %s178, %s179
    %p193 = scmp.eq.s32.totalorder %s29, 3
    %p194 = por %p192, %p193
    %p196 = scmp.ne.s32.totalorder %s179, %s195
    %p197 = scmp.eq.s32.totalorder %s29, 0
    %p198 = por %p196, %p197
    %s199 = ssub.s32 %s31, %s38
    %p200 = scmp.eq.s32.totalorder %s199, 0
    %s202 = sadd.s32 %s201, 1
    %s203 = scalar_select %p200, %s201, %s202
    %p206 = pneg %p200
    %p207 = scmp.eq.s32.totalorder %s23, 3
    %p208 = por %p206, %p207
    %p209 = scmp.ne.s32.totalorder %s201, %s204
    %p210 = scmp.eq.s32.totalorder %s23, 0
    %p211 = por %p209, %p210
    %p212 = scmp.ne.s32.totalorder %s201, %s204
    %p213 = scmp.eq.s32.totalorder %s28, 3
    %p214 = por %p212, %p213
    %p215 = scmp.ne.s32.totalorder %s204, %s205
    %p216 = scmp.eq.s32.totalorder %s28, 0
    %p217 = por %p215, %p216
    %p218 = scmp.ne.s32.totalorder %s204, %s205
    %p219 = scmp.eq.s32.totalorder %s29, 3
    %p220 = por %p218, %p219
    %p222 = scmp.ne.s32.totalorder %s205, %s221
    %p223 = scmp.eq.s32.totalorder %s29, 0
    %p224 = por %p222, %p223
    %s225 = ssub.s32 %s31, %s38
    %p226 = scmp.eq.s32.totalorder %s225, 0
    %s228 = sadd.s32 %s227, 1
    %s229 = scalar_select %p226, %s227, %s228
    %p232 = pneg %p226
    %p233 = scmp.eq.s32.totalorder %s23, 3
    %p234 = por %p232, %p233
    %p235 = scmp.ne.s32.totalorder %s227, %s230
    %p236 = scmp.eq.s32.totalorder %s23, 0
    %p237 = por %p235, %p236
    %p238 = scmp.ne.s32.totalorder %s227, %s230
    %p239 = scmp.eq.s32.totalorder %s28, 3
    %p240 = por %p238, %p239
    %p241 = scmp.ne.s32.totalorder %s230, %s231
    %p242 = scmp.eq.s32.totalorder %s28, 0
    %p243 = por %p241, %p242
    %p244 = scmp.ne.s32.totalorder %s230, %s231
    %p245 = scmp.eq.s32.totalorder %s29, 3
    %p246 = por %p244, %p245
    %p248 = scmp.ne.s32.totalorder %s231, %s247
    %p249 = scmp.eq.s32.totalorder %s29, 0
    %p250 = por %p248, %p249
    %s251 = ssub.s32 %s31, %s38
    %p252 = scmp.eq.s32.totalorder %s251, 0
    %s254 = sadd.s32 %s253, 1
    %s255 = scalar_select %p252, %s253, %s254
    %p258 = pneg %p252
    %p259 = scmp.eq.s32.totalorder %s23, 3
    %p260 = por %p258, %p259
    %p261 = scmp.ne.s32.totalorder %s253, %s256
    %p262 = scmp.eq.s32.totalorder %s23, 0
    %p263 = por %p261, %p262
    %p264 = scmp.ne.s32.totalorder %s253, %s256
    %p265 = scmp.eq.s32.totalorder %s28, 3
    %p266 = por %p264, %p265
    %p267 = scmp.ne.s32.totalorder %s256, %s257
    %p268 = scmp.eq.s32.totalorder %s28, 0
    %p269 = por %p267, %p268
    %p270 = scmp.ne.s32.totalorder %s256, %s257
    %p271 = scmp.eq.s32.totalorder %s29, 3
    %p272 = por %p270, %p271
    %p274 = scmp.ne.s32.totalorder %s257, %s273
    %p275 = scmp.eq.s32.totalorder %s29, 0
    %p276 = por %p274, %p275
    %s277 = ssub.s32 %s31, %s38
    %p278 = scmp.eq.s32.totalorder %s277, 0
    %s280 = sadd.s32 %s279, 1
    %s281 = scalar_select %p278, %s279, %s280
    %p284 = pneg %p278
    %p285 = scmp.eq.s32.totalorder %s23, 3
    %p286 = por %p284, %p285
    %p287 = scmp.ne.s32.totalorder %s279, %s282
    %p288 = scmp.eq.s32.totalorder %s23, 0
    %p289 = por %p287, %p288
    %p290 = scmp.ne.s32.totalorder %s279, %s282
    %p291 = scmp.eq.s32.totalorder %s28, 3
    %p292 = por %p290, %p291
    %p293 = scmp.ne.s32.totalorder %s282, %s283
    %p294 = scmp.eq.s32.totalorder %s28, 0
    %p295 = por %p293, %p294
    %p296 = scmp.ne.s32.totalorder %s282, %s283
    %p297 = scmp.eq.s32.totalorder %s29, 3
    %p298 = por %p296, %p297
    %p300 = scmp.ne.s32.totalorder %s283, %s299
    %p301 = scmp.eq.s32.totalorder %s29, 0
    %p302 = por %p300, %p301
    %s303 = ssub.s32 %s31, %s38
    %p304 = scmp.eq.s32.totalorder %s303, 0
    %s306 = sadd.s32 %s305, 1
    %s307 = scalar_select %p304, %s305, %s306
    %p310 = pneg %p304
    %p311 = scmp.eq.s32.totalorder %s23, 3
    %p312 = por %p310, %p311
    %p313 = scmp.ne.s32.totalorder %s305, %s308
    %p314 = scmp.eq.s32.totalorder %s23, 0
    %p315 = por %p313, %p314
    %p316 = scmp.ne.s32.totalorder %s305, %s308
    %p317 = scmp.eq.s32.totalorder %s28, 3
    %p318 = por %p316, %p317
    %p319 = scmp.ne.s32.totalorder %s308, %s309
    %p320 = scmp.eq.s32.totalorder %s28, 0
    %p321 = por %p319, %p320
    %p322 = scmp.ne.s32.totalorder %s308, %s309
    %p323 = scmp.eq.s32.totalorder %s29, 3
    %p324 = por %p322, %p323
    %p326 = scmp.ne.s32.totalorder %s309, %s325
    %p327 = scmp.eq.s32.totalorder %s29, 0
    %p328 = por %p326, %p327
    %s329 = ssub.s32 %s31, %s38
    %p330 = scmp.eq.s32.totalorder %s329, 0
    %s332 = sadd.s32 %s331, 1
    %s333 = scalar_select %p330, %s331, %s332
    %p336 = pneg %p330
    %p337 = scmp.eq.s32.totalorder %s23, 3
    %p338 = por %p336, %p337
    %p339 = scmp.ne.s32.totalorder %s331, %s334
    %p340 = scmp.eq.s32.totalorder %s23, 0
    %p341 = por %p339, %p340
    %p342 = scmp.ne.s32.totalorder %s331, %s334
    %p343 = scmp.eq.s32.totalorder %s28, 3
    %p344 = por %p342, %p343
    %p345 = scmp.ne.s32.totalorder %s334, %s335
    %p346 = scmp.eq.s32.totalorder %s28, 0
    %p347 = por %p345, %p346
    %p348 = scmp.ne.s32.totalorder %s334, %s335
    %p349 = scmp.eq.s32.totalorder %s29, 3
    %p350 = por %p348, %p349
    %p352 = scmp.ne.s32.totalorder %s335, %s351
    %p353 = scmp.eq.s32.totalorder %s29, 0
    %p354 = por %p352, %p353
    %s355 = ssub.s32 %s31, %s38
    %p356 = scmp.eq.s32.totalorder %s355, 0
    %s358 = sadd.s32 %s357, 1
    %s359 = scalar_select %p356, %s357, %s358
    %p362 = pneg %p356
    %p363 = scmp.eq.s32.totalorder %s23, 3
    %p364 = por %p362, %p363
    %p365 = scmp.ne.s32.totalorder %s357, %s360
    %p366 = scmp.eq.s32.totalorder %s23, 0
    %p367 = por %p365, %p366
    %p368 = scmp.ne.s32.totalorder %s357, %s360
    %p369 = scmp.eq.s32.totalorder %s28, 3
    %p370 = por %p368, %p369
    %p371 = scmp.ne.s32.totalorder %s360, %s361
    %p372 = scmp.eq.s32.totalorder %s28, 0
    %p373 = por %p371, %p372
    %p374 = scmp.ne.s32.totalorder %s360, %s361
    %p375 = scmp.eq.s32.totalorder %s29, 3
    %p376 = por %p374, %p375
    %p378 = scmp.ne.s32.totalorder %s361, %s377
    %p379 = scmp.eq.s32.totalorder %s29, 0
    %p380 = por %p378, %p379
    %s381 = ssub.s32 %s31, %s38
    %p382 = scmp.eq.s32.totalorder %s381, 0
    %s384 = sadd.s32 %s383, 1
    %s385 = scalar_select %p382, %s383, %s384
    %p388 = pneg %p382
    %p389 = scmp.eq.s32.totalorder %s23, 3
    %p390 = por %p388, %p389
    %p391 = scmp.ne.s32.totalorder %s383, %s386
    %p392 = scmp.eq.s32.totalorder %s23, 0
    %p393 = por %p391, %p392
    %p394 = scmp.ne.s32.totalorder %s383, %s386
    %p395 = scmp.eq.s32.totalorder %s28, 3
    %p396 = por %p394, %p395
    %p397 = scmp.ne.s32.totalorder %s386, %s387
    %p398 = scmp.eq.s32.totalorder %s28, 0
    %p399 = por %p397, %p398
    %p400 = scmp.ne.s32.totalorder %s386, %s387
    %p401 = scmp.eq.s32.totalorder %s29, 3
    %p402 = por %p400, %p401
    %p404 = scmp.ne.s32.totalorder %s387, %s403
    %p405 = scmp.eq.s32.totalorder %s29, 0
    %p406 = por %p404, %p405
    %s407 = ssub.s32 %s31, %s38
    %p408 = scmp.eq.s32.totalorder %s407, 0
    %s410 = sadd.s32 %s409, 1
    %s411 = scalar_select %p408, %s409, %s410
    %p414 = pneg %p408
    %p415 = scmp.eq.s32.totalorder %s23, 3
    %p416 = por %p414, %p415
    %p417 = scmp.ne.s32.totalorder %s409, %s412
    %p418 = scmp.eq.s32.totalorder %s23, 0
    %p419 = por %p417, %p418
    %p420 = scmp.ne.s32.totalorder %s409, %s412
    %p421 = scmp.eq.s32.totalorder %s28, 3
    %p422 = por %p420, %p421
    %p423 = scmp.ne.s32.totalorder %s412, %s413
    %p424 = scmp.eq.s32.totalorder %s28, 0
    %p425 = por %p423, %p424
    %p426 = scmp.ne.s32.totalorder %s412, %s413
    %p427 = scmp.eq.s32.totalorder %s29, 3
    %p428 = por %p426, %p427
    %p430 = scmp.ne.s32.totalorder %s413, %s429
    %p431 = scmp.eq.s32.totalorder %s29, 0
    %p432 = por %p430, %p431
    %s433 = ssub.s32 %s31, %s38
    %p434 = scmp.eq.s32.totalorder %s433, 0
    %s436 = sadd.s32 %s435, 1
    %s437 = scalar_select %p434, %s435, %s436
    %p440 = pneg %p434
    %p441 = scmp.eq.s32.totalorder %s23, 3
    %p442 = por %p440, %p441
    %p443 = scmp.ne.s32.totalorder %s435, %s438
    %p444 = scmp.eq.s32.totalorder %s23, 0
    %p445 = por %p443, %p444
    %p446 = scmp.ne.s32.totalorder %s435, %s438
    %p447 = scmp.eq.s32.totalorder %s28, 3
    %p448 = por %p446, %p447
    %p449 = scmp.ne.s32.totalorder %s438, %s439
    %p450 = scmp.eq.s32.totalorder %s28, 0
    %p451 = por %p449, %p450
    %p452 = scmp.ne.s32.totalorder %s438, %s439
    %p453 = scmp.eq.s32.totalorder %s29, 3
    %p454 = por %p452, %p453
    %p456 = scmp.ne.s32.totalorder %s439, %s455
    %p457 = scmp.eq.s32.totalorder %s29, 0
    %p458 = por %p456, %p457
    %s459 = ssub.s32 %s31, %s38
    %p460 = scmp.eq.s32.totalorder %s459, 0
    %s462 = sadd.s32 %s461, 1
    %s463 = scalar_select %p460, %s461, %s462
    %p466 = pneg %p460
    %p467 = scmp.eq.s32.totalorder %s23, 3
    %p468 = por %p466, %p467
    %p469 = scmp.ne.s32.totalorder %s461, %s464
    %p470 = scmp.eq.s32.totalorder %s23, 0
    %p471 = por %p469, %p470
    %p472 = scmp.ne.s32.totalorder %s461, %s464
    %p473 = scmp.eq.s32.totalorder %s28, 3
    %p474 = por %p472, %p473
    %p475 = scmp.ne.s32.totalorder %s464, %s465
    %p476 = scmp.eq.s32.totalorder %s28, 0
    %p477 = por %p475, %p476
    %p478 = scmp.ne.s32.totalorder %s464, %s465
    %p479 = scmp.eq.s32.totalorder %s29, 3
    %p480 = por %p478, %p479
    %p482 = scmp.ne.s32.totalorder %s465, %s481
    %p483 = scmp.eq.s32.totalorder %s29, 0
    %p484 = por %p482, %p483
    %s485 = ssub.s32 %s30, %s42
    %p486 = scmp.eq.s32.totalorder %s485, 0
    %s488 = sadd.s32 %s487, 1
    %s489 = scalar_select %p486, %s487, %s488
    %p492 = pneg %p486
    %p493 = scmp.eq.s32.totalorder %s23, 3
    %p494 = por %p492, %p493
    %p495 = scmp.ne.s32.totalorder %s487, %s490
    %p496 = scmp.eq.s32.totalorder %s23, 0
    %p497 = por %p495, %p496
    %p498 = scmp.ne.s32.totalorder %s487, %s490
    %p499 = scmp.eq.s32.totalorder %s28, 3
    %p500 = por %p498, %p499
    %p501 = scmp.ne.s32.totalorder %s490, %s491
    %p502 = scmp.eq.s32.totalorder %s28, 0
    %p503 = por %p501, %p502
    %p504 = scmp.ne.s32.totalorder %s490, %s491
    %p505 = scmp.eq.s32.totalorder %s29, 3
    %p506 = por %p504, %p505
    %p508 = scmp.ne.s32.totalorder %s491, %s507
    %p509 = scmp.eq.s32.totalorder %s29, 0
    %p510 = por %p508, %p509
    %p511 = scmp.le.s32.totalorder 1, %s23
    %p512 = scmp.lt.s32.totalorder %s23, 5
    %p513 = pnand %p511, %p512
    %p514 = pneg %p513
    // Predicated region
    $region9: #{_lambda_.4} parent=5 // pred_check
      _
    $region10: #{_lambda_.4} parent=5 // pred_check_branch
      %516 = sbr.rel (%p513) target = $region12
    $region11: #{_lambda_.4} parent=5 // pred_region
      %s517 = ssub.s32 %s23, 1
    $region12: #{_lambda_.4} parent=5 // pred_fallthru
      _
    %p518 = scmp.lt.s32.totalorder %s23, 4
    // Predicated region
    $region13: #{_lambda_.4} parent=5 // pred_check
      %p519 = pneg %p518
    $region14: #{_lambda_.4} parent=5 // pred_check_branch
      %521 = sbr.rel (%p519) target = $region16
    $region15: #{_lambda_.4} parent=5 // pred_region
      // Predicated region
      $region17: #{_lambda_.4} parent=15 // pred_check
        %p522 = pneg %p55
      $region18: #{_lambda_.4} parent=15 // pred_check_branch
        %524 = sbr.rel (%p522) target = $region20
      $region19: #{_lambda_.4} parent=15 // pred_region
        %s525 = smul.u32 3, %s30
        %p526 = scmp.lt.s32.totalorder %s525, 5
        %s527 = scalar_select %p526, %s525, 5
        %s528 = smul.addr %s527, 8
        %s529 = scalar_lea.vmem %s0, %s528
        %s530 = smul.u32 3, %s30
      $region20: #{_lambda_.4} parent=15 // pred_fallthru
        _
      // Predicated region
      $region21: #{_lambda_.4} parent=15 // pred_check
        %p531 = pneg %p81
      $region22: #{_lambda_.4} parent=15 // pred_check_branch
        %533 = sbr.rel (%p531) target = $region24
      $region23: #{_lambda_.4} parent=15 // pred_region
        %p534 = scmp.lt.s32.totalorder %s31, 1
        %s535 = scalar_select %p534, %s31, 1
        %s536 = scalar_lea.vmem %s1, %s535
      $region24: #{_lambda_.4} parent=15 // pred_fallthru
        _
      // Predicated region
      $region25: #{_lambda_.4} parent=15 // pred_check
        %p537 = pneg %p107
      $region26: #{_lambda_.4} parent=15 // pred_check_branch
        %539 = sbr.rel (%p537) target = $region28
      $region27: #{_lambda_.4} parent=15 // pred_region
        %p540 = scmp.lt.s32.totalorder %s31, 1
        %s541 = scalar_select %p540, %s31, 1
        %s542 = scalar_lea.vmem %s2, %s541
      $region28: #{_lambda_.4} parent=15 // pred_fallthru
        _
      // Predicated region
      $region29: #{_lambda_.4} parent=15 // pred_check
        %p543 = pneg %p133
      $region30: #{_lambda_.4} parent=15 // pred_check_branch
        %545 = sbr.rel (%p543) target = $region32
      $region31: #{_lambda_.4} parent=15 // pred_region
        %p546 = scmp.lt.s32.totalorder %s31, 1
        %s547 = scalar_select %p546, %s31, 1
        %s548 = smul.addr %s547, 8
        %s549 = smul.addr %s548, 4
        %s550 = scalar_lea.vmem %s3, %s549
      $region32: #{_lambda_.4} parent=15 // pred_fallthru
        _
      // Predicated region
      $region33: #{_lambda_.4} parent=15 // pred_check
        %p551 = pneg %p159
      $region34: #{_lambda_.4} parent=15 // pred_check_branch
        %553 = sbr.rel (%p551) target = $region36
      $region35: #{_lambda_.4} parent=15 // pred_region
        %p554 = scmp.lt.s32.totalorder %s31, 1
        %s555 = scalar_select %p554, %s31, 1
        %s556 = scalar_lea.vmem %s4, %s555
      $region36: #{_lambda_.4} parent=15 // pred_fallthru
        _
      // Predicated region
      $region37: #{_lambda_.4} parent=15 // pred_check
        %p557 = pneg %p185
      $region38: #{_lambda_.4} parent=15 // pred_check_branch
        %559 = sbr.rel (%p557) target = $region40
      $region39: #{_lambda_.4} parent=15 // pred_region
        %p560 = scmp.lt.s32.totalorder %s31, 1
        %s561 = scalar_select %p560, %s31, 1
        %s562 = smul.addr %s561, 8
        %s563 = smul.addr %s562, 4
        %s564 = scalar_lea.vmem %s5, %s563
      $region40: #{_lambda_.4} parent=15 // pred_fallthru
        _
      // Predicated region
      $region41: #{_lambda_.4} parent=15 // pred_check
        %p565 = pneg %p211
      $region42: #{_lambda_.4} parent=15 // pred_check_branch
        %567 = sbr.rel (%p565) target = $region44
      $region43: #{_lambda_.4} parent=15 // pred_region
        %p568 = scmp.lt.s32.totalorder %s31, 1
        %s569 = scalar_select %p568, %s31, 1
        %s570 = scalar_lea.vmem %s6, %s569
      $region44: #{_lambda_.4} parent=15 // pred_fallthru
        _
      // Predicated region
      $region45: #{_lambda_.4} parent=15 // pred_check
        %p571 = pneg %p237
      $region46: #{_lambda_.4} parent=15 // pred_check_branch
        %573 = sbr.rel (%p571) target = $region48
      $region47: #{_lambda_.4} parent=15 // pred_region
        %p574 = scmp.lt.s32.totalorder %s31, 1
        %s575 = scalar_select %p574, %s31, 1
        %s576 = smul.addr %s575, 8
        %s577 = smul.addr %s576, 4
        %s578 = scalar_lea.vmem %s7, %s577
      $region48: #{_lambda_.4} parent=15 // pred_fallthru
        _
      // Predicated region
      $region49: #{_lambda_.4} parent=15 // pred_check
        %p579 = pneg %p263
      $region50: #{_lambda_.4} parent=15 // pred_check_branch
        %581 = sbr.rel (%p579) target = $region52
      $region51: #{_lambda_.4} parent=15 // pred_region
        %p582 = scmp.lt.s32.totalorder %s31, 1
        %s583 = scalar_select %p582, %s31, 1
        %s584 = scalar_lea.vmem %s8, %s583
      $region52: #{_lambda_.4} parent=15 // pred_fallthru
        _
      // Predicated region
      $region53: #{_lambda_.4} parent=15 // pred_check
        %p585 = pneg %p289
      $region54: #{_lambda_.4} parent=15 // pred_check_branch
        %587 = sbr.rel (%p585) target = $region56
      $region55: #{_lambda_.4} parent=15 // pred_region
        %p588 = scmp.lt.s32.totalorder %s31, 1
        %s589 = scalar_select %p588, %s31, 1
        %s590 = smul.addr %s589, 8
        %s591 = smul.addr %s590, 4
        %s592 = scalar_lea.vmem %s9, %s591
      $region56: #{_lambda_.4} parent=15 // pred_fallthru
        _
      // Predicated region
      $region57: #{_lambda_.4} parent=15 // pred_check
        %p593 = pneg %p315
      $region58: #{_lambda_.4} parent=15 // pred_check_branch
        %595 = sbr.rel (%p593) target = $region60
      $region59: #{_lambda_.4} parent=15 // pred_region
        %p596 = scmp.lt.s32.totalorder %s31, 1
        %s597 = scalar_select %p596, %s31, 1
        %s598 = scalar_lea.vmem %s10, %s597
      $region60: #{_lambda_.4} parent=15 // pred_fallthru
        _
      // Predicated region
      $region61: #{_lambda_.4} parent=15 // pred_check
        %p599 = pneg %p341
      $region62: #{_lambda_.4} parent=15 // pred_check_branch
        %601 = sbr.rel (%p599) target = $region64
      $region63: #{_lambda_.4} parent=15 // pred_region
        %p602 = scmp.lt.s32.totalorder %s31, 1
        %s603 = scalar_select %p602, %s31, 1
        %s604 = scalar_lea.vmem %s11, %s603
      $region64: #{_lambda_.4} parent=15 // pred_fallthru
        _
      // Predicated region
      $region65: #{_lambda_.4} parent=15 // pred_check
        %p605 = pneg %p367
      $region66: #{_lambda_.4} parent=15 // pred_check_branch
        %607 = sbr.rel (%p605) target = $region68
      $region67: #{_lambda_.4} parent=15 // pred_region
        %p608 = scmp.lt.s32.totalorder %s31, 1
        %s609 = scalar_select %p608, %s31, 1
        %s610 = scalar_lea.vmem %s12, %s609
      $region68: #{_lambda_.4} parent=15 // pred_fallthru
        _
      // Predicated region
      $region69: #{_lambda_.4} parent=15 // pred_check
        %p611 = pneg %p393
      $region70: #{_lambda_.4} parent=15 // pred_check_branch
        %613 = sbr.rel (%p611) target = $region72
      $region71: #{_lambda_.4} parent=15 // pred_region
        %p614 = scmp.lt.s32.totalorder %s31, 1
        %s615 = scalar_select %p614, %s31, 1
        %s616 = smul.addr %s615, 16
        %s617 = smul.addr %s616, 4
        %s618 = scalar_lea.vmem %s13, %s617
      $region72: #{_lambda_.4} parent=15 // pred_fallthru
        _
      // Predicated region
      $region73: #{_lambda_.4} parent=15 // pred_check
        %p619 = pneg %p419
      $region74: #{_lambda_.4} parent=15 // pred_check_branch
        %621 = sbr.rel (%p619) target = $region76
      $region75: #{_lambda_.4} parent=15 // pred_region
        %p622 = scmp.lt.s32.totalorder %s31, 1
        %s623 = scalar_select %p622, %s31, 1
        %s624 = smul.addr %s623, 2
        %s625 = scalar_lea.vmem %s14, %s624
      $region76: #{_lambda_.4} parent=15 // pred_fallthru
        _
      // Predicated region
      $region77: #{_lambda_.4} parent=15 // pred_check
        %p626 = pneg %p445
      $region78: #{_lambda_.4} parent=15 // pred_check_branch
        %628 = sbr.rel (%p626) target = $region80
      $region79: #{_lambda_.4} parent=15 // pred_region
        %p629 = scmp.lt.s32.totalorder %s31, 1
        %s630 = scalar_select %p629, %s31, 1
        %s631 = smul.addr %s630, 32
        %s632 = smul.addr %s631, 4
        %s633 = scalar_lea.vmem %s15, %s632
      $region80: #{_lambda_.4} parent=15 // pred_fallthru
        _
      // Predicated region
      $region81: #{_lambda_.4} parent=15 // pred_check
        %p634 = pneg %p471
      $region82: #{_lambda_.4} parent=15 // pred_check_branch
        %636 = sbr.rel (%p634) target = $region84
      $region83: #{_lambda_.4} parent=15 // pred_region
        %p637 = scmp.lt.s32.totalorder %s31, 1
        %s638 = scalar_select %p637, %s31, 1
        %s639 = scalar_lea.vmem %s16, %s638
      $region84: #{_lambda_.4} parent=15 // pred_fallthru
        _
    $region16: #{_lambda_.4} parent=5 // pred_fallthru
      _
    %p640 = scmp.le.s32.totalorder 1, %s23
    %p641 = scmp.lt.s32.totalorder %s23, 5
    %p642 = pnand %p640, %p641
    %p643 = pneg %p642
    // Predicated region
    $region85: #{_lambda_.4} parent=5 // pred_check
      _
    $region86: #{_lambda_.4} parent=5 // pred_check_branch
      %645 = sbr.rel (%p642) target = $region88
    $region87: #{_lambda_.4} parent=5 // pred_region
      %s646 = ssub.s32 %s23, 1
      %s647 = smul.u32 3, %s32
      %p648 = scmp.lt.s32.totalorder %s647, 5
      %s649 = scalar_select %p648, %s647, 5
      %s650 = smul.addr %s649, 8
      %s651 = scalar_lea.vmem %s0, %s650
      %p652 = pneg %p61
      %p653 = pneg %p58
      %p654 = scmp.lt.s32.totalorder %s33, 1
      %s655 = scalar_select %p654, %s33, 1
      %s656 = scalar_lea.vmem %s1, %s655
      %p657 = pneg %p87
      %p658 = pneg %p84
      %p659 = scmp.lt.s32.totalorder %s33, 1
      %s660 = scalar_select %p659, %s33, 1
      %s661 = scalar_lea.vmem %s2, %s660
      %p662 = pneg %p113
      %p663 = pneg %p110
      %p664 = scmp.lt.s32.totalorder %s33, 1
      %s665 = scalar_select %p664, %s33, 1
      %s666 = smul.addr %s665, 8
      %s667 = smul.addr %s666, 4
      %s668 = scalar_lea.vmem %s3, %s667
      %p669 = pneg %p139
      %p670 = pneg %p136
      %p671 = scmp.lt.s32.totalorder %s33, 1
      %s672 = scalar_select %p671, %s33, 1
      %s673 = scalar_lea.vmem %s4, %s672
      %p674 = pneg %p165
      %p675 = pneg %p162
      %p676 = scmp.lt.s32.totalorder %s33, 1
      %s677 = scalar_select %p676, %s33, 1
      %s678 = smul.addr %s677, 8
      %s679 = smul.addr %s678, 4
      %s680 = scalar_lea.vmem %s5, %s679
      %p681 = pneg %p191
      %p682 = pneg %p188
      %p683 = scmp.lt.s32.totalorder %s33, 1
      %s684 = scalar_select %p683, %s33, 1
      %s685 = scalar_lea.vmem %s6, %s684
      %p686 = pneg %p217
      %p687 = pneg %p214
      %p688 = scmp.lt.s32.totalorder %s33, 1
      %s689 = scalar_select %p688, %s33, 1
      %s690 = smul.addr %s689, 8
      %s691 = smul.addr %s690, 4
      %s692 = scalar_lea.vmem %s7, %s691
      %p693 = pneg %p243
      %p694 = pneg %p240
      %p695 = scmp.lt.s32.totalorder %s33, 1
      %s696 = scalar_select %p695, %s33, 1
      %s697 = scalar_lea.vmem %s8, %s696
      %p698 = pneg %p269
      %p699 = pneg %p266
      %p700 = scmp.lt.s32.totalorder %s33, 1
      %s701 = scalar_select %p700, %s33, 1
      %s702 = smul.addr %s701, 8
      %s703 = smul.addr %s702, 4
      %s704 = scalar_lea.vmem %s9, %s703
      %p705 = pneg %p295
      %p706 = pneg %p292
      %p707 = scmp.lt.s32.totalorder %s33, 1
      %s708 = scalar_select %p707, %s33, 1
      %s709 = scalar_lea.vmem %s10, %s708
      %p710 = pneg %p321
      %p711 = pneg %p318
      %p712 = scmp.lt.s32.totalorder %s33, 1
      %s713 = scalar_select %p712, %s33, 1
      %s714 = scalar_lea.vmem %s11, %s713
      %p715 = pneg %p347
      %p716 = pneg %p344
      %p717 = scmp.lt.s32.totalorder %s33, 1
      %s718 = scalar_select %p717, %s33, 1
      %s719 = scalar_lea.vmem %s12, %s718
      %p720 = pneg %p373
      %p721 = pneg %p370
      %p722 = scmp.lt.s32.totalorder %s33, 1
      %s723 = scalar_select %p722, %s33, 1
      %s724 = smul.addr %s723, 16
      %s725 = smul.addr %s724, 4
      %s726 = scalar_lea.vmem %s13, %s725
      %p727 = pneg %p399
      %p728 = pneg %p396
      %p729 = scmp.lt.s32.totalorder %s33, 1
      %s730 = scalar_select %p729, %s33, 1
      %s731 = smul.addr %s730, 2
      %s732 = scalar_lea.vmem %s14, %s731
      %p733 = pneg %p425
      %p734 = pneg %p422
      %p735 = scmp.lt.s32.totalorder %s33, 1
      %s736 = scalar_select %p735, %s33, 1
      %s737 = smul.addr %s736, 32
      %s738 = smul.addr %s737, 4
      %s739 = scalar_lea.vmem %s15, %s738
      %p740 = pneg %p451
      %p741 = pneg %p448
      %p742 = scmp.lt.s32.totalorder %s33, 1
      %s743 = scalar_select %p742, %s33, 1
      %s744 = scalar_lea.vmem %s16, %s743
      %p745 = pneg %p477
      %p746 = pneg %p474
      %p747 = pneg %p503
      %p748 = pneg %p500
      %s749 = smul.u32 3, %s32
      %p750 = scmp.lt.s32.totalorder %s749, 5
      %s751 = scalar_select %p750, %s749, 5
      %s752 = smul.addr %s751, 8
      %s753 = scalar_lea.vmem %s17, %s752
      %s754 = smul.u32 3, %s32
      %p755 = scmp.lt.s32.totalorder %s754, 5
      %s756 = scalar_select %p755, %s754, 5
      %s757 = smul.addr %s756, 8
      %s758 = scalar_lea.vmem %s0, %s757
      %s759 = smul.u32 3, %s32
      %p760 = scmp.lt.s32.totalorder %s33, 1
      %s761 = scalar_select %p760, %s33, 1
      %s762 = scalar_lea.vmem %s1, %s761
      %p763 = scmp.lt.s32.totalorder %s33, 1
      %s764 = scalar_select %p763, %s33, 1
      %s765 = scalar_lea.vmem %s2, %s764
      %p766 = scmp.lt.s32.totalorder %s33, 1
      %s767 = scalar_select %p766, %s33, 1
      %s768 = smul.addr %s767, 8
      %s769 = smul.addr %s768, 4
      %s770 = scalar_lea.vmem %s3, %s769
      %p771 = scmp.lt.s32.totalorder %s33, 1
      %s772 = scalar_select %p771, %s33, 1
      %s773 = scalar_lea.vmem %s4, %s772
      %p774 = scmp.lt.s32.totalorder %s33, 1
      %s775 = scalar_select %p774, %s33, 1
      %s776 = smul.addr %s775, 8
      %s777 = smul.addr %s776, 4
      %s778 = scalar_lea.vmem %s5, %s777
      %p779 = scmp.lt.s32.totalorder %s33, 1
      %s780 = scalar_select %p779, %s33, 1
      %s781 = scalar_lea.vmem %s6, %s780
      %p782 = scmp.lt.s32.totalorder %s33, 1
      %s783 = scalar_select %p782, %s33, 1
      %s784 = smul.addr %s783, 8
      %s785 = smul.addr %s784, 4
      %s786 = scalar_lea.vmem %s7, %s785
      %p787 = scmp.lt.s32.totalorder %s33, 1
      %s788 = scalar_select %p787, %s33, 1
      %s789 = scalar_lea.vmem %s8, %s788
      %p790 = scmp.lt.s32.totalorder %s33, 1
      %s791 = scalar_select %p790, %s33, 1
      %s792 = smul.addr %s791, 8
      %s793 = smul.addr %s792, 4
      %s794 = scalar_lea.vmem %s9, %s793
      %p795 = scmp.lt.s32.totalorder %s33, 1
      %s796 = scalar_select %p795, %s33, 1
      %s797 = scalar_lea.vmem %s10, %s796
      %p798 = scmp.lt.s32.totalorder %s33, 1
      %s799 = scalar_select %p798, %s33, 1
      %s800 = scalar_lea.vmem %s11, %s799
      %p801 = scmp.lt.s32.totalorder %s33, 1
      %s802 = scalar_select %p801, %s33, 1
      %s803 = scalar_lea.vmem %s12, %s802
      %p804 = scmp.lt.s32.totalorder %s33, 1
      %s805 = scalar_select %p804, %s33, 1
      %s806 = smul.addr %s805, 16
      %s807 = smul.addr %s806, 4
      %s808 = scalar_lea.vmem %s13, %s807
      %p809 = scmp.lt.s32.totalorder %s33, 1
      %s810 = scalar_select %p809, %s33, 1
      %s811 = smul.addr %s810, 2
      %s812 = scalar_lea.vmem %s14, %s811
      %p813 = scmp.lt.s32.totalorder %s33, 1
      %s814 = scalar_select %p813, %s33, 1
      %s815 = smul.addr %s814, 32
      %s816 = smul.addr %s815, 4
      %s817 = scalar_lea.vmem %s15, %s816
      %p818 = scmp.lt.s32.totalorder %s33, 1
      %s819 = scalar_select %p818, %s33, 1
      %s820 = scalar_lea.vmem %s16, %s819
      %s821 = smul.u32 3, %s32
      %p822 = scmp.lt.s32.totalorder %s821, 5
      %s823 = scalar_select %p822, %s821, 5
      %s824 = smul.addr %s823, 8
      %s825 = scalar_lea.vmem %s17, %s824
      %s826 = smul.u32 3, %s32
      %p828 = scmp.eq.s32.totalorder %s33, 0
      // Predicated region
      $region89: #{_lambda_.4} parent=87 // pred_check
        %p829 = pneg %p828
      $region90: #{_lambda_.4} parent=87 // pred_check_branch
        %831 = sbr.rel (%p829) target = $region92
      $region91: #{_lambda_.4} parent=87 // pred_region
        %v832 = vld [vmem:[%s758] sm:$0xff]
        %v833 = vld [vmem:[%s758 + $0x8] sm:$0xff]
        %v834 = vld [vmem:[%s758 + $0x10] sm:$0xff]
        %vm835 = vcmask 523264
        %836 = vst.msk [vmem:[%s825] sm:$0xff] %vm835, %v832
        %837 = vst.msk [vmem:[%s825 + $0x8] sm:$0xff] %vm835, %v833
        %838 = vst.msk [vmem:[%s825 + $0x10] sm:$0xff] %vm835, %v834
      $region92: #{_lambda_.4} parent=87 // pred_fallthru
        _
      %v839 = vld [vmem:[%s825] sm:$0xff]
      %v840 = vld [vmem:[%s825 + $0x8] sm:$0xff]
      %v841 = vld [vmem:[%s825 + $0x10] sm:$0xff]
      %v842 = vld [vmem:[%s762] sm:$0x1]
      %v843 = vld [vmem:[%s765] sm:$0x1]
      %vm844 = vcmask 523264
      %v845 = vsel %vm844, %v839, 0.0
      %846 = vadd.xlane.f32.xlu0 %v845
      %v847 = vpop.xlane.xlu0 %846
      %v848 = vsel %vm844, %v840, 0.0
      %849 = vadd.xlane.f32.xlu0 %v848
      %v850 = vpop.xlane.xlu0 %849
      %v851 = vsel %vm844, %v841, 0.0
      %852 = vadd.xlane.f32.xlu0 %v851
      %v853 = vpop.xlane.xlu0 %852
      %v854 = vrcp.pop 64.0
      %v855 = vmul.f32 %v847, %v854
      %v856 = vmul.f32 %v850, %v854
      %v857 = vmul.f32 %v853, %v854
      %v858 = vmul.f32 %v839, %v839
      %v859 = vmul.f32 %v840, %v840
      %v860 = vmul.f32 %v841, %v841
      %v861 = vsel %vm844, %v858, 0.0
      %862 = vadd.xlane.f32.xlu0 %v861
      %v863 = vpop.xlane.xlu0 %862
      %v864 = vsel %vm844, %v859, 0.0
      %865 = vadd.xlane.f32.xlu0 %v864
      %v866 = vpop.xlane.xlu0 %865
      %v867 = vsel %vm844, %v860, 0.0
      %868 = vadd.xlane.f32.xlu0 %v867
      %v869 = vpop.xlane.xlu0 %868
      %v870 = vmul.f32 %v863, %v854
      %v871 = vmul.f32 %v866, %v854
      %v872 = vmul.f32 %v869, %v854
      %v873 = vmul.f32 %v855, %v855
      %v874 = vmul.f32 %v856, %v856
      %v875 = vmul.f32 %v857, %v857
      %v876 = vsub.f32 %v870, %v873
      %v877 = vsub.f32 %v871, %v874
      %v878 = vsub.f32 %v872, %v875
      %v879 = vmax.f32 %v876, 0.0
      %v880 = vmax.f32 %v877, 0.0
      %v881 = vmax.f32 %v878, 0.0
      %v882 = vsub.f32 %v839, %v855
      %v883 = vsub.f32 %v840, %v856
      %v884 = vsub.f32 %v841, %v857
      %v885 = vadd.f32 %v879, 1e-05
      %v886 = vadd.f32 %v880, 1e-05
      %v887 = vadd.f32 %v881, 1e-05
      %v888 = vrsqrt.pop %v885
      %v889 = vrsqrt.pop %v886
      %v890 = vrsqrt.pop %v887
      %v891 = vmul.f32 %v882, %v888
      %v892 = vmul.f32 %v883, %v889
      %v893 = vmul.f32 %v884, %v890
      %v895 = vlaneseq
      %v896 = vshrl.u32 %v895, 7
      %v897 = vsub.s32 0, %v896
      %v898 = vrot.slane %v842, %v897
      %v900 = vmul.f32 %v891, %v898
      %v901 = vmul.f32 %v892, %v898
      %v902 = vmul.f32 %v893, %v898
      %v904 = vlaneseq
      %v905 = vshrl.u32 %v904, 7
      %v906 = vsub.s32 0, %v905
      %v907 = vrot.slane %v843, %v906
      %v909 = vadd.f32 %v900, %v907
      %v910 = vadd.f32 %v901, %v907
      %v911 = vadd.f32 %v902, %v907
      %v912 = vpack.c.bf16 %v910, %v909
      %v913 = vpack.c.bf16 %v911, %v911
      %v914 = vld [vmem:[%s770] sm:$0xf]
      %v915 = vld [vmem:[%s770 + $0x4] sm:$0xf]
      %v916 = vld [vmem:[%s770 + $0x8] sm:$0xf]
      %v917 = vld [vmem:[%s770 + $0xc] sm:$0xf]
      %v918 = vld [vmem:[%s770 + $0x10] sm:$0xf]
      %v919 = vld [vmem:[%s770 + $0x14] sm:$0xf]
      %v920 = vld [vmem:[%s770 + $0x18] sm:$0xf]
      %v921 = vld [vmem:[%s770 + $0x1c] sm:$0xf]
      %v922 = vld [vmem:[%s773] sm:$0x1]
      %v924 = vlaneseq
      %v925 = vshrl.u32 %v924, 7
      %v926 = vsub.s32 0, %v925
      %v927 = vrot.slane %v922, %v926
      %v937 = vunpack.c.l.b16 %v914
      %v938 = vunpack.c.l.b16 %v915
      %v939 = vunpack.c.l.b16 %v916
      %v940 = vunpack.c.l.b16 %v917
      %v941 = vunpack.c.l.b16 %v918
      %v942 = vunpack.c.l.b16 %v919
      %v943 = vunpack.c.l.b16 %v920
      %v944 = vunpack.c.l.b16 %v921
      %v945 = vpack.c.b16 %v938, %v937
      %v946 = vpack.c.b16 %v940, %v939
      %v947 = vpack.c.b16 %v942, %v941
      %v948 = vpack.c.b16 %v944, %v943
      %v954 = vsel %vm844, %v912, 0
      %v957 = vsel %vm844, %v913, 0
      %959 = vmatprep.subr.bf16.mxu0 0
      %960 = vmatpush1.bf16.msra.mxu0 %v945
      %961 = vmatprep.subr.bf16.mxu0 0
      %962 = vmatpush1.bf16.msra.mxu0 %v946
      %963 = vmatprep.subr.bf16.mxu0 0
      %964 = vmatpush1.bf16.msra.mxu0 %v947
      %965 = vmatprep.subr.bf16.mxu0 0
      %966 = vmatpush1.bf16.msra.mxu0 %v948
      %967 = vmatprep.subr.bf16.mxu0 0
      %968 = vmatpush1.bf16.msra.mxu0 0
      %969 = vmatprep.subr.bf16.mxu0 0
      %970 = vmatpush1.bf16.msra.mxu0 0
      %971 = vmatprep.subr.bf16.mxu0 0
      %972 = vmatpush1.bf16.msra.mxu0 0
      %973 = vmatprep.subr.bf16.mxu0 0
      %974 = vmatpush1.bf16.msra.mxu0 0
      %975 = vmatprep.subr.bf16.mxu0 0
      %976 = vmatpush1.bf16.msra.mxu0 0
      %977 = vmatprep.subr.bf16.mxu0 0
      %978 = vmatpush1.bf16.msra.mxu0 0
      %979 = vmatprep.subr.bf16.mxu0 0
      %980 = vmatpush1.bf16.msra.mxu0 0
      %981 = vmatprep.subr.bf16.mxu0 0
      %982 = vmatpush1.bf16.msra.mxu0 0
      %983 = vmatprep.subr.bf16.mxu0 0
      %984 = vmatpush1.bf16.msra.mxu0 0
      %985 = vmatprep.subr.bf16.mxu0 0
      %986 = vmatpush1.bf16.msra.mxu0 0
      %987 = vmatprep.subr.bf16.mxu0 0
      %988 = vmatpush1.bf16.msra.mxu0 0
      %989 = vmatprep.subr.bf16.mxu0 0
      %990 = vmatpush1.bf16.msra.mxu0 0
      %991 = vmatprep.mubr.bf16.mxu0 0
      %992 = vmatmul.mubr.bf16.gmra.mrb[0].mxu0 %v954
      %v993 = vpop.f32.mrb[0].mxu0
      %v994 = vadd.f32 %v927, %v993
      %v995 = vpop.f32.mrb[0].mxu0
      %v996 = vpop.f32.mrb[0].mxu0
      %v997 = vadd.f32 %v927, %v996
      %v998 = vpop.f32.mrb[0].mxu0
      %999 = vmatprep.mubr.bf16.mxu0 0
      %1000 = vmatmul.mubr.bf16.gmra.mrb[0].mxu0 %v957
      %v1001 = vpop.f32.mrb[0].mxu0
      %v1002 = vadd.f32 %v927, %v1001
      %v1003 = vpop.f32.mrb[0].mxu0
      %v1004 = vpop.f32.mrb[0].mxu0
      %v1005 = vpop.f32.mrb[0].mxu0
      %1006 = vdwg.mxu0
      %v1007 = vld [vmem:[%s778] sm:$0xf]
      %v1008 = vld [vmem:[%s778 + $0x4] sm:$0xf]
      %v1009 = vld [vmem:[%s778 + $0x8] sm:$0xf]
      %v1010 = vld [vmem:[%s778 + $0xc] sm:$0xf]
      %v1011 = vld [vmem:[%s778 + $0x10] sm:$0xf]
      %v1012 = vld [vmem:[%s778 + $0x14] sm:$0xf]
      %v1013 = vld [vmem:[%s778 + $0x18] sm:$0xf]
      %v1014 = vld [vmem:[%s778 + $0x1c] sm:$0xf]
      %v1015 = vld [vmem:[%s781] sm:$0x1]
      %v1017 = vlaneseq
      %v1018 = vshrl.u32 %v1017, 7
      %v1019 = vsub.s32 0, %v1018
      %v1020 = vrot.slane %v1015, %v1019
      %v1030 = vunpack.c.l.b16 %v1007
      %v1031 = vunpack.c.l.b16 %v1008
      %v1032 = vunpack.c.l.b16 %v1009
      %v1033 = vunpack.c.l.b16 %v1010
      %v1034 = vunpack.c.l.b16 %v1011
      %v1035 = vunpack.c.l.b16 %v1012
      %v1036 = vunpack.c.l.b16 %v1013
      %v1037 = vunpack.c.l.b16 %v1014
      %v1038 = vpack.c.b16 %v1031, %v1030
      %v1039 = vpack.c.b16 %v1033, %v1032
      %v1040 = vpack.c.b16 %v1035, %v1034
      %v1041 = vpack.c.b16 %v1037, %v1036
      %1046 = vmatprep.subr.bf16.mxu0 0
      %1047 = vmatpush1.bf16.msra.mxu0 %v1038
      %1048 = vmatprep.subr.bf16.mxu0 0
      %1049 = vmatpush1.bf16.msra.mxu0 %v1039
      %1050 = vmatprep.subr.bf16.mxu0 0
      %1051 = vmatpush1.bf16.msra.mxu0 %v1040
      %1052 = vmatprep.subr.bf16.mxu0 0
      %1053 = vmatpush1.bf16.msra.mxu0 %v1041
      %1054 = vmatprep.subr.bf16.mxu0 0
      %1055 = vmatpush1.bf16.msra.mxu0 0
      %1056 = vmatprep.subr.bf16.mxu0 0
      %1057 = vmatpush1.bf16.msra.mxu0 0
      %1058 = vmatprep.subr.bf16.mxu0 0
      %1059 = vmatpush1.bf16.msra.mxu0 0
      %1060 = vmatprep.subr.bf16.mxu0 0
      %1061 = vmatpush1.bf16.msra.mxu0 0
      %1062 = vmatprep.subr.bf16.mxu0 0
      %1063 = vmatpush1.bf16.msra.mxu0 0
      %1064 = vmatprep.subr.bf16.mxu0 0
      %1065 = vmatpush1.bf16.msra.mxu0 0
      %1066 = vmatprep.subr.bf16.mxu0 0
      %1067 = vmatpush1.bf16.msra.mxu0 0
      %1068 = vmatprep.subr.bf16.mxu0 0
      %1069 = vmatpush1.bf16.msra.mxu0 0
      %1070 = vmatprep.subr.bf16.mxu0 0
      %1071 = vmatpush1.bf16.msra.mxu0 0
      %1072 = vmatprep.subr.bf16.mxu0 0
      %1073 = vmatpush1.bf16.msra.mxu0 0
      %1074 = vmatprep.subr.bf16.mxu0 0
      %1075 = vmatpush1.bf16.msra.mxu0 0
      %1076 = vmatprep.subr.bf16.mxu0 0
      %1077 = vmatpush1.bf16.msra.mxu0 0
      %1078 = vmatprep.mubr.bf16.mxu0 0
      %1079 = vmatmul.mubr.bf16.gmra.mrb[0].mxu0 %v954
      %v1080 = vpop.f32.mrb[0].mxu0
      %v1081 = vadd.f32 %v1020, %v1080
      %v1082 = vpop.f32.mrb[0].mxu0
      %v1083 = vpop.f32.mrb[0].mxu0
      %v1084 = vadd.f32 %v1020, %v1083
      %v1085 = vpop.f32.mrb[0].mxu0
      %1086 = vmatprep.mubr.bf16.mxu0 0
      %1087 = vmatmul.mubr.bf16.gmra.mrb[0].mxu0 %v957
      %v1088 = vpop.f32.mrb[0].mxu0
      %v1089 = vadd.f32 %v1020, %v1088
      %v1090 = vpop.f32.mrb[0].mxu0
      %v1091 = vpop.f32.mrb[0].mxu0
      %v1092 = vpop.f32.mrb[0].mxu0
      %1093 = vdwg.mxu0
      %v1094 = vld [vmem:[%s786] sm:$0xf]
      %v1095 = vld [vmem:[%s786 + $0x4] sm:$0xf]
      %v1096 = vld [vmem:[%s786 + $0x8] sm:$0xf]
      %v1097 = vld [vmem:[%s786 + $0xc] sm:$0xf]
      %v1098 = vld [vmem:[%s786 + $0x10] sm:$0xf]
      %v1099 = vld [vmem:[%s786 + $0x14] sm:$0xf]
      %v1100 = vld [vmem:[%s786 + $0x18] sm:$0xf]
      %v1101 = vld [vmem:[%s786 + $0x1c] sm:$0xf]
      %v1102 = vld [vmem:[%s789] sm:$0x1]
      %v1104 = vlaneseq
      %v1105 = vshrl.u32 %v1104, 7
      %v1106 = vsub.s32 0, %v1105
      %v1107 = vrot.slane %v1102, %v1106
      %v1117 = vunpack.c.l.b16 %v1094
      %v1118 = vunpack.c.l.b16 %v1095
      %v1119 = vunpack.c.l.b16 %v1096
      %v1120 = vunpack.c.l.b16 %v1097
      %v1121 = vunpack.c.l.b16 %v1098
      %v1122 = vunpack.c.l.b16 %v1099
      %v1123 = vunpack.c.l.b16 %v1100
      %v1124 = vunpack.c.l.b16 %v1101
      %v1125 = vpack.c.b16 %v1118, %v1117
      %v1126 = vpack.c.b16 %v1120, %v1119
      %v1127 = vpack.c.b16 %v1122, %v1121
      %v1128 = vpack.c.b16 %v1124, %v1123
      %1133 = vmatprep.subr.bf16.mxu0 0
      %1134 = vmatpush1.bf16.msra.mxu0 %v1125
      %1135 = vmatprep.subr.bf16.mxu0 0
      %1136 = vmatpush1.bf16.msra.mxu0 %v1126
      %1137 = vmatprep.subr.bf16.mxu0 0
      %1138 = vmatpush1.bf16.msra.mxu0 %v1127
      %1139 = vmatprep.subr.bf16.mxu0 0
      %1140 = vmatpush1.bf16.msra.mxu0 %v1128
      %1141 = vmatprep.subr.bf16.mxu0 0
      %1142 = vmatpush1.bf16.msra.mxu0 0
      %1143 = vmatprep.subr.bf16.mxu0 0
      %1144 = vmatpush1.bf16.msra.mxu0 0
      %1145 = vmatprep.subr.bf16.mxu0 0
      %1146 = vmatpush1.bf16.msra.mxu0 0
      %1147 = vmatprep.subr.bf16.mxu0 0
      %1148 = vmatpush1.bf16.msra.mxu0 0
      %1149 = vmatprep.subr.bf16.mxu0 0
      %1150 = vmatpush1.bf16.msra.mxu0 0
      %1151 = vmatprep.subr.bf16.mxu0 0
      %1152 = vmatpush1.bf16.msra.mxu0 0
      %1153 = vmatprep.subr.bf16.mxu0 0
      %1154 = vmatpush1.bf16.msra.mxu0 0
      %1155 = vmatprep.subr.bf16.mxu0 0
      %1156 = vmatpush1.bf16.msra.mxu0 0
      %1157 = vmatprep.subr.bf16.mxu0 0
      %1158 = vmatpush1.bf16.msra.mxu0 0
      %1159 = vmatprep.subr.bf16.mxu0 0
      %1160 = vmatpush1.bf16.msra.mxu0 0
      %1161 = vmatprep.subr.bf16.mxu0 0
      %1162 = vmatpush1.bf16.msra.mxu0 0
      %1163 = vmatprep.subr.bf16.mxu0 0
      %1164 = vmatpush1.bf16.msra.mxu0 0
      %1165 = vmatprep.mubr.bf16.mxu0 0
      %1166 = vmatmul.mubr.bf16.gmra.mrb[0].mxu0 %v954
      %v1167 = vpop.f32.mrb[0].mxu0
      %v1168 = vadd.f32 %v1107, %v1167
      %v1169 = vpop.f32.mrb[0].mxu0
      %v1170 = vpop.f32.mrb[0].mxu0
      %v1171 = vadd.f32 %v1107, %v1170
      %v1172 = vpop.f32.mrb[0].mxu0
      %1173 = vmatprep.mubr.bf16.mxu0 0
      %1174 = vmatmul.mubr.bf16.gmra.mrb[0].mxu0 %v957
      %v1175 = vpop.f32.mrb[0].mxu0
      %v1176 = vadd.f32 %v1107, %v1175
      %v1177 = vpop.f32.mrb[0].mxu0
      %v1178 = vpop.f32.mrb[0].mxu0
      %v1179 = vpop.f32.mrb[0].mxu0
      %1180 = vdwg.mxu0
      %v1181 = vpack.c.bf16 %v997, %v994
      %v1182 = vpack.c.bf16 %v1002, %v1002
      %v1183 = vpack.c.bf16 %v1084, %v1081
      %v1184 = vpack.c.bf16 %v1089, %v1089
      %v1185 = vpack.c.bf16 %v1171, %v1168
      %v1186 = vpack.c.bf16 %v1176, %v1176
      %vm1187 = vcmask 130048
      %v1189 = vsel %vm1187, %v1181, 0
      %v1192 = vsel %vm1187, %v1182, 0
      %v1195 = vsel %vm1187, %v1183, 0
      %v1198 = vsel %vm1187, %v1184, 0
      %1200 = vmatprep.subr.bf16.mxu0 0
      %1201 = vmatpush1.bf16.xpose.msra.mxu0 %v1195
      %1202 = vmatprep.subr.bf16.mxu0 0
      %1203 = vmatpush1.bf16.xpose.msra.mxu0 %v1198
      %1204 = vmatprep.subr.bf16.mxu0 0
      %1205 = vmatpush1.bf16.xpose.msra.mxu0 0
      %1206 = vmatprep.subr.bf16.mxu0 0
      %1207 = vmatpush1.bf16.xpose.msra.mxu0 0
      %1208 = vmatprep.subr.bf16.mxu0 0
      %1209 = vmatpush1.bf16.xpose.msra.mxu0 0
      %1210 = vmatprep.subr.bf16.mxu0 0
      %1211 = vmatpush1.bf16.xpose.msra.mxu0 0
      %1212 = vmatprep.subr.bf16.mxu0 0
      %1213 = vmatpush1.bf16.xpose.msra.mxu0 0
      %1214 = vmatprep.subr.bf16.mxu0 0
      %1215 = vmatpush1.bf16.xpose.msra.mxu0 0
      %1216 = vmatprep.subr.bf16.mxu0 0
      %1217 = vmatpush1.bf16.xpose.msra.mxu0 0
      %1218 = vmatprep.subr.bf16.mxu0 0
      %1219 = vmatpush1.bf16.xpose.msra.mxu0 0
      %1220 = vmatprep.subr.bf16.mxu0 0
      %1221 = vmatpush1.bf16.xpose.msra.mxu0 0
      %1222 = vmatprep.subr.bf16.mxu0 0
      %1223 = vmatpush1.bf16.xpose.msra.mxu0 0
      %1224 = vmatprep.subr.bf16.mxu0 0
      %1225 = vmatpush1.bf16.xpose.msra.mxu0 0
      %1226 = vmatprep.subr.bf16.mxu0 0
      %1227 = vmatpush1.bf16.xpose.msra.mxu0 0
      %1228 = vmatprep.subr.bf16.mxu0 0
      %1229 = vmatpush1.bf16.xpose.msra.mxu0 0
      %1230 = vmatprep.subr.bf16.mxu0 0
      %1231 = vmatpush1.bf16.xpose.msra.mxu0 0
      %1232 = vmatprep.mubr.bf16.mxu0 0
      %1233 = vmatmul.mubr.bf16.gmra.mrb[0].mxu0 %v1189
      %v1234 = vpop.f32.mrb[0].mxu0
      %v1235 = vadd.f32 0.0, %v1234
      %v1236 = vpop.f32.mrb[0].mxu0
      %v1237 = vpop.f32.mrb[0].mxu0
      %v1238 = vadd.f32 0.0, %v1237
      %v1239 = vpop.f32.mrb[0].mxu0
      %1240 = vmatprep.mubr.bf16.mxu0 0
      %1241 = vmatmul.mubr.bf16.gmra.mrb[0].mxu0 %v1192
      %v1242 = vpop.f32.mrb[0].mxu0
      %v1243 = vadd.f32 0.0, %v1242
      %v1244 = vpop.f32.mrb[0].mxu0
      %v1245 = vpop.f32.mrb[0].mxu0
      %v1246 = vpop.f32.mrb[0].mxu0
      %1247 = vdwg.mxu0
      %v1248 = vmul.f32 %v1235, 0.25
      %v1249 = vmul.f32 %v1238, 0.25
      %v1250 = vmul.f32 %v1243, 0.25
      %v1251 = vlaneseq
      %v1252 = vand.u32 %v1251, 127
      %vm1253 = vcmp.lt.s32.totalorder %v1252, 17
      %v1254 = vsel %vm1253, 1, 0
      %vm1255 = vcmp.eq.s32.totalorder %v1254, 1
      %v1256 = vsel %vm1255, %v1248, -1e+30
      %v1257 = vsel %vm1255, %v1249, -1e+30
      %v1258 = vsel %vm1255, %v1250, -1e+30
      %vm1259 = vcmask 195584
      %v1260 = vsel %vm1259, %v1256, -inf
      %1261 = vmax.xlane.f32.xlu0 %v1260
      %v1262 = vpop.xlane.xlu0 %1261
      %v1263 = vsel %vm1259, %v1257, -inf
      %1264 = vmax.xlane.f32.xlu0 %v1263
      %v1265 = vpop.xlane.xlu0 %1264
      %v1266 = vsel %vm1259, %v1258, -inf
      %1267 = vmax.xlane.f32.xlu0 %v1266
      %v1268 = vpop.xlane.xlu0 %1267
      %v1269 = vsub.f32 %v1256, %v1262
      %v1270 = vsub.f32 %v1257, %v1265
      %v1271 = vsub.f32 %v1258, %v1268
      %v1272 = vmul.f32 %v1269, 1.442695
      %v1273 = vpow.pop %v1272
      %v1274 = vmul.f32 %v1270, 1.442695
      %v1275 = vpow.pop %v1274
      %v1276 = vmul.f32 %v1271, 1.442695
      %v1277 = vpow.pop %v1276
      %v1278 = vsel %vm1259, %v1273, 0.0
      %1279 = vadd.xlane.f32.xlu0 %v1278
      %v1280 = vpop.xlane.xlu0 %1279
      %v1281 = vsel %vm1259, %v1275, 0.0
      %1282 = vadd.xlane.f32.xlu0 %v1281
      %v1283 = vpop.xlane.xlu0 %1282
      %v1284 = vsel %vm1259, %v1277, 0.0
      %1285 = vadd.xlane.f32.xlu0 %v1284
      %v1286 = vpop.xlane.xlu0 %1285
      %v1287 = vrcp.pop %v1280
      %v1288 = vrcp.pop %v1283
      %v1289 = vrcp.pop %v1286
      %v1290 = vmul.f32 %v1273, %v1287
      %v1291 = vmul.f32 %v1275, %v1288
      %v1292 = vmul.f32 %v1277, %v1289
      %v1293 = vpack.c.bf16 %v1291, %v1290
      %v1294 = vpack.c.bf16 %v1292, %v1292
      %v1296 = vsel %vm1259, %v1293, 0
      %v1299 = vsel %vm1259, %v1294, 0
      %vm1301 = vcmask 1043456
      %v1303 = vsel %vm1301, %v1186, 0
      %1305 = vmatprep.subr.bf16.mxu0 0
      %1306 = vmatpush1.bf16.msra.mxu0 %v1185
      %1307 = vmatprep.subr.bf16.mxu0 0
      %1308 = vmatpush1.bf16.msra.mxu0 %v1303
      %1309 = vmatprep.subr.bf16.mxu0 0
      %1310 = vmatpush1.bf16.msra.mxu0 0
      %1311 = vmatprep.subr.bf16.mxu0 0
      %1312 = vmatpush1.bf16.msra.mxu0 0
      %1313 = vmatprep.subr.bf16.mxu0 0
      %1314 = vmatpush1.bf16.msra.mxu0 0
      %1315 = vmatprep.subr.bf16.mxu0 0
      %1316 = vmatpush1.bf16.msra.mxu0 0
      %1317 = vmatprep.subr.bf16.mxu0 0
      %1318 = vmatpush1.bf16.msra.mxu0 0
      %1319 = vmatprep.subr.bf16.mxu0 0
      %1320 = vmatpush1.bf16.msra.mxu0 0
      %1321 = vmatprep.subr.bf16.mxu0 0
      %1322 = vmatpush1.bf16.msra.mxu0 0
      %1323 = vmatprep.subr.bf16.mxu0 0
      %1324 = vmatpush1.bf16.msra.mxu0 0
      %1325 = vmatprep.subr.bf16.mxu0 0
      %1326 = vmatpush1.bf16.msra.mxu0 0
      %1327 = vmatprep.subr.bf16.mxu0 0
      %1328 = vmatpush1.bf16.msra.mxu0 0
      %1329 = vmatprep.subr.bf16.mxu0 0
      %1330 = vmatpush1.bf16.msra.mxu0 0
      %1331 = vmatprep.subr.bf16.mxu0 0
      %1332 = vmatpush1.bf16.msra.mxu0 0
      %1333 = vmatprep.subr.bf16.mxu0 0
      %1334 = vmatpush1.bf16.msra.mxu0 0
      %1335 = vmatprep.subr.bf16.mxu0 0
      %1336 = vmatpush1.bf16.msra.mxu0 0
      %1337 = vmatprep.mubr.bf16.mxu0 0
      %1338 = vmatmul.mubr.bf16.gmra.mrb[0].mxu0 %v1296
      %v1339 = vpop.f32.mrb[0].mxu0
      %v1340 = vadd.f32 0.0, %v1339
      %v1341 = vpop.f32.mrb[0].mxu0
      %v1342 = vpop.f32.mrb[0].mxu0
      %v1343 = vadd.f32 0.0, %v1342
      %v1344 = vpop.f32.mrb[0].mxu0
      %1345 = vmatprep.mubr.bf16.mxu0 0
      %1346 = vmatmul.mubr.bf16.gmra.mrb[0].mxu0 %v1299
      %v1347 = vpop.f32.mrb[0].mxu0
      %v1348 = vadd.f32 0.0, %v1347
      %v1349 = vpop.f32.mrb[0].mxu0
      %v1350 = vpop.f32.mrb[0].mxu0
      %v1351 = vpop.f32.mrb[0].mxu0
      %1352 = vdwg.mxu0
      %1355 = vrot.lane.b32.xlu0 %v1181, 112
      %v1356 = vpop.permute.xlu0 %1355
      %1357 = vrot.lane.b32.xlu0 %v1182, 112
      %v1358 = vpop.permute.xlu0 %1357
      %1361 = vrot.lane.b32.xlu0 %v1183, 112
      %v1362 = vpop.permute.xlu0 %1361
      %1363 = vrot.lane.b32.xlu0 %v1184, 112
      %v1364 = vpop.permute.xlu0 %1363
      %v1366 = vsel %vm1187, %v1356, 0
      %v1369 = vsel %vm1187, %v1358, 0
      %v1372 = vsel %vm1187, %v1362, 0
      %v1375 = vsel %vm1187, %v1364, 0
      %1377 = vmatprep.subr.bf16.mxu0 0
      %1378 = vmatpush1.bf16.xpose.msra.mxu0 %v1372
      %1379 = vmatprep.subr.bf16.mxu0 0
      %1380 = vmatpush1.bf16.xpose.msra.mxu0 %v1375
      %1381 = vmatprep.subr.bf16.mxu0 0
      %1382 = vmatpush1.bf16.xpose.msra.mxu0 0
      %1383 = vmatprep.subr.bf16.mxu0 0
      %1384 = vmatpush1.bf16.xpose.msra.mxu0 0
      %1385 = vmatprep.subr.bf16.mxu0 0
      %1386 = vmatpush1.bf16.xpose.msra.mxu0 0
      %1387 = vmatprep.subr.bf16.mxu0 0
      %1388 = vmatpush1.bf16.xpose.msra.mxu0 0
      %1389 = vmatprep.subr.bf16.mxu0 0
      %1390 = vmatpush1.bf16.xpose.msra.mxu0 0
      %1391 = vmatprep.subr.bf16.mxu0 0
      %1392 = vmatpush1.bf16.xpose.msra.mxu0 0
      %1393 = vmatprep.subr.bf16.mxu0 0
      %1394 = vmatpush1.bf16.xpose.msra.mxu0 0
      %1395 = vmatprep.subr.bf16.mxu0 0
      %1396 = vmatpush1.bf16.xpose.msra.mxu0 0
      %1397 = vmatprep.subr.bf16.mxu0 0
      %1398 = vmatpush1.bf16.xpose.msra.mxu0 0
      %1399 = vmatprep.subr.bf16.mxu0 0
      %1400 = vmatpush1.bf16.xpose.msra.mxu0 0
      %1401 = vmatprep.subr.bf16.mxu0 0
      %1402 = vmatpush1.bf16.xpose.msra.mxu0 0
      %1403 = vmatprep.subr.bf16.mxu0 0
      %1404 = vmatpush1.bf16.xpose.msra.mxu0 0
      %1405 = vmatprep.subr.bf16.mxu0 0
      %1406 = vmatpush1.bf16.xpose.msra.mxu0 0
      %1407 = vmatprep.subr.bf16.mxu0 0
      %1408 = vmatpush1.bf16.xpose.msra.mxu0 0
      %1409 = vmatprep.mubr.bf16.mxu0 0
      %1410 = vmatmul.mubr.bf16.gmra.mrb[0].mxu0 %v1366
      %v1411 = vpop.f32.mrb[0].mxu0
      %v1412 = vadd.f32 0.0, %v1411
      %v1413 = vpop.f32.mrb[0].mxu0
      %v1414 = vpop.f32.mrb[0].mxu0
      %v1415 = vadd.f32 0.0, %v1414
      %v1416 = vpop.f32.mrb[0].mxu0
      %1417 = vmatprep.mubr.bf16.mxu0 0
      %1418 = vmatmul.mubr.bf16.gmra.mrb[0].mxu0 %v1369
      %v1419 = vpop.f32.mrb[0].mxu0
      %v1420 = vadd.f32 0.0, %v1419
      %v1421 = vpop.f32.mrb[0].mxu0
      %v1422 = vpop.f32.mrb[0].mxu0
      %v1423 = vpop.f32.mrb[0].mxu0
      %1424 = vdwg.mxu0
      %v1425 = vmul.f32 %v1412, 0.25
      %v1426 = vmul.f32 %v1415, 0.25
      %v1427 = vmul.f32 %v1420, 0.25
      %v1428 = vsel %vm1255, %v1425, -1e+30
      %v1429 = vsel %vm1255, %v1426, -1e+30
      %v1430 = vsel %vm1255, %v1427, -1e+30
      %v1431 = vsel %vm1259, %v1428, -inf
      %1432 = vmax.xlane.f32.xlu0 %v1431
      %v1433 = vpop.xlane.xlu0 %1432
      %v1434 = vsel %vm1259, %v1429, -inf
      %1435 = vmax.xlane.f32.xlu0 %v1434
      %v1436 = vpop.xlane.xlu0 %1435
      %v1437 = vsel %vm1259, %v1430, -inf
      %1438 = vmax.xlane.f32.xlu0 %v1437
      %v1439 = vpop.xlane.xlu0 %1438
      %v1440 = vsub.f32 %v1428, %v1433
      %v1441 = vsub.f32 %v1429, %v1436
      %v1442 = vsub.f32 %v1430, %v1439
      %v1443 = vmul.f32 %v1440, 1.442695
      %v1444 = vpow.pop %v1443
      %v1445 = vmul.f32 %v1441, 1.442695
      %v1446 = vpow.pop %v1445
      %v1447 = vmul.f32 %v1442, 1.442695
      %v1448 = vpow.pop %v1447
      %v1449 = vsel %vm1259, %v1444, 0.0
      %1450 = vadd.xlane.f32.xlu0 %v1449
      %v1451 = vpop.xlane.xlu0 %1450
      %v1452 = vsel %vm1259, %v1446, 0.0
      %1453 = vadd.xlane.f32.xlu0 %v1452
      %v1454 = vpop.xlane.xlu0 %1453
      %v1455 = vsel %vm1259, %v1448, 0.0
      %1456 = vadd.xlane.f32.xlu0 %v1455
      %v1457 = vpop.xlane.xlu0 %1456
      %v1458 = vrcp.pop %v1451
      %v1459 = vrcp.pop %v1454
      %v1460 = vrcp.pop %v1457
      %v1461 = vmul.f32 %v1444, %v1458
      %v1462 = vmul.f32 %v1446, %v1459
      %v1463 = vmul.f32 %v1448, %v1460
      %v1464 = vpack.c.bf16 %v1462, %v1461
      %v1465 = vpack.c.bf16 %v1463, %v1463
      %1468 = vrot.lane.b32.xlu0 %v1185, 112
      %v1469 = vpop.permute.xlu0 %1468
      %1470 = vrot.lane.b32.xlu0 %v1186, 112
      %v1471 = vpop.permute.xlu0 %1470
      %v1474 = vsel %vm1259, %v1464, 0
      %v1477 = vsel %vm1259, %v1465, 0
      %v1480 = vsel %vm1301, %v1471, 0
      %1482 = vmatprep.subr.bf16.mxu0 0
      %1483 = vmatpush1.bf16.msra.mxu0 %v1469
      %1484 = vmatprep.subr.bf16.mxu0 0
      %1485 = vmatpush1.bf16.msra.mxu0 %v1480
      %1486 = vmatprep.subr.bf16.mxu0 0
      %1487 = vmatpush1.bf16.msra.mxu0 0
      %1488 = vmatprep.subr.bf16.mxu0 0
      %1489 = vmatpush1.bf16.msra.mxu0 0
      %1490 = vmatprep.subr.bf16.mxu0 0
      %1491 = vmatpush1.bf16.msra.mxu0 0
      %1492 = vmatprep.subr.bf16.mxu0 0
      %1493 = vmatpush1.bf16.msra.mxu0 0
      %1494 = vmatprep.subr.bf16.mxu0 0
      %1495 = vmatpush1.bf16.msra.mxu0 0
      %1496 = vmatprep.subr.bf16.mxu0 0
      %1497 = vmatpush1.bf16.msra.mxu0 0
      %1498 = vmatprep.subr.bf16.mxu0 0
      %1499 = vmatpush1.bf16.msra.mxu0 0
      %1500 = vmatprep.subr.bf16.mxu0 0
      %1501 = vmatpush1.bf16.msra.mxu0 0
      %1502 = vmatprep.subr.bf16.mxu0 0
      %1503 = vmatpush1.bf16.msra.mxu0 0
      %1504 = vmatprep.subr.bf16.mxu0 0
      %1505 = vmatpush1.bf16.msra.mxu0 0
      %1506 = vmatprep.subr.bf16.mxu0 0
      %1507 = vmatpush1.bf16.msra.mxu0 0
      %1508 = vmatprep.subr.bf16.mxu0 0
      %1509 = vmatpush1.bf16.msra.mxu0 0
      %1510 = vmatprep.subr.bf16.mxu0 0
      %1511 = vmatpush1.bf16.msra.mxu0 0
      %1512 = vmatprep.subr.bf16.mxu0 0
      %1513 = vmatpush1.bf16.msra.mxu0 0
      %1514 = vmatprep.mubr.bf16.mxu0 0
      %1515 = vmatmul.mubr.bf16.gmra.mrb[0].mxu0 %v1474
      %v1516 = vpop.f32.mrb[0].mxu0
      %v1517 = vadd.f32 0.0, %v1516
      %v1518 = vpop.f32.mrb[0].mxu0
      %v1519 = vpop.f32.mrb[0].mxu0
      %v1520 = vadd.f32 0.0, %v1519
      %v1521 = vpop.f32.mrb[0].mxu0
      %1522 = vmatprep.mubr.bf16.mxu0 0
      %1523 = vmatmul.mubr.bf16.gmra.mrb[0].mxu0 %v1477
      %v1524 = vpop.f32.mrb[0].mxu0
      %v1525 = vadd.f32 0.0, %v1524
      %v1526 = vpop.f32.mrb[0].mxu0
      %v1527 = vpop.f32.mrb[0].mxu0
      %v1528 = vpop.f32.mrb[0].mxu0
      %1529 = vdwg.mxu0
      %1530 = vrot.lane.b32.xlu0 %v1181, 96
      %v1531 = vpop.permute.xlu0 %1530
      %1532 = vrot.lane.b32.xlu0 %v1182, 96
      %v1533 = vpop.permute.xlu0 %1532
      %1534 = vrot.lane.b32.xlu0 %v1183, 96
      %v1535 = vpop.permute.xlu0 %1534
      %1536 = vrot.lane.b32.xlu0 %v1184, 96
      %v1537 = vpop.permute.xlu0 %1536
      %v1539 = vsel %vm1187, %v1531, 0
      %v1542 = vsel %vm1187, %v1533, 0
      %v1545 = vsel %vm1187, %v1535, 0
      %v1548 = vsel %vm1187, %v1537, 0
      %1550 = vmatprep.subr.bf16.mxu0 0
      %1551 = vmatpush1.bf16.xpose.msra.mxu0 %v1545
      %1552 = vmatprep.subr.bf16.mxu0 0
      %1553 = vmatpush1.bf16.xpose.msra.mxu0 %v1548
      %1554 = vmatprep.subr.bf16.mxu0 0
      %1555 = vmatpush1.bf16.xpose.msra.mxu0 0
      %1556 = vmatprep.subr.bf16.mxu0 0
      %1557 = vmatpush1.bf16.xpose.msra.mxu0 0
      %1558 = vmatprep.subr.bf16.mxu0 0
      %1559 = vmatpush1.bf16.xpose.msra.mxu0 0
      %1560 = vmatprep.subr.bf16.mxu0 0
      %1561 = vmatpush1.bf16.xpose.msra.mxu0 0
      %1562 = vmatprep.subr.bf16.mxu0 0
      %1563 = vmatpush1.bf16.xpose.msra.mxu0 0
      %1564 = vmatprep.subr.bf16.mxu0 0
      %1565 = vmatpush1.bf16.xpose.msra.mxu0 0
      %1566 = vmatprep.subr.bf16.mxu0 0
      %1567 = vmatpush1.bf16.xpose.msra.mxu0 0
      %1568 = vmatprep.subr.bf16.mxu0 0
      %1569 = vmatpush1.bf16.xpose.msra.mxu0 0
      %1570 = vmatprep.subr.bf16.mxu0 0
      %1571 = vmatpush1.bf16.xpose.msra.mxu0 0
      %1572 = vmatprep.subr.bf16.mxu0 0
      %1573 = vmatpush1.bf16.xpose.msra.mxu0 0
      %1574 = vmatprep.subr.bf16.mxu0 0
      %1575 = vmatpush1.bf16.xpose.msra.mxu0 0
      %1576 = vmatprep.subr.bf16.mxu0 0
      %1577 = vmatpush1.bf16.xpose.msra.mxu0 0
      %1578 = vmatprep.subr.bf16.mxu0 0
      %1579 = vmatpush1.bf16.xpose.msra.mxu0 0
      %1580 = vmatprep.subr.bf16.mxu0 0
      %1581 = vmatpush1.bf16.xpose.msra.mxu0 0
      %1582 = vmatprep.mubr.bf16.mxu0 0
      %1583 = vmatmul.mubr.bf16.gmra.mrb[0].mxu0 %v1539
      %v1584 = vpop.f32.mrb[0].mxu0
      %v1585 = vadd.f32 0.0, %v1584
      %v1586 = vpop.f32.mrb[0].mxu0
      %v1587 = vpop.f32.mrb[0].mxu0
      %v1588 = vadd.f32 0.0, %v1587
      %v1589 = vpop.f32.mrb[0].mxu0
      %1590 = vmatprep.mubr.bf16.mxu0 0
      %1591 = vmatmul.mubr.bf16.gmra.mrb[0].mxu0 %v1542
      %v1592 = vpop.f32.mrb[0].mxu0
      %v1593 = vadd.f32 0.0, %v1592
      %v1594 = vpop.f32.mrb[0].mxu0
      %v1595 = vpop.f32.mrb[0].mxu0
      %v1596 = vpop.f32.mrb[0].mxu0
      %1597 = vdwg.mxu0
      %v1598 = vmul.f32 %v1585, 0.25
      %v1599 = vmul.f32 %v1588, 0.25
      %v1600 = vmul.f32 %v1593, 0.25
      %v1601 = vsel %vm1255, %v1598, -1e+30
      %v1602 = vsel %vm1255, %v1599, -1e+30
      %v1603 = vsel %vm1255, %v1600, -1e+30
      %v1604 = vsel %vm1259, %v1601, -inf
      %1605 = vmax.xlane.f32.xlu0 %v1604
      %v1606 = vpop.xlane.xlu0 %1605
      %v1607 = vsel %vm1259, %v1602, -inf
      %1608 = vmax.xlane.f32.xlu0 %v1607
      %v1609 = vpop.xlane.xlu0 %1608
      %v1610 = vsel %vm1259, %v1603, -inf
      %1611 = vmax.xlane.f32.xlu0 %v1610
      %v1612 = vpop.xlane.xlu0 %1611
      %v1613 = vsub.f32 %v1601, %v1606
      %v1614 = vsub.f32 %v1602, %v1609
      %v1615 = vsub.f32 %v1603, %v1612
      %v1616 = vmul.f32 %v1613, 1.442695
      %v1617 = vpow.pop %v1616
      %v1618 = vmul.f32 %v1614, 1.442695
      %v1619 = vpow.pop %v1618
      %v1620 = vmul.f32 %v1615, 1.442695
      %v1621 = vpow.pop %v1620
      %v1622 = vsel %vm1259, %v1617, 0.0
      %1623 = vadd.xlane.f32.xlu0 %v1622
      %v1624 = vpop.xlane.xlu0 %1623
      %v1625 = vsel %vm1259, %v1619, 0.0
      %1626 = vadd.xlane.f32.xlu0 %v1625
      %v1627 = vpop.xlane.xlu0 %1626
      %v1628 = vsel %vm1259, %v1621, 0.0
      %1629 = vadd.xlane.f32.xlu0 %v1628
      %v1630 = vpop.xlane.xlu0 %1629
      %v1631 = vrcp.pop %v1624
      %v1632 = vrcp.pop %v1627
      %v1633 = vrcp.pop %v1630
      %v1634 = vmul.f32 %v1617, %v1631
      %v1635 = vmul.f32 %v1619, %v1632
      %v1636 = vmul.f32 %v1621, %v1633
      %v1637 = vpack.c.bf16 %v1635, %v1634
      %v1638 = vpack.c.bf16 %v1636, %v1636
      %1639 = vrot.lane.b32.xlu0 %v1185, 96
      %v1640 = vpop.permute.xlu0 %1639
      %1641 = vrot.lane.b32.xlu0 %v1186, 96
      %v1642 = vpop.permute.xlu0 %1641
      %v1645 = vsel %vm1259, %v1637, 0
      %v1648 = vsel %vm1259, %v1638, 0
      %v1651 = vsel %vm1301, %v1642, 0
      %1653 = vmatprep.subr.bf16.mxu0 0
      %1654 = vmatpush1.bf16.msra.mxu0 %v1640
      %1655 = vmatprep.subr.bf16.mxu0 0
      %1656 = vmatpush1.bf16.msra.mxu0 %v1651
      %1657 = vmatprep.subr.bf16.mxu0 0
      %1658 = vmatpush1.bf16.msra.mxu0 0
      %1659 = vmatprep.subr.bf16.mxu0 0
      %1660 = vmatpush1.bf16.msra.mxu0 0
      %1661 = vmatprep.subr.bf16.mxu0 0
      %1662 = vmatpush1.bf16.msra.mxu0 0
      %1663 = vmatprep.subr.bf16.mxu0 0
      %1664 = vmatpush1.bf16.msra.mxu0 0
      %1665 = vmatprep.subr.bf16.mxu0 0
      %1666 = vmatpush1.bf16.msra.mxu0 0
      %1667 = vmatprep.subr.bf16.mxu0 0
      %1668 = vmatpush1.bf16.msra.mxu0 0
      %1669 = vmatprep.subr.bf16.mxu0 0
      %1670 = vmatpush1.bf16.msra.mxu0 0
      %1671 = vmatprep.subr.bf16.mxu0 0
      %1672 = vmatpush1.bf16.msra.mxu0 0
      %1673 = vmatprep.subr.bf16.mxu0 0
      %1674 = vmatpush1.bf16.msra.mxu0 0
      %1675 = vmatprep.subr.bf16.mxu0 0
      %1676 = vmatpush1.bf16.msra.mxu0 0
      %1677 = vmatprep.subr.bf16.mxu0 0
      %1678 = vmatpush1.bf16.msra.mxu0 0
      %1679 = vmatprep.subr.bf16.mxu0 0
      %1680 = vmatpush1.bf16.msra.mxu0 0
      %1681 = vmatprep.subr.bf16.mxu0 0
      %1682 = vmatpush1.bf16.msra.mxu0 0
      %1683 = vmatprep.subr.bf16.mxu0 0
      %1684 = vmatpush1.bf16.msra.mxu0 0
      %1685 = vmatprep.mubr.bf16.mxu0 0
      %1686 = vmatmul.mubr.bf16.gmra.mrb[0].mxu0 %v1645
      %v1687 = vpop.f32.mrb[0].mxu0
      %v1688 = vadd.f32 0.0, %v1687
      %v1689 = vpop.f32.mrb[0].mxu0
      %v1690 = vpop.f32.mrb[0].mxu0
      %v1691 = vadd.f32 0.0, %v1690
      %v1692 = vpop.f32.mrb[0].mxu0
      %1693 = vmatprep.mubr.bf16.mxu0 0
      %1694 = vmatmul.mubr.bf16.gmra.mrb[0].mxu0 %v1648
      %v1695 = vpop.f32.mrb[0].mxu0
      %v1696 = vadd.f32 0.0, %v1695
      %v1697 = vpop.f32.mrb[0].mxu0
      %v1698 = vpop.f32.mrb[0].mxu0
      %v1699 = vpop.f32.mrb[0].mxu0
      %1700 = vdwg.mxu0
      %1701 = vrot.lane.b32.xlu0 %v1181, 80
      %v1702 = vpop.permute.xlu0 %1701
      %1703 = vrot.lane.b32.xlu0 %v1182, 80
      %v1704 = vpop.permute.xlu0 %1703
      %1705 = vrot.lane.b32.xlu0 %v1183, 80
      %v1706 = vpop.permute.xlu0 %1705
      %1707 = vrot.lane.b32.xlu0 %v1184, 80
      %v1708 = vpop.permute.xlu0 %1707
      %v1710 = vsel %vm1187, %v1702, 0
      %v1713 = vsel %vm1187, %v1704, 0
      %v1716 = vsel %vm1187, %v1706, 0
      %v1719 = vsel %vm1187, %v1708, 0
      %1721 = vmatprep.subr.bf16.mxu0 0
      %1722 = vmatpush1.bf16.xpose.msra.mxu0 %v1716
      %1723 = vmatprep.subr.bf16.mxu0 0
      %1724 = vmatpush1.bf16.xpose.msra.mxu0 %v1719
      %1725 = vmatprep.subr.bf16.mxu0 0
      %1726 = vmatpush1.bf16.xpose.msra.mxu0 0
      %1727 = vmatprep.subr.bf16.mxu0 0
      %1728 = vmatpush1.bf16.xpose.msra.mxu0 0
      %1729 = vmatprep.subr.bf16.mxu0 0
      %1730 = vmatpush1.bf16.xpose.msra.mxu0 0
      %1731 = vmatprep.subr.bf16.mxu0 0
      %1732 = vmatpush1.bf16.xpose.msra.mxu0 0
      %1733 = vmatprep.subr.bf16.mxu0 0
      %1734 = vmatpush1.bf16.xpose.msra.mxu0 0
      %1735 = vmatprep.subr.bf16.mxu0 0
      %1736 = vmatpush1.bf16.xpose.msra.mxu0 0
      %1737 = vmatprep.subr.bf16.mxu0 0
      %1738 = vmatpush1.bf16.xpose.msra.mxu0 0
      %1739 = vmatprep.subr.bf16.mxu0 0
      %1740 = vmatpush1.bf16.xpose.msra.mxu0 0
      %1741 = vmatprep.subr.bf16.mxu0 0
      %1742 = vmatpush1.bf16.xpose.msra.mxu0 0
      %1743 = vmatprep.subr.bf16.mxu0 0
      %1744 = vmatpush1.bf16.xpose.msra.mxu0 0
      %1745 = vmatprep.subr.bf16.mxu0 0
      %1746 = vmatpush1.bf16.xpose.msra.mxu0 0
      %1747 = vmatprep.subr.bf16.mxu0 0
      %1748 = vmatpush1.bf16.xpose.msra.mxu0 0
      %1749 = vmatprep.subr.bf16.mxu0 0
      %1750 = vmatpush1.bf16.xpose.msra.mxu0 0
      %1751 = vmatprep.subr.bf16.mxu0 0
      %1752 = vmatpush1.bf16.xpose.msra.mxu0 0
      %1753 = vmatprep.mubr.bf16.mxu0 0
      %1754 = vmatmul.mubr.bf16.gmra.mrb[0].mxu0 %v1710
      %v1755 = vpop.f32.mrb[0].mxu0
      %v1756 = vadd.f32 0.0, %v1755
      %v1757 = vpop.f32.mrb[0].mxu0
      %v1758 = vpop.f32.mrb[0].mxu0
      %v1759 = vadd.f32 0.0, %v1758
      %v1760 = vpop.f32.mrb[0].mxu0
      %1761 = vmatprep.mubr.bf16.mxu0 0
      %1762 = vmatmul.mubr.bf16.gmra.mrb[0].mxu0 %v1713
      %v1763 = vpop.f32.mrb[0].mxu0
      %v1764 = vadd.f32 0.0, %v1763
      %v1765 = vpop.f32.mrb[0].mxu0
      %v1766 = vpop.f32.mrb[0].mxu0
      %v1767 = vpop.f32.mrb[0].mxu0
      %1768 = vdwg.mxu0
      %v1769 = vmul.f32 %v1756, 0.25
      %v1770 = vmul.f32 %v1759, 0.25
      %v1771 = vmul.f32 %v1764, 0.25
      %v1772 = vsel %vm1255, %v1769, -1e+30
      %v1773 = vsel %vm1255, %v1770, -1e+30
      %v1774 = vsel %vm1255, %v1771, -1e+30
      %v1775 = vsel %vm1259, %v1772, -inf
      %1776 = vmax.xlane.f32.xlu0 %v1775
      %v1777 = vpop.xlane.xlu0 %1776
      %v1778 = vsel %vm1259, %v1773, -inf
      %1779 = vmax.xlane.f32.xlu0 %v1778
      %v1780 = vpop.xlane.xlu0 %1779
      %v1781 = vsel %vm1259, %v1774, -inf
      %1782 = vmax.xlane.f32.xlu0 %v1781
      %v1783 = vpop.xlane.xlu0 %1782
      %v1784 = vsub.f32 %v1772, %v1777
      %v1785 = vsub.f32 %v1773, %v1780
      %v1786 = vsub.f32 %v1774, %v1783
      %v1787 = vmul.f32 %v1784, 1.442695
      %v1788 = vpow.pop %v1787
      %v1789 = vmul.f32 %v1785, 1.442695
      %v1790 = vpow.pop %v1789
      %v1791 = vmul.f32 %v1786, 1.442695
      %v1792 = vpow.pop %v1791
      %v1793 = vsel %vm1259, %v1788, 0.0
      %1794 = vadd.xlane.f32.xlu0 %v1793
      %v1795 = vpop.xlane.xlu0 %1794
      %v1796 = vsel %vm1259, %v1790, 0.0
      %1797 = vadd.xlane.f32.xlu0 %v1796
      %v1798 = vpop.xlane.xlu0 %1797
      %v1799 = vsel %vm1259, %v1792, 0.0
      %1800 = vadd.xlane.f32.xlu0 %v1799
      %v1801 = vpop.xlane.xlu0 %1800
      %v1802 = vrcp.pop %v1795
      %v1803 = vrcp.pop %v1798
      %v1804 = vrcp.pop %v1801
      %v1805 = vmul.f32 %v1788, %v1802
      %v1806 = vmul.f32 %v1790, %v1803
      %v1807 = vmul.f32 %v1792, %v1804
      %v1808 = vpack.c.bf16 %v1806, %v1805
      %v1809 = vpack.c.bf16 %v1807, %v1807
      %1810 = vrot.lane.b32.xlu0 %v1185, 80
      %v1811 = vpop.permute.xlu0 %1810
      %1812 = vrot.lane.b32.xlu0 %v1186, 80
      %v1813 = vpop.permute.xlu0 %1812
      %v1816 = vsel %vm1259, %v1808, 0
      %v1819 = vsel %vm1259, %v1809, 0
      %v1822 = vsel %vm1301, %v1813, 0
      %1824 = vmatprep.subr.bf16.mxu0 0
      %1825 = vmatpush1.bf16.msra.mxu0 %v1811
      %1826 = vmatprep.subr.bf16.mxu0 0
      %1827 = vmatpush1.bf16.msra.mxu0 %v1822
      %1828 = vmatprep.subr.bf16.mxu0 0
      %1829 = vmatpush1.bf16.msra.mxu0 0
      %1830 = vmatprep.subr.bf16.mxu0 0
      %1831 = vmatpush1.bf16.msra.mxu0 0
      %1832 = vmatprep.subr.bf16.mxu0 0
      %1833 = vmatpush1.bf16.msra.mxu0 0
      %1834 = vmatprep.subr.bf16.mxu0 0
      %1835 = vmatpush1.bf16.msra.mxu0 0
      %1836 = vmatprep.subr.bf16.mxu0 0
      %1837 = vmatpush1.bf16.msra.mxu0 0
      %1838 = vmatprep.subr.bf16.mxu0 0
      %1839 = vmatpush1.bf16.msra.mxu0 0
      %1840 = vmatprep.subr.bf16.mxu0 0
      %1841 = vmatpush1.bf16.msra.mxu0 0
      %1842 = vmatprep.subr.bf16.mxu0 0
      %1843 = vmatpush1.bf16.msra.mxu0 0
      %1844 = vmatprep.subr.bf16.mxu0 0
      %1845 = vmatpush1.bf16.msra.mxu0 0
      %1846 = vmatprep.subr.bf16.mxu0 0
      %1847 = vmatpush1.bf16.msra.mxu0 0
      %1848 = vmatprep.subr.bf16.mxu0 0
      %1849 = vmatpush1.bf16.msra.mxu0 0
      %1850 = vmatprep.subr.bf16.mxu0 0
      %1851 = vmatpush1.bf16.msra.mxu0 0
      %1852 = vmatprep.subr.bf16.mxu0 0
      %1853 = vmatpush1.bf16.msra.mxu0 0
      %1854 = vmatprep.subr.bf16.mxu0 0
      %1855 = vmatpush1.bf16.msra.mxu0 0
      %1856 = vmatprep.mubr.bf16.mxu0 0
      %1857 = vmatmul.mubr.bf16.gmra.mrb[0].mxu0 %v1816
      %v1858 = vpop.f32.mrb[0].mxu0
      %v1859 = vadd.f32 0.0, %v1858
      %v1860 = vpop.f32.mrb[0].mxu0
      %v1861 = vpop.f32.mrb[0].mxu0
      %v1862 = vadd.f32 0.0, %v1861
      %v1863 = vpop.f32.mrb[0].mxu0
      %1864 = vmatprep.mubr.bf16.mxu0 0
      %1865 = vmatmul.mubr.bf16.gmra.mrb[0].mxu0 %v1819
      %v1866 = vpop.f32.mrb[0].mxu0
      %v1867 = vadd.f32 0.0, %v1866
      %v1868 = vpop.f32.mrb[0].mxu0
      %v1869 = vpop.f32.mrb[0].mxu0
      %v1870 = vpop.f32.mrb[0].mxu0
      %1871 = vdwg.mxu0
      %1875 = vrot.lane.b32.xlu0 %v1517, 16
      %v1876 = vpop.permute.xlu0 %1875
      %1877 = vrot.lane.b32.xlu0 %v1520, 16
      %v1878 = vpop.permute.xlu0 %1877
      %1879 = vrot.lane.b32.xlu0 %v1525, 16
      %v1880 = vpop.permute.xlu0 %1879
      %1887 = vrot.lane.b32.xlu0 %v1688, 32
      %v1888 = vpop.permute.xlu0 %1887
      %1889 = vrot.lane.b32.xlu0 %v1691, 32
      %v1890 = vpop.permute.xlu0 %1889
      %1891 = vrot.lane.b32.xlu0 %v1696, 32
      %v1892 = vpop.permute.xlu0 %1891
      %1899 = vrot.lane.b32.xlu0 %v1859, 48
      %v1900 = vpop.permute.xlu0 %1899
      %1901 = vrot.lane.b32.xlu0 %v1862, 48
      %v1902 = vpop.permute.xlu0 %1901
      %1903 = vrot.lane.b32.xlu0 %v1867, 48
      %v1904 = vpop.permute.xlu0 %1903
      %v1908 = vsel %vm1187, %v1340, %v1876
      %v1909 = vsel %vm1187, %v1343, %v1878
      %v1910 = vsel %vm1187, %v1348, %v1880
      %vm1911 = vcmask 261120
      %v1912 = vsel %vm1911, %v1908, %v1888
      %v1913 = vsel %vm1911, %v1909, %v1890
      %v1914 = vsel %vm1911, %v1910, %v1892
      %vm1915 = vcmask 392192
      %v1916 = vsel %vm1915, %v1912, %v1900
      %v1917 = vsel %vm1915, %v1913, %v1902
      %v1918 = vsel %vm1915, %v1914, %v1904
      %v1919 = vpack.c.bf16 %v1917, %v1916
      %v1920 = vpack.c.bf16 %v1918, %v1918
      %v1921 = vld [vmem:[%s794] sm:$0xf]
      %v1922 = vld [vmem:[%s794 + $0x4] sm:$0xf]
      %v1923 = vld [vmem:[%s794 + $0x8] sm:$0xf]
      %v1924 = vld [vmem:[%s794 + $0xc] sm:$0xf]
      %v1925 = vld [vmem:[%s794 + $0x10] sm:$0xf]
      %v1926 = vld [vmem:[%s794 + $0x14] sm:$0xf]
      %v1927 = vld [vmem:[%s794 + $0x18] sm:$0xf]
      %v1928 = vld [vmem:[%s794 + $0x1c] sm:$0xf]
      %v1929 = vld [vmem:[%s797] sm:$0x1]
      %v1931 = vlaneseq
      %v1932 = vshrl.u32 %v1931, 7
      %v1933 = vsub.s32 0, %v1932
      %v1934 = vrot.slane %v1929, %v1933
      %v1944 = vunpack.c.l.b16 %v1921
      %v1945 = vunpack.c.l.b16 %v1922
      %v1946 = vunpack.c.l.b16 %v1923
      %v1947 = vunpack.c.l.b16 %v1924
      %v1948 = vunpack.c.l.b16 %v1925
      %v1949 = vunpack.c.l.b16 %v1926
      %v1950 = vunpack.c.l.b16 %v1927
      %v1951 = vunpack.c.l.b16 %v1928
      %v1952 = vpack.c.b16 %v1945, %v1944
      %v1953 = vpack.c.b16 %v1947, %v1946
      %v1954 = vpack.c.b16 %v1949, %v1948
      %v1955 = vpack.c.b16 %v1951, %v1950
      %v1961 = vsel %vm844, %v1919, 0
      %v1964 = vsel %vm844, %v1920, 0
      %1966 = vmatprep.subr.bf16.mxu0 0
      %1967 = vmatpush1.bf16.msra.mxu0 %v1952
      %1968 = vmatprep.subr.bf16.mxu0 0
      %1969 = vmatpush1.bf16.msra.mxu0 %v1953
      %1970 = vmatprep.subr.bf16.mxu0 0
      %1971 = vmatpush1.bf16.msra.mxu0 %v1954
      %1972 = vmatprep.subr.bf16.mxu0 0
      %1973 = vmatpush1.bf16.msra.mxu0 %v1955
      %1974 = vmatprep.subr.bf16.mxu0 0
      %1975 = vmatpush1.bf16.msra.mxu0 0
      %1976 = vmatprep.subr.bf16.mxu0 0
      %1977 = vmatpush1.bf16.msra.mxu0 0
      %1978 = vmatprep.subr.bf16.mxu0 0
      %1979 = vmatpush1.bf16.msra.mxu0 0
      %1980 = vmatprep.subr.bf16.mxu0 0
      %1981 = vmatpush1.bf16.msra.mxu0 0
      %1982 = vmatprep.subr.bf16.mxu0 0
      %1983 = vmatpush1.bf16.msra.mxu0 0
      %1984 = vmatprep.subr.bf16.mxu0 0
      %1985 = vmatpush1.bf16.msra.mxu0 0
      %1986 = vmatprep.subr.bf16.mxu0 0
      %1987 = vmatpush1.bf16.msra.mxu0 0
      %1988 = vmatprep.subr.bf16.mxu0 0
      %1989 = vmatpush1.bf16.msra.mxu0 0
      %1990 = vmatprep.subr.bf16.mxu0 0
      %1991 = vmatpush1.bf16.msra.mxu0 0
      %1992 = vmatprep.subr.bf16.mxu0 0
      %1993 = vmatpush1.bf16.msra.mxu0 0
      %1994 = vmatprep.subr.bf16.mxu0 0
      %1995 = vmatpush1.bf16.msra.mxu0 0
      %1996 = vmatprep.subr.bf16.mxu0 0
      %1997 = vmatpush1.bf16.msra.mxu0 0
      %1998 = vmatprep.mubr.bf16.mxu0 0
      %1999 = vmatmul.mubr.bf16.gmra.mrb[0].mxu0 %v1961
      %v2000 = vpop.f32.mrb[0].mxu0
      %v2001 = vadd.f32 %v1934, %v2000
      %v2002 = vpop.f32.mrb[0].mxu0
      %v2003 = vpop.f32.mrb[0].mxu0
      %v2004 = vadd.f32 %v1934, %v2003
      %v2005 = vpop.f32.mrb[0].mxu0
      %2006 = vmatprep.mubr.bf16.mxu0 0
      %2007 = vmatmul.mubr.bf16.gmra.mrb[0].mxu0 %v1964
      %v2008 = vpop.f32.mrb[0].mxu0
      %v2009 = vadd.f32 %v1934, %v2008
      %v2010 = vpop.f32.mrb[0].mxu0
      %v2011 = vpop.f32.mrb[0].mxu0
      %v2012 = vpop.f32.mrb[0].mxu0
      %2013 = vdwg.mxu0
      %v2014 = vadd.f32 %v839, %v2001
      %v2015 = vadd.f32 %v840, %v2004
      %v2016 = vadd.f32 %v841, %v2009
      %v2017 = vld [vmem:[%s800] sm:$0x1]
      %v2018 = vld [vmem:[%s803] sm:$0x1]
      %v2019 = vsel %vm844, %v2014, 0.0
      %2020 = vadd.xlane.f32.xlu0 %v2019
      %v2021 = vpop.xlane.xlu0 %2020
      %v2022 = vsel %vm844, %v2015, 0.0
      %2023 = vadd.xlane.f32.xlu0 %v2022
      %v2024 = vpop.xlane.xlu0 %2023
      %v2025 = vsel %vm844, %v2016, 0.0
      %2026 = vadd.xlane.f32.xlu0 %v2025
      %v2027 = vpop.xlane.xlu0 %2026
      %v2028 = vmul.f32 %v2021, %v854
      %v2029 = vmul.f32 %v2024, %v854
      %v2030 = vmul.f32 %v2027, %v854
      %v2031 = vmul.f32 %v2014, %v2014
      %v2032 = vmul.f32 %v2015, %v2015
      %v2033 = vmul.f32 %v2016, %v2016
      %v2034 = vsel %vm844, %v2031, 0.0
      %2035 = vadd.xlane.f32.xlu0 %v2034
      %v2036 = vpop.xlane.xlu0 %2035
      %v2037 = vsel %vm844, %v2032, 0.0
      %2038 = vadd.xlane.f32.xlu0 %v2037
      %v2039 = vpop.xlane.xlu0 %2038
      %v2040 = vsel %vm844, %v2033, 0.0
      %2041 = vadd.xlane.f32.xlu0 %v2040
      %v2042 = vpop.xlane.xlu0 %2041
      %v2043 = vmul.f32 %v2036, %v854
      %v2044 = vmul.f32 %v2039, %v854
      %v2045 = vmul.f32 %v2042, %v854
      %v2046 = vmul.f32 %v2028, %v2028
      %v2047 = vmul.f32 %v2029, %v2029
      %v2048 = vmul.f32 %v2030, %v2030
      %v2049 = vsub.f32 %v2043, %v2046
      %v2050 = vsub.f32 %v2044, %v2047
      %v2051 = vsub.f32 %v2045, %v2048
      %v2052 = vmax.f32 %v2049, 0.0
      %v2053 = vmax.f32 %v2050, 0.0
      %v2054 = vmax.f32 %v2051, 0.0
      %v2055 = vsub.f32 %v2014, %v2028
      %v2056 = vsub.f32 %v2015, %v2029
      %v2057 = vsub.f32 %v2016, %v2030
      %v2058 = vadd.f32 %v2052, 1e-05
      %v2059 = vadd.f32 %v2053, 1e-05
      %v2060 = vadd.f32 %v2054, 1e-05
      %v2061 = vrsqrt.pop %v2058
      %v2062 = vrsqrt.pop %v2059
      %v2063 = vrsqrt.pop %v2060
      %v2064 = vmul.f32 %v2055, %v2061
      %v2065 = vmul.f32 %v2056, %v2062
      %v2066 = vmul.f32 %v2057, %v2063
      %v2068 = vlaneseq
      %v2069 = vshrl.u32 %v2068, 7
      %v2070 = vsub.s32 0, %v2069
      %v2071 = vrot.slane %v2017, %v2070
      %v2073 = vmul.f32 %v2064, %v2071
      %v2074 = vmul.f32 %v2065, %v2071
      %v2075 = vmul.f32 %v2066, %v2071
      %v2077 = vlaneseq
      %v2078 = vshrl.u32 %v2077, 7
      %v2079 = vsub.s32 0, %v2078
      %v2080 = vrot.slane %v2018, %v2079
      %v2082 = vadd.f32 %v2073, %v2080
      %v2083 = vadd.f32 %v2074, %v2080
      %v2084 = vadd.f32 %v2075, %v2080
      %v2085 = vpack.c.bf16 %v2083, %v2082
      %v2086 = vpack.c.bf16 %v2084, %v2084
      %v2087 = vld [vmem:[%s808] sm:$0xff]
      %v2088 = vld [vmem:[%s808 + $0x8] sm:$0xff]
      %v2089 = vld [vmem:[%s808 + $0x10] sm:$0xff]
      %v2090 = vld [vmem:[%s808 + $0x18] sm:$0xff]
      %v2091 = vld [vmem:[%s808 + $0x20] sm:$0xff]
      %v2092 = vld [vmem:[%s808 + $0x28] sm:$0xff]
      %v2093 = vld [vmem:[%s808 + $0x30] sm:$0xff]
      %v2094 = vld [vmem:[%s808 + $0x38] sm:$0xff]
      %v2095 = vld [vmem:[%s812] sm:$0x3]
      %v2097 = vlaneseq
      %v2098 = vshrl.u32 %v2097, 7
      %v2099 = vsub.s32 0, %v2098
      %v2100 = vrot.slane %v2095, %v2099
      %v2101 = vlaneseq
      %v2102 = vshrl.u32 %v2101, 7
      %v2103 = vsub.s32 1, %v2102
      %v2104 = vrot.slane %v2095, %v2103
      %v2115 = vunpack.c.l.b16 %v2087
      %v2116 = vunpack.c.h.b16 %v2087
      %v2117 = vunpack.c.l.b16 %v2088
      %v2118 = vunpack.c.h.b16 %v2088
      %v2119 = vunpack.c.l.b16 %v2089
      %v2120 = vunpack.c.h.b16 %v2089
      %v2121 = vunpack.c.l.b16 %v2090
      %v2122 = vunpack.c.h.b16 %v2090
      %v2123 = vunpack.c.l.b16 %v2091
      %v2124 = vunpack.c.h.b16 %v2091
      %v2125 = vunpack.c.l.b16 %v2092
      %v2126 = vunpack.c.h.b16 %v2092
      %v2127 = vunpack.c.l.b16 %v2093
      %v2128 = vunpack.c.h.b16 %v2093
      %v2129 = vunpack.c.l.b16 %v2094
      %v2130 = vunpack.c.h.b16 %v2094
      %v2131 = vpack.c.b16 %v2117, %v2115
      %v2132 = vpack.c.b16 %v2118, %v2116
      %v2133 = vpack.c.b16 %v2121, %v2119
      %v2134 = vpack.c.b16 %v2122, %v2120
      %v2135 = vpack.c.b16 %v2125, %v2123
      %v2136 = vpack.c.b16 %v2126, %v2124
      %v2137 = vpack.c.b16 %v2129, %v2127
      %v2138 = vpack.c.b16 %v2130, %v2128
      %v2148 = vsel %vm844, %v2085, 0
      %v2151 = vsel %vm844, %v2086, 0
      %2153 = vmatprep.subr.bf16.mxu0 %v2132
      %2154 = vmatpush1.bf16.msra.mxu0 %v2131
      %2155 = vmatprep.subr.bf16.mxu0 %v2134
      %2156 = vmatpush1.bf16.msra.mxu0 %v2133
      %2157 = vmatprep.subr.bf16.mxu0 %v2136
      %2158 = vmatpush1.bf16.msra.mxu0 %v2135
      %2159 = vmatprep.subr.bf16.mxu0 %v2138
      %2160 = vmatpush1.bf16.msra.mxu0 %v2137
      %2161 = vmatprep.subr.bf16.mxu0 0
      %2162 = vmatpush1.bf16.msra.mxu0 0
      %2163 = vmatprep.subr.bf16.mxu0 0
      %2164 = vmatpush1.bf16.msra.mxu0 0
      %2165 = vmatprep.subr.bf16.mxu0 0
      %2166 = vmatpush1.bf16.msra.mxu0 0
      %2167 = vmatprep.subr.bf16.mxu0 0
      %2168 = vmatpush1.bf16.msra.mxu0 0
      %2169 = vmatprep.subr.bf16.mxu0 0
      %2170 = vmatpush1.bf16.msra.mxu0 0
      %2171 = vmatprep.subr.bf16.mxu0 0
      %2172 = vmatpush1.bf16.msra.mxu0 0
      %2173 = vmatprep.subr.bf16.mxu0 0
      %2174 = vmatpush1.bf16.msra.mxu0 0
      %2175 = vmatprep.subr.bf16.mxu0 0
      %2176 = vmatpush1.bf16.msra.mxu0 0
      %2177 = vmatprep.subr.bf16.mxu0 0
      %2178 = vmatpush1.bf16.msra.mxu0 0
      %2179 = vmatprep.subr.bf16.mxu0 0
      %2180 = vmatpush1.bf16.msra.mxu0 0
      %2181 = vmatprep.subr.bf16.mxu0 0
      %2182 = vmatpush1.bf16.msra.mxu0 0
      %2183 = vmatprep.subr.bf16.mxu0 0
      %2184 = vmatpush1.bf16.msra.mxu0 0
      %2185 = vmatprep.mubr.bf16.mxu0 0
      %2186 = vmatmul.mubr.bf16.gmra.mrb[0].mxu0 %v2148
      %v2187 = vpop.f32.mrb[0].mxu0
      %v2188 = vadd.f32 %v2100, %v2187
      %v2189 = vpop.f32.mrb[0].mxu0
      %v2190 = vadd.f32 %v2104, %v2189
      %v2191 = vpop.f32.mrb[0].mxu0
      %v2192 = vadd.f32 %v2100, %v2191
      %v2193 = vpop.f32.mrb[0].mxu0
      %v2194 = vadd.f32 %v2104, %v2193
      %2195 = vmatprep.mubr.bf16.mxu0 0
      %2196 = vmatmul.mubr.bf16.gmra.mrb[0].mxu0 %v2151
      %v2197 = vpop.f32.mrb[0].mxu0
      %v2198 = vadd.f32 %v2100, %v2197
      %v2199 = vpop.f32.mrb[0].mxu0
      %v2200 = vadd.f32 %v2104, %v2199
      %v2201 = vpop.f32.mrb[0].mxu0
      %v2202 = vpop.f32.mrb[0].mxu0
      %2203 = vdwg.mxu0
      %v2204 = vmul.f32 %v2188, 1.702
      %v2205 = vmul.f32 %v2190, 1.702
      %v2206 = vmul.f32 %v2192, 1.702
      %v2207 = vmul.f32 %v2194, 1.702
      %v2208 = vmul.f32 %v2198, 1.702
      %v2209 = vmul.f32 %v2200, 1.702
      %v2210 = vxor.u32 %v2204, 2147483648
      %v2211 = vxor.u32 %v2205, 2147483648
      %v2212 = vxor.u32 %v2206, 2147483648
      %v2213 = vxor.u32 %v2207, 2147483648
      %v2214 = vxor.u32 %v2208, 2147483648
      %v2215 = vxor.u32 %v2209, 2147483648
      %v2216 = vmul.f32 %v2210, 1.442695
      %v2217 = vpow.pop %v2216
      %v2218 = vmul.f32 %v2211, 1.442695
      %v2219 = vpow.pop %v2218
      %v2220 = vmul.f32 %v2212, 1.442695
      %v2221 = vpow.pop %v2220
      %v2222 = vmul.f32 %v2213, 1.442695
      %v2223 = vpow.pop %v2222
      %v2224 = vmul.f32 %v2214, 1.442695
      %v2225 = vpow.pop %v2224
      %v2226 = vmul.f32 %v2215, 1.442695
      %v2227 = vpow.pop %v2226
      %v2228 = vadd.f32 %v2217, 1.0
      %v2229 = vadd.f32 %v2219, 1.0
      %v2230 = vadd.f32 %v2221, 1.0
      %v2231 = vadd.f32 %v2223, 1.0
      %v2232 = vadd.f32 %v2225, 1.0
      %v2233 = vadd.f32 %v2227, 1.0
      %v2234 = vrcp.pop %v2228
      %v2235 = vmul.f32 1.0, %v2234
      %v2236 = vrcp.pop %v2229
      %v2237 = vmul.f32 1.0, %v2236
      %v2238 = vrcp.pop %v2230
      %v2239 = vmul.f32 1.0, %v2238
      %v2240 = vrcp.pop %v2231
      %v2241 = vmul.f32 1.0, %v2240
      %v2242 = vrcp.pop %v2232
      %v2243 = vmul.f32 1.0, %v2242
      %v2244 = vrcp.pop %v2233
      %v2245 = vmul.f32 1.0, %v2244
      %v2246 = vmul.f32 %v2188, %v2235
      %v2247 = vmul.f32 %v2190, %v2237
      %v2248 = vmul.f32 %v2192, %v2239
      %v2249 = vmul.f32 %v2194, %v2241
      %v2250 = vmul.f32 %v2198, %v2243
      %v2251 = vmul.f32 %v2200, %v2245
      %v2252 = vpack.c.bf16 %v2248, %v2246
      %v2253 = vpack.c.bf16 %v2249, %v2247
      %v2254 = vpack.c.bf16 %v2250, %v2250
      %v2255 = vpack.c.bf16 %v2251, %v2251
      %v2256 = vld [vmem:[%s817] sm:$0xf]
      %v2257 = vld [vmem:[%s817 + $0x4] sm:$0xf]
      %v2258 = vld [vmem:[%s817 + $0x8] sm:$0xf]
      %v2259 = vld [vmem:[%s817 + $0xc] sm:$0xf]
      %v2260 = vld [vmem:[%s817 + $0x10] sm:$0xf]
      %v2261 = vld [vmem:[%s817 + $0x14] sm:$0xf]
      %v2262 = vld [vmem:[%s817 + $0x18] sm:$0xf]
      %v2263 = vld [vmem:[%s817 + $0x1c] sm:$0xf]
      %v2264 = vld [vmem:[%s817 + $0x20] sm:$0xf]
      %v2265 = vld [vmem:[%s817 + $0x24] sm:$0xf]
      %v2266 = vld [vmem:[%s817 + $0x28] sm:$0xf]
      %v2267 = vld [vmem:[%s817 + $0x2c] sm:$0xf]
      %v2268 = vld [vmem:[%s817 + $0x30] sm:$0xf]
      %v2269 = vld [vmem:[%s817 + $0x34] sm:$0xf]
      %v2270 = vld [vmem:[%s817 + $0x38] sm:$0xf]
      %v2271 = vld [vmem:[%s817 + $0x3c] sm:$0xf]
      %v2272 = vld [vmem:[%s817 + $0x40] sm:$0xf]
      %v2273 = vld [vmem:[%s817 + $0x44] sm:$0xf]
      %v2274 = vld [vmem:[%s817 + $0x48] sm:$0xf]
      %v2275 = vld [vmem:[%s817 + $0x4c] sm:$0xf]
      %v2276 = vld [vmem:[%s817 + $0x50] sm:$0xf]
      %v2277 = vld [vmem:[%s817 + $0x54] sm:$0xf]
      %v2278 = vld [vmem:[%s817 + $0x58] sm:$0xf]
      %v2279 = vld [vmem:[%s817 + $0x5c] sm:$0xf]
      %v2280 = vld [vmem:[%s817 + $0x60] sm:$0xf]
      %v2281 = vld [vmem:[%s817 + $0x64] sm:$0xf]
      %v2282 = vld [vmem:[%s817 + $0x68] sm:$0xf]
      %v2283 = vld [vmem:[%s817 + $0x6c] sm:$0xf]
      %v2284 = vld [vmem:[%s817 + $0x70] sm:$0xf]
      %v2285 = vld [vmem:[%s817 + $0x74] sm:$0xf]
      %v2286 = vld [vmem:[%s817 + $0x78] sm:$0xf]
      %v2287 = vld [vmem:[%s817 + $0x7c] sm:$0xf]
      %v2288 = vld [vmem:[%s820] sm:$0x1]
      %v2290 = vlaneseq
      %v2291 = vshrl.u32 %v2290, 7
      %v2292 = vsub.s32 0, %v2291
      %v2293 = vrot.slane %v2288, %v2292
      %v2327 = vunpack.c.l.b16 %v2256
      %v2328 = vunpack.c.l.b16 %v2257
      %v2329 = vunpack.c.l.b16 %v2258
      %v2330 = vunpack.c.l.b16 %v2259
      %v2331 = vunpack.c.l.b16 %v2260
      %v2332 = vunpack.c.l.b16 %v2261
      %v2333 = vunpack.c.l.b16 %v2262
      %v2334 = vunpack.c.l.b16 %v2263
      %v2335 = vunpack.c.l.b16 %v2264
      %v2336 = vunpack.c.l.b16 %v2265
      %v2337 = vunpack.c.l.b16 %v2266
      %v2338 = vunpack.c.l.b16 %v2267
      %v2339 = vunpack.c.l.b16 %v2268
      %v2340 = vunpack.c.l.b16 %v2269
      %v2341 = vunpack.c.l.b16 %v2270
      %v2342 = vunpack.c.l.b16 %v2271
      %v2343 = vunpack.c.l.b16 %v2272
      %v2344 = vunpack.c.l.b16 %v2273
      %v2345 = vunpack.c.l.b16 %v2274
      %v2346 = vunpack.c.l.b16 %v2275
      %v2347 = vunpack.c.l.b16 %v2276
      %v2348 = vunpack.c.l.b16 %v2277
      %v2349 = vunpack.c.l.b16 %v2278
      %v2350 = vunpack.c.l.b16 %v2279
      %v2351 = vunpack.c.l.b16 %v2280
      %v2352 = vunpack.c.l.b16 %v2281
      %v2353 = vunpack.c.l.b16 %v2282
      %v2354 = vunpack.c.l.b16 %v2283
      %v2355 = vunpack.c.l.b16 %v2284
      %v2356 = vunpack.c.l.b16 %v2285
      %v2357 = vunpack.c.l.b16 %v2286
      %v2358 = vunpack.c.l.b16 %v2287
      %v2359 = vpack.c.b16 %v2328, %v2327
      %v2360 = vpack.c.b16 %v2330, %v2329
      %v2361 = vpack.c.b16 %v2332, %v2331
      %v2362 = vpack.c.b16 %v2334, %v2333
      %v2363 = vpack.c.b16 %v2336, %v2335
      %v2364 = vpack.c.b16 %v2338, %v2337
      %v2365 = vpack.c.b16 %v2340, %v2339
      %v2366 = vpack.c.b16 %v2342, %v2341
      %v2367 = vpack.c.b16 %v2344, %v2343
      %v2368 = vpack.c.b16 %v2346, %v2345
      %v2369 = vpack.c.b16 %v2348, %v2347
      %v2370 = vpack.c.b16 %v2350, %v2349
      %v2371 = vpack.c.b16 %v2352, %v2351
      %v2372 = vpack.c.b16 %v2354, %v2353
      %v2373 = vpack.c.b16 %v2356, %v2355
      %v2374 = vpack.c.b16 %v2358, %v2357
      %2391 = vmatprep.subr.bf16.mxu0 0
      %2392 = vmatpush1.bf16.msra.mxu0 %v2359
      %2393 = vmatprep.subr.bf16.mxu0 0
      %2394 = vmatpush1.bf16.msra.mxu0 %v2360
      %2395 = vmatprep.subr.bf16.mxu0 0
      %2396 = vmatpush1.bf16.msra.mxu0 %v2361
      %2397 = vmatprep.subr.bf16.mxu0 0
      %2398 = vmatpush1.bf16.msra.mxu0 %v2362
      %2399 = vmatprep.subr.bf16.mxu0 0
      %2400 = vmatpush1.bf16.msra.mxu0 %v2363
      %2401 = vmatprep.subr.bf16.mxu0 0
      %2402 = vmatpush1.bf16.msra.mxu0 %v2364
      %2403 = vmatprep.subr.bf16.mxu0 0
      %2404 = vmatpush1.bf16.msra.mxu0 %v2365
      %2405 = vmatprep.subr.bf16.mxu0 0
      %2406 = vmatpush1.bf16.msra.mxu0 %v2366
      %2407 = vmatprep.subr.bf16.mxu0 0
      %2408 = vmatpush1.bf16.msra.mxu0 %v2367
      %2409 = vmatprep.subr.bf16.mxu0 0
      %2410 = vmatpush1.bf16.msra.mxu0 %v2368
      %2411 = vmatprep.subr.bf16.mxu0 0
      %2412 = vmatpush1.bf16.msra.mxu0 %v2369
      %2413 = vmatprep.subr.bf16.mxu0 0
      %2414 = vmatpush1.bf16.msra.mxu0 %v2370
      %2415 = vmatprep.subr.bf16.mxu0 0
      %2416 = vmatpush1.bf16.msra.mxu0 %v2371
      %2417 = vmatprep.subr.bf16.mxu0 0
      %2418 = vmatpush1.bf16.msra.mxu0 %v2372
      %2419 = vmatprep.subr.bf16.mxu0 0
      %2420 = vmatpush1.bf16.msra.mxu0 %v2373
      %2421 = vmatprep.subr.bf16.mxu0 0
      %2422 = vmatpush1.bf16.msra.mxu0 %v2374
      %2423 = vmatprep.mubr.bf16.mxu0 %v2253
      %2424 = vmatmul.mubr.bf16.gmra.mrb[0].mxu0 %v2252
      %v2425 = vpop.f32.mrb[0].mxu0
      %v2426 = vadd.f32 %v2293, %v2425
      %v2427 = vpop.f32.mrb[0].mxu0
      %v2428 = vpop.f32.mrb[0].mxu0
      %v2429 = vadd.f32 %v2293, %v2428
      %v2430 = vpop.f32.mrb[0].mxu0
      %2431 = vmatprep.mubr.bf16.mxu0 %v2255
      %2432 = vmatmul.mubr.bf16.gmra.mrb[0].mxu0 %v2254
      %v2433 = vpop.f32.mrb[0].mxu0
      %v2434 = vadd.f32 %v2293, %v2433
      %v2435 = vpop.f32.mrb[0].mxu0
      %v2436 = vpop.f32.mrb[0].mxu0
      %v2437 = vpop.f32.mrb[0].mxu0
      %2438 = vdwg.mxu0
      %v2439 = vadd.f32 %v2014, %v2426
      %v2440 = vadd.f32 %v2015, %v2429
      %v2441 = vadd.f32 %v2016, %v2434
      %2442 = vst.msk [vmem:[%s825] sm:$0xff] %vm844, %v2439
      %2443 = vst.msk [vmem:[%s825 + $0x8] sm:$0xff] %vm844, %v2440
      %2444 = vst.msk [vmem:[%s825 + $0x10] sm:$0xff] %vm844, %v2441
      %s2445 = smul.u32 3, %s32
      %p2446 = scmp.lt.s32.totalorder %s2445, 5
      %s2447 = scalar_select %p2446, %s2445, 5
      %s2448 = smul.addr %s2447, 8
      %s2449 = scalar_lea.vmem %s17, %s2448
      // Predicated region
      $region93: #{_lambda_.4} parent=87 // pred_check
        %p2450 = pneg %p500
      $region94: #{_lambda_.4} parent=87 // pred_check_branch
        %2452 = sbr.rel (%p2450) target = $region96
      $region95: #{_lambda_.4} parent=87 // pred_region
        %s2453 = smul.u32 3, %s32
      $region96: #{_lambda_.4} parent=87 // pred_fallthru
        _
    $region88: #{_lambda_.4} parent=5 // pred_fallthru
      _
    %p2454 = scmp.le.s32.totalorder 2, %s23
    // Predicated region
    $region97: #{_lambda_.4} parent=5 // pred_check
      %p2455 = pneg %p2454
    $region98: #{_lambda_.4} parent=5 // pred_check_branch
      %2457 = sbr.rel (%p2455) target = $region100
    $region99: #{_lambda_.4} parent=5 // pred_region
      %s2458 = ssub.s32 %s23, 2
      // Predicated region
      $region101: #{_lambda_.4} parent=99 // pred_check
        %p2459 = pneg %p506
      $region102: #{_lambda_.4} parent=99 // pred_check_branch
        %2461 = sbr.rel (%p2459) target = $region104
      $region103: #{_lambda_.4} parent=99 // pred_region
        %s2462 = smul.u32 3, %s34
        %p2463 = scmp.lt.s32.totalorder %s2462, 5
        %s2464 = scalar_select %p2463, %s2462, 5
        %s2465 = smul.addr %s2464, 8
        %s2466 = scalar_lea.vmem %s17, %s2465
      $region104: #{_lambda_.4} parent=99 // pred_fallthru
        _
    $region100: #{_lambda_.4} parent=5 // pred_fallthru
      _
  $region6: #{_lambda_.4} parent=0 // loop_footer
    %s27 = sadd.s32 1, %s23
  $region7: #{_lambda_.4} parent=0 // loop_footer_branch
    %22 = sbr.rel target = $region3
  $region8: #{_lambda_.4} parent=0 // loop_exit
    _

</llo_original>
